<compile_context>
chip_gen: v6e
topology: v6e:2x2x1
jax: 0.10.0
libtpu: 0.0.40
codegen_flags: <defaults>
</compile_context>

<pallas_src>
import jax
import jax.numpy as jnp
from jax.experimental import pallas as pl
from jax.experimental.pallas import tpu as pltpu

HIDDEN = 64          # hidden_size of the module
NUM_SECURITIES = 1   # LSTM input_size
N_LAYERS = 2


def _lstm_mlp_kernel(x_ref,                         # (S, B)  time-major input
                     wih0_ref, whh0_ref, b0_ref,    # layer-0 params, x@W form, cols (i,f,o,g), i/f/o *0.5
                     wih1_ref, whh1_ref, b1_ref,    # layer-1 params (un-fused), same packing
                     fc1w_ref, fc1b_ref,            # (H, H), (1, H)
                     fc3w_ref, fc3b_ref,            # (H, 10), (1, 10)
                     fc2w_ref, fc2b_ref,            # (1, 10), (1, 1)
                     out_ref,                       # (B, 1)
                     xg_ref):                       # scratch (S, B, 4H): hoisted input projection
    S, B = x_ref.shape
    H = whh0_ref.shape[0]

    # ---- hoisted layer-0 input projection (no recurrent dependency) --------------
    # input_size == 1 -> rank-1 broadcast-FMA done ONCE for all timesteps, stored to
    # VMEM scratch so each step only does a dense (B, 4H) load.
    xg_ref[...] = x_ref[...][:, :, None] * wih0_ref[...] + b0_ref[...]

    def lstm_cell(gates, c):
        # Gate columns pre-permuted to (i, f, o, g) and i/f/o pre-scaled by 0.5
        # offline, so sigmoid(z) = 0.5 * tanh(z/2) + 0.5 needs only ONE full-width
        # tanh here (single EUP launch) instead of exp+reciprocal sigmoids.
        t = jnp.tanh(gates)                       # (B, 4H)
        sig = 0.5 * t[:, :3 * H] + 0.5
        i = sig[:, 0 * H:1 * H]
        f = sig[:, 1 * H:2 * H]
        o = sig[:, 2 * H:3 * H]
        g = t[:, 3 * H:]
        c_new = f * c + i * g
        h_new = o * jnp.tanh(c_new)
        return h_new, c_new

    def step(t, carry):
        h0, c0, h1, c1 = carry
        # layer-1 half that only depends on the PREVIOUS step's h1: can issue early
        # and overlap with layer-0's matmul + cell math under the unroll.
        g1 = jnp.dot(h1, whh1_ref[...], preferred_element_type=jnp.float32) + b1_ref[...]
        # layer 0: recurrent matmul + precomputed input projection
        g0 = xg_ref[t] + jnp.dot(h0, whh0_ref[...], preferred_element_type=jnp.float32)
        h0, c0 = lstm_cell(g0, c0)
        # TODO(synk): inter-layer dropout (p=0.2) is a training-time op; inference here.
        # layer 1, un-fused: no per-step concat of [h0, h1] on the critical path.
        g1 = g1 + jnp.dot(h0, wih1_ref[...], preferred_element_type=jnp.float32)
        h1, c1 = lstm_cell(g1, c1)
        return (h0, c0, h1, c1)

    z = jnp.zeros((B, H), jnp.float32)
    # Short static sequences: full unroll; long: unroll=4 is enough to overlap
    # layer-0(t+1)'s matmul with layer-1(t)'s EUP work.
    unroll = S if S <= 16 else 4
    _, _, h_top, _ = jax.lax.fori_loop(0, S, step, (z, z, z, z), unroll=unroll)

    # ---- FC head: fc1 -> fc3 -> ReLU -> fc2 (matches the PyTorch forward order) ---
    out = jnp.dot(h_top, fc1w_ref[...], preferred_element_type=jnp.float32) + fc1b_ref[...]   # (B, H)
    out = jnp.dot(out, fc3w_ref[...], preferred_element_type=jnp.float32) + fc3b_ref[...]     # (B, 10)
    out = jnp.maximum(out, 0.0)
    # fc2 (10 -> 1): broadcast-mul + lane reduction instead of a degenerate N=1 matmul.
    out = jnp.sum(out * fc2w_ref[...], axis=-1, keepdims=True) + fc2b_ref[...]                # (B, 1)
    out_ref[...] = out


def init_params(key, hidden=HIDDEN):
    """Deterministic PyTorch-like init, in x @ W form, PyTorch gate order (i, f, g, o)."""
    H = hidden
    ks = jax.random.split(key, 14)
    s = 1.0 / jnp.sqrt(jnp.float32(H))

    def u(k, shape, scale):
        return jax.random.uniform(k, shape, jnp.float32, -scale, scale)

    return dict(
        # nn.LSTM stores (4H, in)/(4H, H); we keep transposed (in, 4H)/(H, 4H)
        w_ih0=u(ks[0], (NUM_SECURITIES, 4 * H), s),
        w_hh0=u(ks[1], (H, 4 * H), s),
        b0=u(ks[2], (1, 4 * H), s) + u(ks[3], (1, 4 * H), s),        # b_ih0 + b_hh0
        w_ih1=u(ks[4], (H, 4 * H), s),
        w_hh1=u(ks[5], (H, 4 * H), s),
        b1=u(ks[6], (1, 4 * H), s) + u(ks[7], (1, 4 * H), s),        # b_ih1 + b_hh1
        fc1_w=jax.random.normal(ks[8], (H, H), jnp.float32),          # fc1.weight.data.normal_()
        fc1_b=u(ks[9], (1, H), s),
        fc3_w=u(ks[10], (H, 10), s),
        fc3_b=u(ks[11], (1, 10), s),
        fc2_w=u(ks[12], (1, 10), 1.0 / jnp.sqrt(jnp.float32(10.0))),
        fc2_b=u(ks[13], (1, 1), 1.0 / jnp.sqrt(jnp.float32(10.0))),
    )


def _permute_and_prescale(w, H):
    """Reorder gate columns from PyTorch (i, f, g, o) to kernel (i, f, o, g) and scale
    the sigmoid-gate columns (i, f, o) by 0.5 so the kernel can evaluate
    sigmoid(z) = 0.5 * tanh(z/2) + 0.5 with a single full-width tanh."""
    i = w[..., 0 * H:1 * H]
    f = w[..., 1 * H:2 * H]
    g = w[..., 2 * H:3 * H]
    o = w[..., 3 * H:4 * H]
    return jnp.concatenate([0.5 * i, 0.5 * f, 0.5 * o, g], axis=-1)


def pack_params(p, hidden=HIDDEN):
    """One-time offline packing: gate-column permutation + 0.5 pre-scale of i/f/o cols."""
    H = hidden
    return dict(
        w_ih0=_permute_and_prescale(p["w_ih0"], H),
        w_hh0=_permute_and_prescale(p["w_hh0"], H),
        b0=_permute_and_prescale(p["b0"], H),
        w_ih1=_permute_and_prescale(p["w_ih1"], H),
        w_hh1=_permute_and_prescale(p["w_hh1"], H),
        b1=_permute_and_prescale(p["b1"], H),
        fc1_w=p["fc1_w"], fc1_b=p["fc1_b"],
        fc3_w=p["fc3_w"], fc3_b=p["fc3_b"],
        fc2_w=p["fc2_w"], fc2_b=p["fc2_b"],
    )


@jax.jit
def lstm_forward(x, params):
    B = x.shape[0]
    S = x.shape[2]
    # Matches torch `x.view(seq_length, batch_size, -1)` on a (B, 1, S) tensor:
    # a raw row-major reshape (intentionally bug-compatible, NOT a transpose),
    # with the trailing singleton dim dropped.
    x_seq = jnp.reshape(x.astype(jnp.float32), (S, B))

    vmem = pl.BlockSpec(memory_space=pltpu.MemorySpace.VMEM)
    args = (x_seq,
            params["w_ih0"], params["w_hh0"], params["b0"],
            params["w_ih1"], params["w_hh1"], params["b1"],
            params["fc1_w"], params["fc1_b"],
            params["fc3_w"], params["fc3_b"],
            params["fc2_w"], params["fc2_b"])

    # Only the hoisted (S, B, 4H) input-projection scratch grows with problem size;
    # raise the scoped-VMEM limit only when it actually needs it (v7x: 64 MiB physical).
    xg_bytes = S * max(B, 8) * 4 * HIDDEN * 4
    compiler_params = None
    if xg_bytes > 8 * 1024 * 1024:
        compiler_params = pltpu.CompilerParams(
            vmem_limit_bytes=min(xg_bytes + (8 << 20), 48 << 20))

    return pl.pallas_call(
        _lstm_mlp_kernel,
        out_shape=jax.ShapeDtypeStruct((B, 1), jnp.float32),
        in_specs=[vmem] * len(args),
        out_specs=vmem,
        scratch_shapes=[pltpu.VMEM((S, B, 4 * HIDDEN), jnp.float32)],
        compiler_params=compiler_params,
    )(*args)


if __name__ == "__main__":
    key = jax.random.PRNGKey(0)
    pkey, xkey = jax.random.split(key)
    params = pack_params(init_params(pkey))

    B, S = 2, 8
    x = jax.random.normal(xkey, (B, NUM_SECURITIES, S), jnp.float32)

    out = lstm_forward(x, params)
    jax.block_until_ready(out)
    assert out.shape == (B, 1) and out.dtype == jnp.float32
    print("KERNEL_OK")
</pallas_src>

<mosaic_0001>
module attributes {stable_mosaic.version = 11 : i64} {
  func.func @_lstm_mlp_kernel(%arg0: memref<8x2xf32, #tpu.memory_space<vmem>>, %arg1: memref<1x256xf32, #tpu.memory_space<vmem>>, %arg2: memref<64x256xf32, #tpu.memory_space<vmem>>, %arg3: memref<1x256xf32, #tpu.memory_space<vmem>>, %arg4: memref<64x256xf32, #tpu.memory_space<vmem>>, %arg5: memref<64x256xf32, #tpu.memory_space<vmem>>, %arg6: memref<1x256xf32, #tpu.memory_space<vmem>>, %arg7: memref<64x64xf32, #tpu.memory_space<vmem>>, %arg8: memref<1x64xf32, #tpu.memory_space<vmem>>, %arg9: memref<64x10xf32, #tpu.memory_space<vmem>>, %arg10: memref<1x10xf32, #tpu.memory_space<vmem>>, %arg11: memref<1x10xf32, #tpu.memory_space<vmem>>, %arg12: memref<1x1xf32, #tpu.memory_space<vmem>>, %arg13: memref<2x1xf32, #tpu.memory_space<vmem>>, %arg14: memref<8x2x256xf32, #tpu.memory_space<vmem>>) attributes {dimension_semantics = [], scalar_prefetch = 0 : i64, scratch_operands = 1 : i64, tpu.core_type = #tpu.core_type<tc>} {
    %c0 = arith.constant 0 : index
    %c0_0 = arith.constant 0 : index
    %0 = vector.load %arg0[%c0, %c0_0] : memref<8x2xf32, #tpu.memory_space<vmem>>, vector<8x2xf32>
    %1 = vector.shape_cast %0 : vector<8x2xf32> to vector<8x2x1xf32>
    %c0_1 = arith.constant 0 : index
    %c0_2 = arith.constant 0 : index
    %2 = vector.load %arg1[%c0_1, %c0_2] : memref<1x256xf32, #tpu.memory_space<vmem>>, vector<1x256xf32>
    %3 = vector.shape_cast %2 : vector<1x256xf32> to vector<1x1x256xf32>
    %4 = vector.broadcast %1 : vector<8x2x1xf32> to vector<8x2x256xf32>
    %5 = vector.broadcast %3 : vector<1x1x256xf32> to vector<8x2x256xf32>
    %6 = arith.mulf %4, %5 : vector<8x2x256xf32>
    %c0_3 = arith.constant 0 : index
    %c0_4 = arith.constant 0 : index
    %7 = vector.load %arg3[%c0_3, %c0_4] : memref<1x256xf32, #tpu.memory_space<vmem>>, vector<1x256xf32>
    %8 = vector.shape_cast %7 : vector<1x256xf32> to vector<1x1x256xf32>
    %9 = vector.broadcast %8 : vector<1x1x256xf32> to vector<8x2x256xf32>
    %10 = arith.addf %6, %9 : vector<8x2x256xf32>
    %c0_5 = arith.constant 0 : index
    %c0_6 = arith.constant 0 : index
    %c0_7 = arith.constant 0 : index
    %11 = vector.load %arg14[%c0_5, %c0_6, %c0_7] : memref<8x2x256xf32, #tpu.memory_space<vmem>>, vector<8x2x256xf32>
    tpu.vector_store %arg14[%c0_5, %c0_6, %c0_7], %10 {strides = array<i32>} : memref<8x2x256xf32, #tpu.memory_space<vmem>>, vector<8x2x256xf32>,
    %cst = arith.constant 0.000000e+00 : f32
    %12 = vector.broadcast %cst : f32 to vector<2x64xf32>
    %c0_i32 = arith.constant 0 : i32
    %c0_8 = arith.constant 0 : index
    %c0_9 = arith.constant 0 : index
    %13 = vector.load %arg5[%c0_8, %c0_9] : memref<64x256xf32, #tpu.memory_space<vmem>>, vector<64x256xf32>
    %cst_10 = arith.constant dense<0.000000e+00> : vector<2x256xf32>
    %14 = tpu.matmul %12, %13, %cst_10 {dimension_numbers = #tpu.dot_dimension_numbers<[1], [0], [0], [1], [0, 0, 1, 1], [], []>} : vector<2x64xf32>, vector<64x256xf32>, vector<2x256xf32> -> vector<2x256xf32>
    %c0_11 = arith.constant 0 : index
    %c0_12 = arith.constant 0 : index
    %15 = vector.load %arg6[%c0_11, %c0_12] : memref<1x256xf32, #tpu.memory_space<vmem>>, vector<1x256xf32>
    %16 = vector.broadcast %15 : vector<1x256xf32> to vector<2x256xf32>
    %17 = arith.addf %14, %16 : vector<2x256xf32>
    %18 = arith.index_cast %c0_i32 : i32 to index
    %c0_13 = arith.constant 0 : index
    %c0_14 = arith.constant 0 : index
    %19 = vector.load %arg14[%18, %c0_13, %c0_14] : memref<8x2x256xf32, #tpu.memory_space<vmem>>, vector<1x2x256xf32>
    %20 = vector.shape_cast %19 : vector<1x2x256xf32> to vector<2x256xf32>
    %c0_15 = arith.constant 0 : index
    %c0_16 = arith.constant 0 : index
    %21 = vector.load %arg2[%c0_15, %c0_16] : memref<64x256xf32, #tpu.memory_space<vmem>>, vector<64x256xf32>
    %cst_17 = arith.constant dense<0.000000e+00> : vector<2x256xf32>
    %22 = tpu.matmul %12, %21, %cst_17 {dimension_numbers = #tpu.dot_dimension_numbers<[1], [0], [0], [1], [0, 0, 1, 1], [], []>} : vector<2x64xf32>, vector<64x256xf32>, vector<2x256xf32> -> vector<2x256xf32>
    %23 = arith.addf %20, %22 : vector<2x256xf32>
    %24 = math.tanh %23 : vector<2x256xf32>
    %25 = vector.extract_strided_slice %24 {offsets = [0, 0], sizes = [2, 192], strides = [1, 1]} : vector<2x256xf32> to vector<2x192xf32>
    %cst_18 = arith.constant 5.000000e-01 : f32
    %26 = vector.broadcast %cst_18 : f32 to vector<2x192xf32>
    %27 = arith.mulf %26, %25 : vector<2x192xf32>
    %cst_19 = arith.constant 5.000000e-01 : f32
    %28 = vector.broadcast %cst_19 : f32 to vector<2x192xf32>
    %29 = arith.addf %27, %28 : vector<2x192xf32>
    %30 = vector.extract_strided_slice %29 {offsets = [0, 0], sizes = [2, 64], strides = [1, 1]} : vector<2x192xf32> to vector<2x64xf32>
    %31 = vector.extract_strided_slice %29 {offsets = [0, 64], sizes = [2, 64], strides = [1, 1]} : vector<2x192xf32> to vector<2x64xf32>
    %32 = vector.extract_strided_slice %29 {offsets = [0, 128], sizes = [2, 64], strides = [1, 1]} : vector<2x192xf32> to vector<2x64xf32>
    %33 = vector.extract_strided_slice %24 {offsets = [0, 192], sizes = [2, 64], strides = [1, 1]} : vector<2x256xf32> to vector<2x64xf32>
    %34 = arith.mulf %31, %12 : vector<2x64xf32>
    %35 = arith.mulf %30, %33 : vector<2x64xf32>
    %36 = arith.addf %34, %35 : vector<2x64xf32>
    %37 = math.tanh %36 : vector<2x64xf32>
    %38 = arith.mulf %32, %37 : vector<2x64xf32>
    %c0_20 = arith.constant 0 : index
    %c0_21 = arith.constant 0 : index
    %39 = vector.load %arg4[%c0_20, %c0_21] : memref<64x256xf32, #tpu.memory_space<vmem>>, vector<64x256xf32>
    %cst_22 = arith.constant dense<0.000000e+00> : vector<2x256xf32>
    %40 = tpu.matmul %38, %39, %cst_22 {dimension_numbers = #tpu.dot_dimension_numbers<[1], [0], [0], [1], [0, 0, 1, 1], [], []>} : vector<2x64xf32>, vector<64x256xf32>, vector<2x256xf32> -> vector<2x256xf32>
    %41 = arith.addf %17, %40 : vector<2x256xf32>
    %42 = math.tanh %41 : vector<2x256xf32>
    %43 = vector.extract_strided_slice %42 {offsets = [0, 0], sizes = [2, 192], strides = [1, 1]} : vector<2x256xf32> to vector<2x192xf32>
    %cst_23 = arith.constant 5.000000e-01 : f32
    %44 = vector.broadcast %cst_23 : f32 to vector<2x192xf32>
    %45 = arith.mulf %44, %43 : vector<2x192xf32>
    %cst_24 = arith.constant 5.000000e-01 : f32
    %46 = vector.broadcast %cst_24 : f32 to vector<2x192xf32>
    %47 = arith.addf %45, %46 : vector<2x192xf32>
    %48 = vector.extract_strided_slice %47 {offsets = [0, 0], sizes = [2, 64], strides = [1, 1]} : vector<2x192xf32> to vector<2x64xf32>
    %49 = vector.extract_strided_slice %47 {offsets = [0, 64], sizes = [2, 64], strides = [1, 1]} : vector<2x192xf32> to vector<2x64xf32>
    %50 = vector.extract_strided_slice %47 {offsets = [0, 128], sizes = [2, 64], strides = [1, 1]} : vector<2x192xf32> to vector<2x64xf32>
    %51 = vector.extract_strided_slice %42 {offsets = [0, 192], sizes = [2, 64], strides = [1, 1]} : vector<2x256xf32> to vector<2x64xf32>
    %52 = arith.mulf %49, %12 : vector<2x64xf32>
    %53 = arith.mulf %48, %51 : vector<2x64xf32>
    %54 = arith.addf %52, %53 : vector<2x64xf32>
    %55 = math.tanh %54 : vector<2x64xf32>
    %56 = arith.mulf %50, %55 : vector<2x64xf32>
    %c1_i32 = arith.constant 1 : i32
    %c0_25 = arith.constant 0 : index
    %c0_26 = arith.constant 0 : index
    %57 = vector.load %arg5[%c0_25, %c0_26] : memref<64x256xf32, #tpu.memory_space<vmem>>, vector<64x256xf32>
    %cst_27 = arith.constant dense<0.000000e+00> : vector<2x256xf32>
    %58 = tpu.matmul %56, %57, %cst_27 {dimension_numbers = #tpu.dot_dimension_numbers<[1], [0], [0], [1], [0, 0, 1, 1], [], []>} : vector<2x64xf32>, vector<64x256xf32>, vector<2x256xf32> -> vector<2x256xf32>
    %c0_28 = arith.constant 0 : index
    %c0_29 = arith.constant 0 : index
    %59 = vector.load %arg6[%c0_28, %c0_29] : memref<1x256xf32, #tpu.memory_space<vmem>>, vector<1x256xf32>
    %60 = vector.broadcast %59 : vector<1x256xf32> to vector<2x256xf32>
    %61 = arith.addf %58, %60 : vector<2x256xf32>
    %62 = arith.index_cast %c1_i32 : i32 to index
    %c0_30 = arith.constant 0 : index
    %c0_31 = arith.constant 0 : index
    %63 = vector.load %arg14[%62, %c0_30, %c0_31] : memref<8x2x256xf32, #tpu.memory_space<vmem>>, vector<1x2x256xf32>
    %64 = vector.shape_cast %63 : vector<1x2x256xf32> to vector<2x256xf32>
    %c0_32 = arith.constant 0 : index
    %c0_33 = arith.constant 0 : index
    %65 = vector.load %arg2[%c0_32, %c0_33] : memref<64x256xf32, #tpu.memory_space<vmem>>, vector<64x256xf32>
    %cst_34 = arith.constant dense<0.000000e+00> : vector<2x256xf32>
    %66 = tpu.matmul %38, %65, %cst_34 {dimension_numbers = #tpu.dot_dimension_numbers<[1], [0], [0], [1], [0, 0, 1, 1], [], []>} : vector<2x64xf32>, vector<64x256xf32>, vector<2x256xf32> -> vector<2x256xf32>
    %67 = arith.addf %64, %66 : vector<2x256xf32>
    %68 = math.tanh %67 : vector<2x256xf32>
    %69 = vector.extract_strided_slice %68 {offsets = [0, 0], sizes = [2, 192], strides = [1, 1]} : vector<2x256xf32> to vector<2x192xf32>
    %cst_35 = arith.constant 5.000000e-01 : f32
    %70 = vector.broadcast %cst_35 : f32 to vector<2x192xf32>
    %71 = arith.mulf %70, %69 : vector<2x192xf32>
    %cst_36 = arith.constant 5.000000e-01 : f32
    %72 = vector.broadcast %cst_36 : f32 to vector<2x192xf32>
    %73 = arith.addf %71, %72 : vector<2x192xf32>
    %74 = vector.extract_strided_slice %73 {offsets = [0, 0], sizes = [2, 64], strides = [1, 1]} : vector<2x192xf32> to vector<2x64xf32>
    %75 = vector.extract_strided_slice %73 {offsets = [0, 64], sizes = [2, 64], strides = [1, 1]} : vector<2x192xf32> to vector<2x64xf32>
    %76 = vector.extract_strided_slice %73 {offsets = [0, 128], sizes = [2, 64], strides = [1, 1]} : vector<2x192xf32> to vector<2x64xf32>
    %77 = vector.extract_strided_slice %68 {offsets = [0, 192], sizes = [2, 64], strides = [1, 1]} : vector<2x256xf32> to vector<2x64xf32>
    %78 = arith.mulf %75, %36 : vector<2x64xf32>
    %79 = arith.mulf %74, %77 : vector<2x64xf32>
    %80 = arith.addf %78, %79 : vector<2x64xf32>
    %81 = math.tanh %80 : vector<2x64xf32>
    %82 = arith.mulf %76, %81 : vector<2x64xf32>
    %c0_37 = arith.constant 0 : index
    %c0_38 = arith.constant 0 : index
    %83 = vector.load %arg4[%c0_37, %c0_38] : memref<64x256xf32, #tpu.memory_space<vmem>>, vector<64x256xf32>
    %cst_39 = arith.constant dense<0.000000e+00> : vector<2x256xf32>
    %84 = tpu.matmul %82, %83, %cst_39 {dimension_numbers = #tpu.dot_dimension_numbers<[1], [0], [0], [1], [0, 0, 1, 1], [], []>} : vector<2x64xf32>, vector<64x256xf32>, vector<2x256xf32> -> vector<2x256xf32>
    %85 = arith.addf %61, %84 : vector<2x256xf32>
    %86 = math.tanh %85 : vector<2x256xf32>
    %87 = vector.extract_strided_slice %86 {offsets = [0, 0], sizes = [2, 192], strides = [1, 1]} : vector<2x256xf32> to vector<2x192xf32>
    %cst_40 = arith.constant 5.000000e-01 : f32
    %88 = vector.broadcast %cst_40 : f32 to vector<2x192xf32>
    %89 = arith.mulf %88, %87 : vector<2x192xf32>
    %cst_41 = arith.constant 5.000000e-01 : f32
    %90 = vector.broadcast %cst_41 : f32 to vector<2x192xf32>
    %91 = arith.addf %89, %90 : vector<2x192xf32>
    %92 = vector.extract_strided_slice %91 {offsets = [0, 0], sizes = [2, 64], strides = [1, 1]} : vector<2x192xf32> to vector<2x64xf32>
    %93 = vector.extract_strided_slice %91 {offsets = [0, 64], sizes = [2, 64], strides = [1, 1]} : vector<2x192xf32> to vector<2x64xf32>
    %94 = vector.extract_strided_slice %91 {offsets = [0, 128], sizes = [2, 64], strides = [1, 1]} : vector<2x192xf32> to vector<2x64xf32>
    %95 = vector.extract_strided_slice %86 {offsets = [0, 192], sizes = [2, 64], strides = [1, 1]} : vector<2x256xf32> to vector<2x64xf32>
    %96 = arith.mulf %93, %54 : vector<2x64xf32>
    %97 = arith.mulf %92, %95 : vector<2x64xf32>
    %98 = arith.addf %96, %97 : vector<2x64xf32>
    %99 = math.tanh %98 : vector<2x64xf32>
    %100 = arith.mulf %94, %99 : vector<2x64xf32>
    %c2_i32 = arith.constant 2 : i32
    %c0_42 = arith.constant 0 : index
    %c0_43 = arith.constant 0 : index
    %101 = vector.load %arg5[%c0_42, %c0_43] : memref<64x256xf32, #tpu.memory_space<vmem>>, vector<64x256xf32>
    %cst_44 = arith.constant dense<0.000000e+00> : vector<2x256xf32>
    %102 = tpu.matmul %100, %101, %cst_44 {dimension_numbers = #tpu.dot_dimension_numbers<[1], [0], [0], [1], [0, 0, 1, 1], [], []>} : vector<2x64xf32>, vector<64x256xf32>, vector<2x256xf32> -> vector<2x256xf32>
    %c0_45 = arith.constant 0 : index
    %c0_46 = arith.constant 0 : index
    %103 = vector.load %arg6[%c0_45, %c0_46] : memref<1x256xf32, #tpu.memory_space<vmem>>, vector<1x256xf32>
    %104 = vector.broadcast %103 : vector<1x256xf32> to vector<2x256xf32>
    %105 = arith.addf %102, %104 : vector<2x256xf32>
    %106 = arith.index_cast %c2_i32 : i32 to index
    %c0_47 = arith.constant 0 : index
    %c0_48 = arith.constant 0 : index
    %107 = vector.load %arg14[%106, %c0_47, %c0_48] : memref<8x2x256xf32, #tpu.memory_space<vmem>>, vector<1x2x256xf32>
    %108 = vector.shape_cast %107 : vector<1x2x256xf32> to vector<2x256xf32>
    %c0_49 = arith.constant 0 : index
    %c0_50 = arith.constant 0 : index
    %109 = vector.load %arg2[%c0_49, %c0_50] : memref<64x256xf32, #tpu.memory_space<vmem>>, vector<64x256xf32>
    %cst_51 = arith.constant dense<0.000000e+00> : vector<2x256xf32>
    %110 = tpu.matmul %82, %109, %cst_51 {dimension_numbers = #tpu.dot_dimension_numbers<[1], [0], [0], [1], [0, 0, 1, 1], [], []>} : vector<2x64xf32>, vector<64x256xf32>, vector<2x256xf32> -> vector<2x256xf32>
    %111 = arith.addf %108, %110 : vector<2x256xf32>
    %112 = math.tanh %111 : vector<2x256xf32>
    %113 = vector.extract_strided_slice %112 {offsets = [0, 0], sizes = [2, 192], strides = [1, 1]} : vector<2x256xf32> to vector<2x192xf32>
    %cst_52 = arith.constant 5.000000e-01 : f32
    %114 = vector.broadcast %cst_52 : f32 to vector<2x192xf32>
    %115 = arith.mulf %114, %113 : vector<2x192xf32>
    %cst_53 = arith.constant 5.000000e-01 : f32
    %116 = vector.broadcast %cst_53 : f32 to vector<2x192xf32>
    %117 = arith.addf %115, %116 : vector<2x192xf32>
    %118 = vector.extract_strided_slice %117 {offsets = [0, 0], sizes = [2, 64], strides = [1, 1]} : vector<2x192xf32> to vector<2x64xf32>
    %119 = vector.extract_strided_slice %117 {offsets = [0, 64], sizes = [2, 64], strides = [1, 1]} : vector<2x192xf32> to vector<2x64xf32>
    %120 = vector.extract_strided_slice %117 {offsets = [0, 128], sizes = [2, 64], strides = [1, 1]} : vector<2x192xf32> to vector<2x64xf32>
    %121 = vector.extract_strided_slice %112 {offsets = [0, 192], sizes = [2, 64], strides = [1, 1]} : vector<2x256xf32> to vector<2x64xf32>
    %122 = arith.mulf %119, %80 : vector<2x64xf32>
    %123 = arith.mulf %118, %121 : vector<2x64xf32>
    %124 = arith.addf %122, %123 : vector<2x64xf32>
    %125 = math.tanh %124 : vector<2x64xf32>
    %126 = arith.mulf %120, %125 : vector<2x64xf32>
    %c0_54 = arith.constant 0 : index
    %c0_55 = arith.constant 0 : index
    %127 = vector.load %arg4[%c0_54, %c0_55] : memref<64x256xf32, #tpu.memory_space<vmem>>, vector<64x256xf32>
    %cst_56 = arith.constant dense<0.000000e+00> : vector<2x256xf32>
    %128 = tpu.matmul %126, %127, %cst_56 {dimension_numbers = #tpu.dot_dimension_numbers<[1], [0], [0], [1], [0, 0, 1, 1], [], []>} : vector<2x64xf32>, vector<64x256xf32>, vector<2x256xf32> -> vector<2x256xf32>
    %129 = arith.addf %105, %128 : vector<2x256xf32>
    %130 = math.tanh %129 : vector<2x256xf32>
    %131 = vector.extract_strided_slice %130 {offsets = [0, 0], sizes = [2, 192], strides = [1, 1]} : vector<2x256xf32> to vector<2x192xf32>
    %cst_57 = arith.constant 5.000000e-01 : f32
    %132 = vector.broadcast %cst_57 : f32 to vector<2x192xf32>
    %133 = arith.mulf %132, %131 : vector<2x192xf32>
    %cst_58 = arith.constant 5.000000e-01 : f32
    %134 = vector.broadcast %cst_58 : f32 to vector<2x192xf32>
    %135 = arith.addf %133, %134 : vector<2x192xf32>
    %136 = vector.extract_strided_slice %135 {offsets = [0, 0], sizes = [2, 64], strides = [1, 1]} : vector<2x192xf32> to vector<2x64xf32>
    %137 = vector.extract_strided_slice %135 {offsets = [0, 64], sizes = [2, 64], strides = [1, 1]} : vector<2x192xf32> to vector<2x64xf32>
    %138 = vector.extract_strided_slice %135 {offsets = [0, 128], sizes = [2, 64], strides = [1, 1]} : vector<2x192xf32> to vector<2x64xf32>
    %139 = vector.extract_strided_slice %130 {offsets = [0, 192], sizes = [2, 64], strides = [1, 1]} : vector<2x256xf32> to vector<2x64xf32>
    %140 = arith.mulf %137, %98 : vector<2x64xf32>
    %141 = arith.mulf %136, %139 : vector<2x64xf32>
    %142 = arith.addf %140, %141 : vector<2x64xf32>
    %143 = math.tanh %142 : vector<2x64xf32>
    %144 = arith.mulf %138, %143 : vector<2x64xf32>
    %c3_i32 = arith.constant 3 : i32
    %c0_59 = arith.constant 0 : index
    %c0_60 = arith.constant 0 : index
    %145 = vector.load %arg5[%c0_59, %c0_60] : memref<64x256xf32, #tpu.memory_space<vmem>>, vector<64x256xf32>
    %cst_61 = arith.constant dense<0.000000e+00> : vector<2x256xf32>
    %146 = tpu.matmul %144, %145, %cst_61 {dimension_numbers = #tpu.dot_dimension_numbers<[1], [0], [0], [1], [0, 0, 1, 1], [], []>} : vector<2x64xf32>, vector<64x256xf32>, vector<2x256xf32> -> vector<2x256xf32>
    %c0_62 = arith.constant 0 : index
    %c0_63 = arith.constant 0 : index
    %147 = vector.load %arg6[%c0_62, %c0_63] : memref<1x256xf32, #tpu.memory_space<vmem>>, vector<1x256xf32>
    %148 = vector.broadcast %147 : vector<1x256xf32> to vector<2x256xf32>
    %149 = arith.addf %146, %148 : vector<2x256xf32>
    %150 = arith.index_cast %c3_i32 : i32 to index
    %c0_64 = arith.constant 0 : index
    %c0_65 = arith.constant 0 : index
    %151 = vector.load %arg14[%150, %c0_64, %c0_65] : memref<8x2x256xf32, #tpu.memory_space<vmem>>, vector<1x2x256xf32>
    %152 = vector.shape_cast %151 : vector<1x2x256xf32> to vector<2x256xf32>
    %c0_66 = arith.constant 0 : index
    %c0_67 = arith.constant 0 : index
    %153 = vector.load %arg2[%c0_66, %c0_67] : memref<64x256xf32, #tpu.memory_space<vmem>>, vector<64x256xf32>
    %cst_68 = arith.constant dense<0.000000e+00> : vector<2x256xf32>
    %154 = tpu.matmul %126, %153, %cst_68 {dimension_numbers = #tpu.dot_dimension_numbers<[1], [0], [0], [1], [0, 0, 1, 1], [], []>} : vector<2x64xf32>, vector<64x256xf32>, vector<2x256xf32> -> vector<2x256xf32>
    %155 = arith.addf %152, %154 : vector<2x256xf32>
    %156 = math.tanh %155 : vector<2x256xf32>
    %157 = vector.extract_strided_slice %156 {offsets = [0, 0], sizes = [2, 192], strides = [1, 1]} : vector<2x256xf32> to vector<2x192xf32>
    %cst_69 = arith.constant 5.000000e-01 : f32
    %158 = vector.broadcast %cst_69 : f32 to vector<2x192xf32>
    %159 = arith.mulf %158, %157 : vector<2x192xf32>
    %cst_70 = arith.constant 5.000000e-01 : f32
    %160 = vector.broadcast %cst_70 : f32 to vector<2x192xf32>
    %161 = arith.addf %159, %160 : vector<2x192xf32>
    %162 = vector.extract_strided_slice %161 {offsets = [0, 0], sizes = [2, 64], strides = [1, 1]} : vector<2x192xf32> to vector<2x64xf32>
    %163 = vector.extract_strided_slice %161 {offsets = [0, 64], sizes = [2, 64], strides = [1, 1]} : vector<2x192xf32> to vector<2x64xf32>
    %164 = vector.extract_strided_slice %161 {offsets = [0, 128], sizes = [2, 64], strides = [1, 1]} : vector<2x192xf32> to vector<2x64xf32>
    %165 = vector.extract_strided_slice %156 {offsets = [0, 192], sizes = [2, 64], strides = [1, 1]} : vector<2x256xf32> to vector<2x64xf32>
    %166 = arith.mulf %163, %124 : vector<2x64xf32>
    %167 = arith.mulf %162, %165 : vector<2x64xf32>
    %168 = arith.addf %166, %167 : vector<2x64xf32>
    %169 = math.tanh %168 : vector<2x64xf32>
    %170 = arith.mulf %164, %169 : vector<2x64xf32>
    %c0_71 = arith.constant 0 : index
    %c0_72 = arith.constant 0 : index
    %171 = vector.load %arg4[%c0_71, %c0_72] : memref<64x256xf32, #tpu.memory_space<vmem>>, vector<64x256xf32>
    %cst_73 = arith.constant dense<0.000000e+00> : vector<2x256xf32>
    %172 = tpu.matmul %170, %171, %cst_73 {dimension_numbers = #tpu.dot_dimension_numbers<[1], [0], [0], [1], [0, 0, 1, 1], [], []>} : vector<2x64xf32>, vector<64x256xf32>, vector<2x256xf32> -> vector<2x256xf32>
    %173 = arith.addf %149, %172 : vector<2x256xf32>
    %174 = math.tanh %173 : vector<2x256xf32>
    %175 = vector.extract_strided_slice %174 {offsets = [0, 0], sizes = [2, 192], strides = [1, 1]} : vector<2x256xf32> to vector<2x192xf32>
    %cst_74 = arith.constant 5.000000e-01 : f32
    %176 = vector.broadcast %cst_74 : f32 to vector<2x192xf32>
    %177 = arith.mulf %176, %175 : vector<2x192xf32>
    %cst_75 = arith.constant 5.000000e-01 : f32
    %178 = vector.broadcast %cst_75 : f32 to vector<2x192xf32>
    %179 = arith.addf %177, %178 : vector<2x192xf32>
    %180 = vector.extract_strided_slice %179 {offsets = [0, 0], sizes = [2, 64], strides = [1, 1]} : vector<2x192xf32> to vector<2x64xf32>
    %181 = vector.extract_strided_slice %179 {offsets = [0, 64], sizes = [2, 64], strides = [1, 1]} : vector<2x192xf32> to vector<2x64xf32>
    %182 = vector.extract_strided_slice %179 {offsets = [0, 128], sizes = [2, 64], strides = [1, 1]} : vector<2x192xf32> to vector<2x64xf32>
    %183 = vector.extract_strided_slice %174 {offsets = [0, 192], sizes = [2, 64], strides = [1, 1]} : vector<2x256xf32> to vector<2x64xf32>
    %184 = arith.mulf %181, %142 : vector<2x64xf32>
    %185 = arith.mulf %180, %183 : vector<2x64xf32>
    %186 = arith.addf %184, %185 : vector<2x64xf32>
    %187 = math.tanh %186 : vector<2x64xf32>
    %188 = arith.mulf %182, %187 : vector<2x64xf32>
    %c4_i32 = arith.constant 4 : i32
    %c0_76 = arith.constant 0 : index
    %c0_77 = arith.constant 0 : index
    %189 = vector.load %arg5[%c0_76, %c0_77] : memref<64x256xf32, #tpu.memory_space<vmem>>, vector<64x256xf32>
    %cst_78 = arith.constant dense<0.000000e+00> : vector<2x256xf32>
    %190 = tpu.matmul %188, %189, %cst_78 {dimension_numbers = #tpu.dot_dimension_numbers<[1], [0], [0], [1], [0, 0, 1, 1], [], []>} : vector<2x64xf32>, vector<64x256xf32>, vector<2x256xf32> -> vector<2x256xf32>
    %c0_79 = arith.constant 0 : index
    %c0_80 = arith.constant 0 : index
    %191 = vector.load %arg6[%c0_79, %c0_80] : memref<1x256xf32, #tpu.memory_space<vmem>>, vector<1x256xf32>
    %192 = vector.broadcast %191 : vector<1x256xf32> to vector<2x256xf32>
    %193 = arith.addf %190, %192 : vector<2x256xf32>
    %194 = arith.index_cast %c4_i32 : i32 to index
    %c0_81 = arith.constant 0 : index
    %c0_82 = arith.constant 0 : index
    %195 = vector.load %arg14[%194, %c0_81, %c0_82] : memref<8x2x256xf32, #tpu.memory_space<vmem>>, vector<1x2x256xf32>
    %196 = vector.shape_cast %195 : vector<1x2x256xf32> to vector<2x256xf32>
    %c0_83 = arith.constant 0 : index
    %c0_84 = arith.constant 0 : index
    %197 = vector.load %arg2[%c0_83, %c0_84] : memref<64x256xf32, #tpu.memory_space<vmem>>, vector<64x256xf32>
    %cst_85 = arith.constant dense<0.000000e+00> : vector<2x256xf32>
    %198 = tpu.matmul %170, %197, %cst_85 {dimension_numbers = #tpu.dot_dimension_numbers<[1], [0], [0], [1], [0, 0, 1, 1], [], []>} : vector<2x64xf32>, vector<64x256xf32>, vector<2x256xf32> -> vector<2x256xf32>
    %199 = arith.addf %196, %198 : vector<2x256xf32>
    %200 = math.tanh %199 : vector<2x256xf32>
    %201 = vector.extract_strided_slice %200 {offsets = [0, 0], sizes = [2, 192], strides = [1, 1]} : vector<2x256xf32> to vector<2x192xf32>
    %cst_86 = arith.constant 5.000000e-01 : f32
    %202 = vector.broadcast %cst_86 : f32 to vector<2x192xf32>
    %203 = arith.mulf %202, %201 : vector<2x192xf32>
    %cst_87 = arith.constant 5.000000e-01 : f32
    %204 = vector.broadcast %cst_87 : f32 to vector<2x192xf32>
    %205 = arith.addf %203, %204 : vector<2x192xf32>
    %206 = vector.extract_strided_slice %205 {offsets = [0, 0], sizes = [2, 64], strides = [1, 1]} : vector<2x192xf32> to vector<2x64xf32>
    %207 = vector.extract_strided_slice %205 {offsets = [0, 64], sizes = [2, 64], strides = [1, 1]} : vector<2x192xf32> to vector<2x64xf32>
    %208 = vector.extract_strided_slice %205 {offsets = [0, 128], sizes = [2, 64], strides = [1, 1]} : vector<2x192xf32> to vector<2x64xf32>
    %209 = vector.extract_strided_slice %200 {offsets = [0, 192], sizes = [2, 64], strides = [1, 1]} : vector<2x256xf32> to vector<2x64xf32>
    %210 = arith.mulf %207, %168 : vector<2x64xf32>
    %211 = arith.mulf %206, %209 : vector<2x64xf32>
    %212 = arith.addf %210, %211 : vector<2x64xf32>
    %213 = math.tanh %212 : vector<2x64xf32>
    %214 = arith.mulf %208, %213 : vector<2x64xf32>
    %c0_88 = arith.constant 0 : index
    %c0_89 = arith.constant 0 : index
    %215 = vector.load %arg4[%c0_88, %c0_89] : memref<64x256xf32, #tpu.memory_space<vmem>>, vector<64x256xf32>
    %cst_90 = arith.constant dense<0.000000e+00> : vector<2x256xf32>
    %216 = tpu.matmul %214, %215, %cst_90 {dimension_numbers = #tpu.dot_dimension_numbers<[1], [0], [0], [1], [0, 0, 1, 1], [], []>} : vector<2x64xf32>, vector<64x256xf32>, vector<2x256xf32> -> vector<2x256xf32>
    %217 = arith.addf %193, %216 : vector<2x256xf32>
    %218 = math.tanh %217 : vector<2x256xf32>
    %219 = vector.extract_strided_slice %218 {offsets = [0, 0], sizes = [2, 192], strides = [1, 1]} : vector<2x256xf32> to vector<2x192xf32>
    %cst_91 = arith.constant 5.000000e-01 : f32
    %220 = vector.broadcast %cst_91 : f32 to vector<2x192xf32>
    %221 = arith.mulf %220, %219 : vector<2x192xf32>
    %cst_92 = arith.constant 5.000000e-01 : f32
    %222 = vector.broadcast %cst_92 : f32 to vector<2x192xf32>
    %223 = arith.addf %221, %222 : vector<2x192xf32>
    %224 = vector.extract_strided_slice %223 {offsets = [0, 0], sizes = [2, 64], strides = [1, 1]} : vector<2x192xf32> to vector<2x64xf32>
    %225 = vector.extract_strided_slice %223 {offsets = [0, 64], sizes = [2, 64], strides = [1, 1]} : vector<2x192xf32> to vector<2x64xf32>
    %226 = vector.extract_strided_slice %223 {offsets = [0, 128], sizes = [2, 64], strides = [1, 1]} : vector<2x192xf32> to vector<2x64xf32>
    %227 = vector.extract_strided_slice %218 {offsets = [0, 192], sizes = [2, 64], strides = [1, 1]} : vector<2x256xf32> to vector<2x64xf32>
    %228 = arith.mulf %225, %186 : vector<2x64xf32>
    %229 = arith.mulf %224, %227 : vector<2x64xf32>
    %230 = arith.addf %228, %229 : vector<2x64xf32>
    %231 = math.tanh %230 : vector<2x64xf32>
    %232 = arith.mulf %226, %231 : vector<2x64xf32>
    %c5_i32 = arith.constant 5 : i32
    %c0_93 = arith.constant 0 : index
    %c0_94 = arith.constant 0 : index
    %233 = vector.load %arg5[%c0_93, %c0_94] : memref<64x256xf32, #tpu.memory_space<vmem>>, vector<64x256xf32>
    %cst_95 = arith.constant dense<0.000000e+00> : vector<2x256xf32>
    %234 = tpu.matmul %232, %233, %cst_95 {dimension_numbers = #tpu.dot_dimension_numbers<[1], [0], [0], [1], [0, 0, 1, 1], [], []>} : vector<2x64xf32>, vector<64x256xf32>, vector<2x256xf32> -> vector<2x256xf32>
    %c0_96 = arith.constant 0 : index
    %c0_97 = arith.constant 0 : index
    %235 = vector.load %arg6[%c0_96, %c0_97] : memref<1x256xf32, #tpu.memory_space<vmem>>, vector<1x256xf32>
    %236 = vector.broadcast %235 : vector<1x256xf32> to vector<2x256xf32>
    %237 = arith.addf %234, %236 : vector<2x256xf32>
    %238 = arith.index_cast %c5_i32 : i32 to index
    %c0_98 = arith.constant 0 : index
    %c0_99 = arith.constant 0 : index
    %239 = vector.load %arg14[%238, %c0_98, %c0_99] : memref<8x2x256xf32, #tpu.memory_space<vmem>>, vector<1x2x256xf32>
    %240 = vector.shape_cast %239 : vector<1x2x256xf32> to vector<2x256xf32>
    %c0_100 = arith.constant 0 : index
    %c0_101 = arith.constant 0 : index
    %241 = vector.load %arg2[%c0_100, %c0_101] : memref<64x256xf32, #tpu.memory_space<vmem>>, vector<64x256xf32>
    %cst_102 = arith.constant dense<0.000000e+00> : vector<2x256xf32>
    %242 = tpu.matmul %214, %241, %cst_102 {dimension_numbers = #tpu.dot_dimension_numbers<[1], [0], [0], [1], [0, 0, 1, 1], [], []>} : vector<2x64xf32>, vector<64x256xf32>, vector<2x256xf32> -> vector<2x256xf32>
    %243 = arith.addf %240, %242 : vector<2x256xf32>
    %244 = math.tanh %243 : vector<2x256xf32>
    %245 = vector.extract_strided_slice %244 {offsets = [0, 0], sizes = [2, 192], strides = [1, 1]} : vector<2x256xf32> to vector<2x192xf32>
    %cst_103 = arith.constant 5.000000e-01 : f32
    %246 = vector.broadcast %cst_103 : f32 to vector<2x192xf32>
    %247 = arith.mulf %246, %245 : vector<2x192xf32>
    %cst_104 = arith.constant 5.000000e-01 : f32
    %248 = vector.broadcast %cst_104 : f32 to vector<2x192xf32>
    %249 = arith.addf %247, %248 : vector<2x192xf32>
    %250 = vector.extract_strided_slice %249 {offsets = [0, 0], sizes = [2, 64], strides = [1, 1]} : vector<2x192xf32> to vector<2x64xf32>
    %251 = vector.extract_strided_slice %249 {offsets = [0, 64], sizes = [2, 64], strides = [1, 1]} : vector<2x192xf32> to vector<2x64xf32>
    %252 = vector.extract_strided_slice %249 {offsets = [0, 128], sizes = [2, 64], strides = [1, 1]} : vector<2x192xf32> to vector<2x64xf32>
    %253 = vector.extract_strided_slice %244 {offsets = [0, 192], sizes = [2, 64], strides = [1, 1]} : vector<2x256xf32> to vector<2x64xf32>
    %254 = arith.mulf %251, %212 : vector<2x64xf32>
    %255 = arith.mulf %250, %253 : vector<2x64xf32>
    %256 = arith.addf %254, %255 : vector<2x64xf32>
    %257 = math.tanh %256 : vector<2x64xf32>
    %258 = arith.mulf %252, %257 : vector<2x64xf32>
    %c0_105 = arith.constant 0 : index
    %c0_106 = arith.constant 0 : index
    %259 = vector.load %arg4[%c0_105, %c0_106] : memref<64x256xf32, #tpu.memory_space<vmem>>, vector<64x256xf32>
    %cst_107 = arith.constant dense<0.000000e+00> : vector<2x256xf32>
    %260 = tpu.matmul %258, %259, %cst_107 {dimension_numbers = #tpu.dot_dimension_numbers<[1], [0], [0], [1], [0, 0, 1, 1], [], []>} : vector<2x64xf32>, vector<64x256xf32>, vector<2x256xf32> -> vector<2x256xf32>
    %261 = arith.addf %237, %260 : vector<2x256xf32>
    %262 = math.tanh %261 : vector<2x256xf32>
    %263 = vector.extract_strided_slice %262 {offsets = [0, 0], sizes = [2, 192], strides = [1, 1]} : vector<2x256xf32> to vector<2x192xf32>
    %cst_108 = arith.constant 5.000000e-01 : f32
    %264 = vector.broadcast %cst_108 : f32 to vector<2x192xf32>
    %265 = arith.mulf %264, %263 : vector<2x192xf32>
    %cst_109 = arith.constant 5.000000e-01 : f32
    %266 = vector.broadcast %cst_109 : f32 to vector<2x192xf32>
    %267 = arith.addf %265, %266 : vector<2x192xf32>
    %268 = vector.extract_strided_slice %267 {offsets = [0, 0], sizes = [2, 64], strides = [1, 1]} : vector<2x192xf32> to vector<2x64xf32>
    %269 = vector.extract_strided_slice %267 {offsets = [0, 64], sizes = [2, 64], strides = [1, 1]} : vector<2x192xf32> to vector<2x64xf32>
    %270 = vector.extract_strided_slice %267 {offsets = [0, 128], sizes = [2, 64], strides = [1, 1]} : vector<2x192xf32> to vector<2x64xf32>
    %271 = vector.extract_strided_slice %262 {offsets = [0, 192], sizes = [2, 64], strides = [1, 1]} : vector<2x256xf32> to vector<2x64xf32>
    %272 = arith.mulf %269, %230 : vector<2x64xf32>
    %273 = arith.mulf %268, %271 : vector<2x64xf32>
    %274 = arith.addf %272, %273 : vector<2x64xf32>
    %275 = math.tanh %274 : vector<2x64xf32>
    %276 = arith.mulf %270, %275 : vector<2x64xf32>
    %c6_i32 = arith.constant 6 : i32
    %c0_110 = arith.constant 0 : index
    %c0_111 = arith.constant 0 : index
    %277 = vector.load %arg5[%c0_110, %c0_111] : memref<64x256xf32, #tpu.memory_space<vmem>>, vector<64x256xf32>
    %cst_112 = arith.constant dense<0.000000e+00> : vector<2x256xf32>
    %278 = tpu.matmul %276, %277, %cst_112 {dimension_numbers = #tpu.dot_dimension_numbers<[1], [0], [0], [1], [0, 0, 1, 1], [], []>} : vector<2x64xf32>, vector<64x256xf32>, vector<2x256xf32> -> vector<2x256xf32>
    %c0_113 = arith.constant 0 : index
    %c0_114 = arith.constant 0 : index
    %279 = vector.load %arg6[%c0_113, %c0_114] : memref<1x256xf32, #tpu.memory_space<vmem>>, vector<1x256xf32>
    %280 = vector.broadcast %279 : vector<1x256xf32> to vector<2x256xf32>
    %281 = arith.addf %278, %280 : vector<2x256xf32>
    %282 = arith.index_cast %c6_i32 : i32 to index
    %c0_115 = arith.constant 0 : index
    %c0_116 = arith.constant 0 : index
    %283 = vector.load %arg14[%282, %c0_115, %c0_116] : memref<8x2x256xf32, #tpu.memory_space<vmem>>, vector<1x2x256xf32>
    %284 = vector.shape_cast %283 : vector<1x2x256xf32> to vector<2x256xf32>
    %c0_117 = arith.constant 0 : index
    %c0_118 = arith.constant 0 : index
    %285 = vector.load %arg2[%c0_117, %c0_118] : memref<64x256xf32, #tpu.memory_space<vmem>>, vector<64x256xf32>
    %cst_119 = arith.constant dense<0.000000e+00> : vector<2x256xf32>
    %286 = tpu.matmul %258, %285, %cst_119 {dimension_numbers = #tpu.dot_dimension_numbers<[1], [0], [0], [1], [0, 0, 1, 1], [], []>} : vector<2x64xf32>, vector<64x256xf32>, vector<2x256xf32> -> vector<2x256xf32>
    %287 = arith.addf %284, %286 : vector<2x256xf32>
    %288 = math.tanh %287 : vector<2x256xf32>
    %289 = vector.extract_strided_slice %288 {offsets = [0, 0], sizes = [2, 192], strides = [1, 1]} : vector<2x256xf32> to vector<2x192xf32>
    %cst_120 = arith.constant 5.000000e-01 : f32
    %290 = vector.broadcast %cst_120 : f32 to vector<2x192xf32>
    %291 = arith.mulf %290, %289 : vector<2x192xf32>
    %cst_121 = arith.constant 5.000000e-01 : f32
    %292 = vector.broadcast %cst_121 : f32 to vector<2x192xf32>
    %293 = arith.addf %291, %292 : vector<2x192xf32>
    %294 = vector.extract_strided_slice %293 {offsets = [0, 0], sizes = [2, 64], strides = [1, 1]} : vector<2x192xf32> to vector<2x64xf32>
    %295 = vector.extract_strided_slice %293 {offsets = [0, 64], sizes = [2, 64], strides = [1, 1]} : vector<2x192xf32> to vector<2x64xf32>
    %296 = vector.extract_strided_slice %293 {offsets = [0, 128], sizes = [2, 64], strides = [1, 1]} : vector<2x192xf32> to vector<2x64xf32>
    %297 = vector.extract_strided_slice %288 {offsets = [0, 192], sizes = [2, 64], strides = [1, 1]} : vector<2x256xf32> to vector<2x64xf32>
    %298 = arith.mulf %295, %256 : vector<2x64xf32>
    %299 = arith.mulf %294, %297 : vector<2x64xf32>
    %300 = arith.addf %298, %299 : vector<2x64xf32>
    %301 = math.tanh %300 : vector<2x64xf32>
    %302 = arith.mulf %296, %301 : vector<2x64xf32>
    %c0_122 = arith.constant 0 : index
    %c0_123 = arith.constant 0 : index
    %303 = vector.load %arg4[%c0_122, %c0_123] : memref<64x256xf32, #tpu.memory_space<vmem>>, vector<64x256xf32>
    %cst_124 = arith.constant dense<0.000000e+00> : vector<2x256xf32>
    %304 = tpu.matmul %302, %303, %cst_124 {dimension_numbers = #tpu.dot_dimension_numbers<[1], [0], [0], [1], [0, 0, 1, 1], [], []>} : vector<2x64xf32>, vector<64x256xf32>, vector<2x256xf32> -> vector<2x256xf32>
    %305 = arith.addf %281, %304 : vector<2x256xf32>
    %306 = math.tanh %305 : vector<2x256xf32>
    %307 = vector.extract_strided_slice %306 {offsets = [0, 0], sizes = [2, 192], strides = [1, 1]} : vector<2x256xf32> to vector<2x192xf32>
    %cst_125 = arith.constant 5.000000e-01 : f32
    %308 = vector.broadcast %cst_125 : f32 to vector<2x192xf32>
    %309 = arith.mulf %308, %307 : vector<2x192xf32>
    %cst_126 = arith.constant 5.000000e-01 : f32
    %310 = vector.broadcast %cst_126 : f32 to vector<2x192xf32>
    %311 = arith.addf %309, %310 : vector<2x192xf32>
    %312 = vector.extract_strided_slice %311 {offsets = [0, 0], sizes = [2, 64], strides = [1, 1]} : vector<2x192xf32> to vector<2x64xf32>
    %313 = vector.extract_strided_slice %311 {offsets = [0, 64], sizes = [2, 64], strides = [1, 1]} : vector<2x192xf32> to vector<2x64xf32>
    %314 = vector.extract_strided_slice %311 {offsets = [0, 128], sizes = [2, 64], strides = [1, 1]} : vector<2x192xf32> to vector<2x64xf32>
    %315 = vector.extract_strided_slice %306 {offsets = [0, 192], sizes = [2, 64], strides = [1, 1]} : vector<2x256xf32> to vector<2x64xf32>
    %316 = arith.mulf %313, %274 : vector<2x64xf32>
    %317 = arith.mulf %312, %315 : vector<2x64xf32>
    %318 = arith.addf %316, %317 : vector<2x64xf32>
    %319 = math.tanh %318 : vector<2x64xf32>
    %320 = arith.mulf %314, %319 : vector<2x64xf32>
    %c7_i32 = arith.constant 7 : i32
    %c0_127 = arith.constant 0 : index
    %c0_128 = arith.constant 0 : index
    %321 = vector.load %arg5[%c0_127, %c0_128] : memref<64x256xf32, #tpu.memory_space<vmem>>, vector<64x256xf32>
    %cst_129 = arith.constant dense<0.000000e+00> : vector<2x256xf32>
    %322 = tpu.matmul %320, %321, %cst_129 {dimension_numbers = #tpu.dot_dimension_numbers<[1], [0], [0], [1], [0, 0, 1, 1], [], []>} : vector<2x64xf32>, vector<64x256xf32>, vector<2x256xf32> -> vector<2x256xf32>
    %c0_130 = arith.constant 0 : index
    %c0_131 = arith.constant 0 : index
    %323 = vector.load %arg6[%c0_130, %c0_131] : memref<1x256xf32, #tpu.memory_space<vmem>>, vector<1x256xf32>
    %324 = vector.broadcast %323 : vector<1x256xf32> to vector<2x256xf32>
    %325 = arith.addf %322, %324 : vector<2x256xf32>
    %326 = arith.index_cast %c7_i32 : i32 to index
    %c0_132 = arith.constant 0 : index
    %c0_133 = arith.constant 0 : index
    %327 = vector.load %arg14[%326, %c0_132, %c0_133] : memref<8x2x256xf32, #tpu.memory_space<vmem>>, vector<1x2x256xf32>
    %328 = vector.shape_cast %327 : vector<1x2x256xf32> to vector<2x256xf32>
    %c0_134 = arith.constant 0 : index
    %c0_135 = arith.constant 0 : index
    %329 = vector.load %arg2[%c0_134, %c0_135] : memref<64x256xf32, #tpu.memory_space<vmem>>, vector<64x256xf32>
    %cst_136 = arith.constant dense<0.000000e+00> : vector<2x256xf32>
    %330 = tpu.matmul %302, %329, %cst_136 {dimension_numbers = #tpu.dot_dimension_numbers<[1], [0], [0], [1], [0, 0, 1, 1], [], []>} : vector<2x64xf32>, vector<64x256xf32>, vector<2x256xf32> -> vector<2x256xf32>
    %331 = arith.addf %328, %330 : vector<2x256xf32>
    %332 = math.tanh %331 : vector<2x256xf32>
    %333 = vector.extract_strided_slice %332 {offsets = [0, 0], sizes = [2, 192], strides = [1, 1]} : vector<2x256xf32> to vector<2x192xf32>
    %cst_137 = arith.constant 5.000000e-01 : f32
    %334 = vector.broadcast %cst_137 : f32 to vector<2x192xf32>
    %335 = arith.mulf %334, %333 : vector<2x192xf32>
    %cst_138 = arith.constant 5.000000e-01 : f32
    %336 = vector.broadcast %cst_138 : f32 to vector<2x192xf32>
    %337 = arith.addf %335, %336 : vector<2x192xf32>
    %338 = vector.extract_strided_slice %337 {offsets = [0, 0], sizes = [2, 64], strides = [1, 1]} : vector<2x192xf32> to vector<2x64xf32>
    %339 = vector.extract_strided_slice %337 {offsets = [0, 64], sizes = [2, 64], strides = [1, 1]} : vector<2x192xf32> to vector<2x64xf32>
    %340 = vector.extract_strided_slice %337 {offsets = [0, 128], sizes = [2, 64], strides = [1, 1]} : vector<2x192xf32> to vector<2x64xf32>
    %341 = vector.extract_strided_slice %332 {offsets = [0, 192], sizes = [2, 64], strides = [1, 1]} : vector<2x256xf32> to vector<2x64xf32>
    %342 = arith.mulf %339, %300 : vector<2x64xf32>
    %343 = arith.mulf %338, %341 : vector<2x64xf32>
    %344 = arith.addf %342, %343 : vector<2x64xf32>
    %345 = math.tanh %344 : vector<2x64xf32>
    %346 = arith.mulf %340, %345 : vector<2x64xf32>
    %c0_139 = arith.constant 0 : index
    %c0_140 = arith.constant 0 : index
    %347 = vector.load %arg4[%c0_139, %c0_140] : memref<64x256xf32, #tpu.memory_space<vmem>>, vector<64x256xf32>
    %cst_141 = arith.constant dense<0.000000e+00> : vector<2x256xf32>
    %348 = tpu.matmul %346, %347, %cst_141 {dimension_numbers = #tpu.dot_dimension_numbers<[1], [0], [0], [1], [0, 0, 1, 1], [], []>} : vector<2x64xf32>, vector<64x256xf32>, vector<2x256xf32> -> vector<2x256xf32>
    %349 = arith.addf %325, %348 : vector<2x256xf32>
    %350 = math.tanh %349 : vector<2x256xf32>
    %351 = vector.extract_strided_slice %350 {offsets = [0, 0], sizes = [2, 192], strides = [1, 1]} : vector<2x256xf32> to vector<2x192xf32>
    %cst_142 = arith.constant 5.000000e-01 : f32
    %352 = vector.broadcast %cst_142 : f32 to vector<2x192xf32>
    %353 = arith.mulf %352, %351 : vector<2x192xf32>
    %cst_143 = arith.constant 5.000000e-01 : f32
    %354 = vector.broadcast %cst_143 : f32 to vector<2x192xf32>
    %355 = arith.addf %353, %354 : vector<2x192xf32>
    %356 = vector.extract_strided_slice %355 {offsets = [0, 0], sizes = [2, 64], strides = [1, 1]} : vector<2x192xf32> to vector<2x64xf32>
    %357 = vector.extract_strided_slice %355 {offsets = [0, 64], sizes = [2, 64], strides = [1, 1]} : vector<2x192xf32> to vector<2x64xf32>
    %358 = vector.extract_strided_slice %355 {offsets = [0, 128], sizes = [2, 64], strides = [1, 1]} : vector<2x192xf32> to vector<2x64xf32>
    %359 = vector.extract_strided_slice %350 {offsets = [0, 192], sizes = [2, 64], strides = [1, 1]} : vector<2x256xf32> to vector<2x64xf32>
    %360 = arith.mulf %357, %318 : vector<2x64xf32>
    %361 = arith.mulf %356, %359 : vector<2x64xf32>
    %362 = arith.addf %360, %361 : vector<2x64xf32>
    %363 = math.tanh %362 : vector<2x64xf32>
    %364 = arith.mulf %358, %363 : vector<2x64xf32>
    %c8_i32 = arith.constant 8 : i32
    %c0_144 = arith.constant 0 : index
    %c0_145 = arith.constant 0 : index
    %365 = vector.load %arg7[%c0_144, %c0_145] : memref<64x64xf32, #tpu.memory_space<vmem>>, vector<64x64xf32>
    %cst_146 = arith.constant dense<0.000000e+00> : vector<2x64xf32>
    %366 = tpu.matmul %364, %365, %cst_146 {dimension_numbers = #tpu.dot_dimension_numbers<[1], [0], [0], [1], [0, 0, 1, 1], [], []>} : vector<2x64xf32>, vector<64x64xf32>, vector<2x64xf32> -> vector<2x64xf32>
    %c0_147 = arith.constant 0 : index
    %c0_148 = arith.constant 0 : index
    %367 = vector.load %arg8[%c0_147, %c0_148] : memref<1x64xf32, #tpu.memory_space<vmem>>, vector<1x64xf32>
    %368 = vector.broadcast %367 : vector<1x64xf32> to vector<2x64xf32>
    %369 = arith.addf %366, %368 : vector<2x64xf32>
    %c0_149 = arith.constant 0 : index
    %c0_150 = arith.constant 0 : index
    %370 = vector.load %arg9[%c0_149, %c0_150] : memref<64x10xf32, #tpu.memory_space<vmem>>, vector<64x10xf32>
    %cst_151 = arith.constant dense<0.000000e+00> : vector<2x10xf32>
    %371 = tpu.matmul %369, %370, %cst_151 {dimension_numbers = #tpu.dot_dimension_numbers<[1], [0], [0], [1], [0, 0, 1, 1], [], []>} : vector<2x64xf32>, vector<64x10xf32>, vector<2x10xf32> -> vector<2x10xf32>
    %c0_152 = arith.constant 0 : index
    %c0_153 = arith.constant 0 : index
    %372 = vector.load %arg10[%c0_152, %c0_153] : memref<1x10xf32, #tpu.memory_space<vmem>>, vector<1x10xf32>
    %373 = vector.broadcast %372 : vector<1x10xf32> to vector<2x10xf32>
    %374 = arith.addf %371, %373 : vector<2x10xf32>
    %cst_154 = arith.constant 0.000000e+00 : f32
    %375 = vector.broadcast %cst_154 : f32 to vector<2x10xf32>
    %376 = arith.maximumf %374, %375 : vector<2x10xf32>
    %c0_155 = arith.constant 0 : index
    %c0_156 = arith.constant 0 : index
    %377 = vector.load %arg11[%c0_155, %c0_156] : memref<1x10xf32, #tpu.memory_space<vmem>>, vector<1x10xf32>
    %378 = vector.broadcast %377 : vector<1x10xf32> to vector<2x10xf32>
    %379 = arith.mulf %376, %378 : vector<2x10xf32>
    %cst_157 = arith.constant dense<0.000000e+00> : vector<2xf32>
    %380 = vector.multi_reduction <add>, %379, %cst_157 [1] : vector<2x10xf32> to vector<2xf32>
    %381 = vector.shape_cast %380 : vector<2xf32> to vector<2x1xf32>
    %c0_158 = arith.constant 0 : index
    %c0_159 = arith.constant 0 : index
    %382 = vector.load %arg12[%c0_158, %c0_159] : memref<1x1xf32, #tpu.memory_space<vmem>>, vector<1x1xf32>
    %383 = vector.broadcast %382 : vector<1x1xf32> to vector<2x1xf32>
    %384 = arith.addf %381, %383 : vector<2x1xf32>
    %c0_160 = arith.constant 0 : index
    %c0_161 = arith.constant 0 : index
    %385 = vector.load %arg13[%c0_160, %c0_161] : memref<2x1xf32, #tpu.memory_space<vmem>>, vector<2x1xf32>
    tpu.vector_store %arg13[%c0_160, %c0_161], %384 {strides = array<i32>} : memref<2x1xf32, #tpu.memory_space<vmem>>, vector<2x1xf32>,
    return
  }
}

</mosaic_0001>

<llo_original>
// kernel: lstm_forward.1
$region0: #{lstm_forward.1}
  #allocation0 [shape = 'u32[]', space=smem, size = 0x4, offset = 0x4, fixed_abs, tag = 'smem constant byte address 0x4 - core index']
  #allocation1 [shape = 'u32[144,128]{1,0:T(1,128)}', space=vmem, size = 0x12000, scoped, tag = 'internal scratch']
  #allocation2 [shape = 'f32[8,2,256]{2,1,0:T(2,128)}', space=vmem, size = 0x4000, scoped, tag = 'scratch operand']
  #allocation3 [shape = 'f32[1,1]{1,0:T(1,128)S(1)}', space=vmem, size = 0x200, scoped, tag = 'scoped memory for lstm_forward.1']
  %s0 = inlined_call_operand.vmem [shape: f32[8,2], index: 0, kind: input, shape index: {}]
  %s1 = inlined_call_operand.vmem [shape: f32[1,256], index: 1, kind: input, shape index: {}]
  %s2 = inlined_call_operand.hbm [shape: f32[64,256], index: 2, kind: input, shape index: {}]
  %s3 = inlined_call_operand.vmem [shape: f32[1,256], index: 3, kind: input, shape index: {}]
  %s4 = inlined_call_operand.hbm [shape: f32[64,256], index: 4, kind: input, shape index: {}]
  %s5 = inlined_call_operand.hbm [shape: f32[64,256], index: 5, kind: input, shape index: {}]
  %s6 = inlined_call_operand.vmem [shape: f32[1,256], index: 6, kind: input, shape index: {}]
  %s7 = inlined_call_operand.vmem [shape: f32[64,64], index: 7, kind: input, shape index: {}]
  %s8 = inlined_call_operand.vmem [shape: f32[1,64], index: 8, kind: input, shape index: {}]
  %s9 = inlined_call_operand.vmem [shape: f32[64,10], index: 9, kind: input, shape index: {}]
  %s10 = inlined_call_operand.vmem [shape: f32[1,10], index: 10, kind: input, shape index: {}]
  %s11 = inlined_call_operand.vmem [shape: f32[1,10], index: 11, kind: input, shape index: {}]
  %s12 = inlined_call_operand.<no memory space> [shape: f32[1,1], index: 12, kind: input, shape index: {}]
  %s13 = inlined_call_operand.vmem [shape: f32[2,1], index: 13, kind: output, shape index: {}]
  %s14 = sld [smem:[#allocation0]]
  $region74: #{lstm_forward.1} parent=0
    _
  %s16 = ssub.s32 1, %s14
  %s17 = scalar_select 0, %s16, %s14
  %v18 = vstv %s12
  %19 = vst [vmem:[#allocation3] sm:$0x1] %v18
  $region1: #{lstm_forward.1} parent=0
    #allocation4 [shape = 'u8[65536]{0}', space=vmem, size = 0x10000, scoped, tag = 'input window, operand 2, single buffered']
    #allocation5 [shape = 's32[1]{0}', space=sflag, size = 0x4, scoped, tag = 'scoped memory for lstm_forward.1']
    #allocation6 [shape = 'u8[65536]{0}', space=vmem, size = 0x10000, scoped, tag = 'input window, operand 4, single buffered']
    #allocation7 [shape = 's32[1]{0}', space=sflag, size = 0x4, scoped, tag = 'scoped memory for lstm_forward.1']
    #allocation8 [shape = 'u8[65536]{0}', space=vmem, size = 0x10000, scoped, tag = 'input window, operand 5, single buffered']
    %20 = vsyncpa [#allocation5], 0
    %21 = vsyncpa [#allocation7], 0
    // Predicated region
    $region2: #{lstm_forward.1} parent=1 // pred_check
      _
    $region3: #{lstm_forward.1} parent=1 // pred_check_branch
      %23 = sbr.rel (0) target = $region5
    $region4: #{lstm_forward.1} parent=1 // pred_region
      _
    $region5: #{lstm_forward.1} parent=1 // pred_fallthru
      _
    // Predicated region
    $region6: #{lstm_forward.1} parent=1 // pred_check
      _
    $region7: #{lstm_forward.1} parent=1 // pred_check_branch
      %25 = sbr.rel (0) target = $region9
    $region8: #{lstm_forward.1} parent=1 // pred_region
      _
    $region9: #{lstm_forward.1} parent=1 // pred_fallthru
      _
    // Predicated region
    $region10: #{lstm_forward.1} parent=1 // pred_check
      _
    $region11: #{lstm_forward.1} parent=1 // pred_check_branch
      %27 = sbr.rel (0) target = $region13
    $region12: #{lstm_forward.1} parent=1 // pred_region
      %s29 = ssub.s32 2048, 2048
      %30 = vsyncadd [#allocation5], %s29
      %s31 = sshll.u32 [#allocation4], 4
      %s32 = int_to_ptr.vmem [resolvable:$true] %s31
      %37 = dma.hbm_to_vmem [thread:$0]  %s2, 2048, %s32, [#allocation5], 256, 256, 16
    $region13: #{lstm_forward.1} parent=1 // pred_fallthru
      _
    // Predicated region
    $region14: #{lstm_forward.1} parent=1 // pred_check
      _
    $region15: #{lstm_forward.1} parent=1 // pred_check_branch
      %39 = sbr.rel (0) target = $region17
    $region16: #{lstm_forward.1} parent=1 // pred_region
      _
    $region17: #{lstm_forward.1} parent=1 // pred_fallthru
      _
    // Predicated region
    $region18: #{lstm_forward.1} parent=1 // pred_check
      _
    $region19: #{lstm_forward.1} parent=1 // pred_check_branch
      %41 = sbr.rel (0) target = $region21
    $region20: #{lstm_forward.1} parent=1 // pred_region
      %s43 = ssub.s32 2048, 2048
      %44 = vsyncadd [#allocation7], %s43
      %s45 = sshll.u32 [#allocation6], 4
      %s46 = int_to_ptr.vmem [resolvable:$true] %s45
      %51 = dma.hbm_to_vmem [thread:$0]  %s4, 2048, %s46, [#allocation7], 256, 256, 16
    $region21: #{lstm_forward.1} parent=1 // pred_fallthru
      _
    // Predicated region
    $region22: #{lstm_forward.1} parent=1 // pred_check
      _
    $region23: #{lstm_forward.1} parent=1 // pred_check_branch
      %53 = sbr.rel (0) target = $region25
    $region24: #{lstm_forward.1} parent=1 // pred_region
      %s55 = ssub.s32 2048, 2048
      %56 = vsyncadd [#allocation7], %s55
      %s57 = sshll.u32 [#allocation8], 4
      %s58 = int_to_ptr.vmem [resolvable:$true] %s57
      %63 = dma.hbm_to_vmem [thread:$0]  %s5, 2048, %s58, [#allocation7], 256, 256, 16
    $region25: #{lstm_forward.1} parent=1 // pred_fallthru
      _
    // Predicated region
    $region26: #{lstm_forward.1} parent=1 // pred_check
      _
    $region27: #{lstm_forward.1} parent=1 // pred_check_branch
      %65 = sbr.rel (0) target = $region29
    $region28: #{lstm_forward.1} parent=1 // pred_region
      _
    $region29: #{lstm_forward.1} parent=1 // pred_fallthru
      _
    // Predicated region
    $region30: #{lstm_forward.1} parent=1 // pred_check
      _
    $region31: #{lstm_forward.1} parent=1 // pred_check_branch
      %67 = sbr.rel (0) target = $region33
    $region32: #{lstm_forward.1} parent=1 // pred_region
      _
    $region33: #{lstm_forward.1} parent=1 // pred_fallthru
      _
    // Predicated region
    $region34: #{lstm_forward.1} parent=1 // pred_check
      _
    $region35: #{lstm_forward.1} parent=1 // pred_check_branch
      %69 = sbr.rel (0) target = $region37
    $region36: #{lstm_forward.1} parent=1 // pred_region
      _
    $region37: #{lstm_forward.1} parent=1 // pred_fallthru
      _
    // Predicated region
    $region38: #{lstm_forward.1} parent=1 // pred_check
      _
    $region39: #{lstm_forward.1} parent=1 // pred_check_branch
      %71 = sbr.rel (0) target = $region41
    $region40: #{lstm_forward.1} parent=1 // pred_region
      _
    $region41: #{lstm_forward.1} parent=1 // pred_fallthru
      _
    // Predicated region
    $region42: #{lstm_forward.1} parent=1 // pred_check
      _
    $region43: #{lstm_forward.1} parent=1 // pred_check_branch
      %73 = sbr.rel (0) target = $region45
    $region44: #{lstm_forward.1} parent=1 // pred_region
      _
    $region45: #{lstm_forward.1} parent=1 // pred_fallthru
      _
    // Predicated region
    $region46: #{lstm_forward.1} parent=1 // pred_check
      _
    $region47: #{lstm_forward.1} parent=1 // pred_check_branch
      %75 = sbr.rel (0) target = $region49
    $region48: #{lstm_forward.1} parent=1 // pred_region
      _
    $region49: #{lstm_forward.1} parent=1 // pred_fallthru
      _
    // Predicated region
    $region50: #{lstm_forward.1} parent=1 // pred_check
      _
    $region51: #{lstm_forward.1} parent=1 // pred_check_branch
      %77 = sbr.rel (0) target = $region53
    $region52: #{lstm_forward.1} parent=1 // pred_region
      _
    $region53: #{lstm_forward.1} parent=1 // pred_fallthru
      _
    // Predicated region
    $region54: #{lstm_forward.1} parent=1 // pred_check
      _
    $region55: #{lstm_forward.1} parent=1 // pred_check_branch
      %79 = sbr.rel (0) target = $region57
    $region56: #{lstm_forward.1} parent=1 // pred_region
      %80 = dma.done [#allocation5], 2048
    $region57: #{lstm_forward.1} parent=1 // pred_fallthru
      _
    // Predicated region
    $region58: #{lstm_forward.1} parent=1 // pred_check
      _
    $region59: #{lstm_forward.1} parent=1 // pred_check_branch
      %82 = sbr.rel (0) target = $region61
    $region60: #{lstm_forward.1} parent=1 // pred_region
      %83 = dma.done [#allocation7], 2048
    $region61: #{lstm_forward.1} parent=1 // pred_fallthru
      _
    // Predicated region
    $region62: #{lstm_forward.1} parent=1 // pred_check
      _
    $region63: #{lstm_forward.1} parent=1 // pred_check_branch
      %85 = sbr.rel (0) target = $region65
    $region64: #{lstm_forward.1} parent=1 // pred_region
      %86 = dma.done [#allocation7], 2048
    $region65: #{lstm_forward.1} parent=1 // pred_fallthru
      _
    %v87 = vld [vmem:[%s0] sm:$0xff]
    %v88 = vlaneseq
    %v89 = vshrl.u32 %v88, 7
    %v90 = vsub.s32 0, %v89
    %v91 = vrot.slane %v87, %v90
    %93 = vbcast.lane.b32.xlu0 %v91, 256
    %v94 = vpop.permute.xlu0 %93
    %v95 = vlaneseq
    %v96 = vshrl.u32 %v95, 7
    %v97 = vsub.s32 1, %v96
    %v98 = vrot.slane %v87, %v97
    %100 = vbcast.lane.b32.xlu0 %v98, 256
    %v101 = vpop.permute.xlu0 %100
    %v102 = vlaneseq
    %v103 = vshrl.u32 %v102, 7
    %v104 = vsub.s32 2, %v103
    %v105 = vrot.slane %v87, %v104
    %107 = vbcast.lane.b32.xlu0 %v105, 256
    %v108 = vpop.permute.xlu0 %107
    %v109 = vlaneseq
    %v110 = vshrl.u32 %v109, 7
    %v111 = vsub.s32 3, %v110
    %v112 = vrot.slane %v87, %v111
    %114 = vbcast.lane.b32.xlu0 %v112, 256
    %v115 = vpop.permute.xlu0 %114
    %v116 = vlaneseq
    %v117 = vshrl.u32 %v116, 7
    %v118 = vsub.s32 4, %v117
    %v119 = vrot.slane %v87, %v118
    %121 = vbcast.lane.b32.xlu0 %v119, 256
    %v122 = vpop.permute.xlu0 %121
    %v123 = vlaneseq
    %v124 = vshrl.u32 %v123, 7
    %v125 = vsub.s32 5, %v124
    %v126 = vrot.slane %v87, %v125
    %128 = vbcast.lane.b32.xlu0 %v126, 256
    %v129 = vpop.permute.xlu0 %128
    %v130 = vlaneseq
    %v131 = vshrl.u32 %v130, 7
    %v132 = vsub.s32 6, %v131
    %v133 = vrot.slane %v87, %v132
    %135 = vbcast.lane.b32.xlu0 %v133, 256
    %v136 = vpop.permute.xlu0 %135
    %v137 = vlaneseq
    %v138 = vshrl.u32 %v137, 7
    %v139 = vsub.s32 7, %v138
    %v140 = vrot.slane %v87, %v139
    %142 = vbcast.lane.b32.xlu0 %v140, 256
    %v143 = vpop.permute.xlu0 %142
    %v144 = vld [vmem:[%s1] sm:$0x3]
    %v146 = vlaneseq
    %v147 = vshrl.u32 %v146, 7
    %v148 = vsub.s32 0, %v147
    %v149 = vrot.slane %v144, %v148
    %v150 = vlaneseq
    %v151 = vshrl.u32 %v150, 7
    %v152 = vsub.s32 1, %v151
    %v153 = vrot.slane %v144, %v152
    %v156 = vmul.f32 %v94, %v149
    %v157 = vmul.f32 %v94, %v153
    %v158 = vmul.f32 %v101, %v149
    %v159 = vmul.f32 %v101, %v153
    %v160 = vmul.f32 %v108, %v149
    %v161 = vmul.f32 %v108, %v153
    %v162 = vmul.f32 %v115, %v149
    %v163 = vmul.f32 %v115, %v153
    %v164 = vmul.f32 %v122, %v149
    %v165 = vmul.f32 %v122, %v153
    %v166 = vmul.f32 %v129, %v149
    %v167 = vmul.f32 %v129, %v153
    %v168 = vmul.f32 %v136, %v149
    %v169 = vmul.f32 %v136, %v153
    %v170 = vmul.f32 %v143, %v149
    %v171 = vmul.f32 %v143, %v153
    %v172 = vld [vmem:[%s3] sm:$0x3]
    %v174 = vlaneseq
    %v175 = vshrl.u32 %v174, 7
    %v176 = vsub.s32 0, %v175
    %v177 = vrot.slane %v172, %v176
    %v178 = vlaneseq
    %v179 = vshrl.u32 %v178, 7
    %v180 = vsub.s32 1, %v179
    %v181 = vrot.slane %v172, %v180
    %v184 = vadd.f32 %v156, %v177
    %v185 = vadd.f32 %v157, %v181
    %v186 = vadd.f32 %v158, %v177
    %v187 = vadd.f32 %v159, %v181
    %v188 = vadd.f32 %v160, %v177
    %v189 = vadd.f32 %v161, %v181
    %v190 = vadd.f32 %v162, %v177
    %v191 = vadd.f32 %v163, %v181
    %v192 = vadd.f32 %v164, %v177
    %v193 = vadd.f32 %v165, %v181
    %v194 = vadd.f32 %v166, %v177
    %v195 = vadd.f32 %v167, %v181
    %v196 = vadd.f32 %v168, %v177
    %v197 = vadd.f32 %v169, %v181
    %v198 = vadd.f32 %v170, %v177
    %v199 = vadd.f32 %v171, %v181
    %v216 = vcombine.low %v184, %v185
    %v218 = vunpack.c.l.s4 1983009808
    %v219 = vunpack.c.0.s8 %v218
    %v220 = vlaneseq
    %v221 = vshrl.u32 %v220, 7
    %v222 = vsub.s32 %v219, %v221
    %v223 = vrot.slane %v216, %v222
    %v224 = vcombine.low %v186, %v187
    %v226 = vunpack.c.l.s4 1983009808
    %v227 = vunpack.c.0.s8 %v226
    %v228 = vlaneseq
    %v229 = vshrl.u32 %v228, 7
    %v230 = vsub.s32 %v227, %v229
    %v231 = vrot.slane %v224, %v230
    %v232 = vcombine.low %v188, %v189
    %v234 = vunpack.c.l.s4 1983009808
    %v235 = vunpack.c.0.s8 %v234
    %v236 = vlaneseq
    %v237 = vshrl.u32 %v236, 7
    %v238 = vsub.s32 %v235, %v237
    %v239 = vrot.slane %v232, %v238
    %v240 = vcombine.low %v190, %v191
    %v242 = vunpack.c.l.s4 1983009808
    %v243 = vunpack.c.0.s8 %v242
    %v244 = vlaneseq
    %v245 = vshrl.u32 %v244, 7
    %v246 = vsub.s32 %v243, %v245
    %v247 = vrot.slane %v240, %v246
    %v248 = vcombine.low %v192, %v193
    %v250 = vunpack.c.l.s4 1983009808
    %v251 = vunpack.c.0.s8 %v250
    %v252 = vlaneseq
    %v253 = vshrl.u32 %v252, 7
    %v254 = vsub.s32 %v251, %v253
    %v255 = vrot.slane %v248, %v254
    %v256 = vcombine.low %v194, %v195
    %v258 = vunpack.c.l.s4 1983009808
    %v259 = vunpack.c.0.s8 %v258
    %v260 = vlaneseq
    %v261 = vshrl.u32 %v260, 7
    %v262 = vsub.s32 %v259, %v261
    %v263 = vrot.slane %v256, %v262
    %v264 = vcombine.low %v196, %v197
    %v266 = vunpack.c.l.s4 1983009808
    %v267 = vunpack.c.0.s8 %v266
    %v268 = vlaneseq
    %v269 = vshrl.u32 %v268, 7
    %v270 = vsub.s32 %v267, %v269
    %v271 = vrot.slane %v264, %v270
    %v272 = vcombine.low %v198, %v199
    %v274 = vunpack.c.l.s4 1983009808
    %v275 = vunpack.c.0.s8 %v274
    %v276 = vlaneseq
    %v277 = vshrl.u32 %v276, 7
    %v278 = vsub.s32 %v275, %v277
    %v279 = vrot.slane %v272, %v278
    %288 = vst [vmem:[#allocation2] sm:$0xf] %v223
    %289 = vst [vmem:[#allocation2 + $0x4] sm:$0xf] %v231
    %290 = vst [vmem:[#allocation2 + $0x8] sm:$0xf] %v239
    %291 = vst [vmem:[#allocation2 + $0xc] sm:$0xf] %v247
    %292 = vst [vmem:[#allocation2 + $0x10] sm:$0xf] %v255
    %293 = vst [vmem:[#allocation2 + $0x14] sm:$0xf] %v263
    %294 = vst [vmem:[#allocation2 + $0x18] sm:$0xf] %v271
    %295 = vst [vmem:[#allocation2 + $0x1c] sm:$0xf] %v279
    %v296 = vld [vmem:[#allocation8] sm:$0xff]
    %v297 = vld [vmem:[#allocation8 + $0x8] sm:$0xff]
    %v298 = vld [vmem:[#allocation8 + $0x10] sm:$0xff]
    %v299 = vld [vmem:[#allocation8 + $0x18] sm:$0xff]
    %v300 = vld [vmem:[#allocation8 + $0x20] sm:$0xff]
    %v301 = vld [vmem:[#allocation8 + $0x28] sm:$0xff]
    %v302 = vld [vmem:[#allocation8 + $0x30] sm:$0xff]
    %v303 = vld [vmem:[#allocation8 + $0x38] sm:$0xff]
    %v304 = vld [vmem:[#allocation8 + $0x40] sm:$0xff]
    %v305 = vld [vmem:[#allocation8 + $0x48] sm:$0xff]
    %v306 = vld [vmem:[#allocation8 + $0x50] sm:$0xff]
    %v307 = vld [vmem:[#allocation8 + $0x58] sm:$0xff]
    %v308 = vld [vmem:[#allocation8 + $0x60] sm:$0xff]
    %v309 = vld [vmem:[#allocation8 + $0x68] sm:$0xff]
    %v310 = vld [vmem:[#allocation8 + $0x70] sm:$0xff]
    %v311 = vld [vmem:[#allocation8 + $0x78] sm:$0xff]
    %v312 = vld [vmem:[%s6] sm:$0x3]
    %v314 = vlaneseq
    %v315 = vshrl.u32 %v314, 7
    %v316 = vsub.s32 0, %v315
    %v317 = vrot.slane %v312, %v316
    %v318 = vlaneseq
    %v319 = vshrl.u32 %v318, 7
    %v320 = vsub.s32 1, %v319
    %v321 = vrot.slane %v312, %v320
    %vm324 = vcmask 523264
    %v326 = vsel %vm324, 0.0, 0
    %328 = vmatprep.subr.mxu0 0.0
    %329 = vmatpush1.msra.mxu0 0.0
    %330 = vmatprep.subr.mxu0 0.0
    %331 = vmatpush1.msra.mxu0 0.0
    %332 = vmatprep.subr.mxu0 0.0
    %333 = vmatpush1.msra.mxu0 0.0
    %334 = vmatprep.subr.mxu0 0.0
    %335 = vmatpush1.msra.mxu0 0.0
    %336 = vmatprep.subr.mxu0 0.0
    %337 = vmatpush1.msra.mxu0 0.0
    %338 = vmatprep.subr.mxu0 0.0
    %339 = vmatpush1.msra.mxu0 0.0
    %340 = vmatprep.subr.mxu0 0.0
    %341 = vmatpush1.msra.mxu0 0.0
    %342 = vmatprep.subr.mxu0 0.0
    %343 = vmatpush1.msra.mxu0 0.0
    %344 = vmatprep.subr.mxu0 %v311
    %345 = vmatpush1.msra.mxu0 %v310
    %346 = vmatprep.subr.mxu0 %v309
    %347 = vmatpush1.msra.mxu0 %v308
    %348 = vmatprep.subr.mxu0 %v307
    %349 = vmatpush1.msra.mxu0 %v306
    %350 = vmatprep.subr.mxu0 %v305
    %351 = vmatpush1.msra.mxu0 %v304
    %352 = vmatprep.subr.mxu0 %v303
    %353 = vmatpush1.msra.mxu0 %v302
    %354 = vmatprep.subr.mxu0 %v301
    %355 = vmatpush1.msra.mxu0 %v300
    %356 = vmatprep.subr.mxu0 %v299
    %357 = vmatpush1.msra.mxu0 %v298
    %358 = vmatprep.subr.mxu0 %v297
    %359 = vmatpush1.msra.mxu0 %v296
    %360 = vmatprep.subr.mxu0 0.0
    %361 = vmatpush2.msra.mxu0 0.0
    %362 = vmatprep.subr.mxu0 0.0
    %363 = vmatpush2.msra.mxu0 0.0
    %364 = vmatprep.subr.mxu0 0.0
    %365 = vmatpush2.msra.mxu0 0.0
    %366 = vmatprep.subr.mxu0 0.0
    %367 = vmatpush2.msra.mxu0 0.0
    %368 = vmatprep.subr.mxu0 0.0
    %369 = vmatpush2.msra.mxu0 0.0
    %370 = vmatprep.subr.mxu0 0.0
    %371 = vmatpush2.msra.mxu0 0.0
    %372 = vmatprep.subr.mxu0 0.0
    %373 = vmatpush2.msra.mxu0 0.0
    %374 = vmatprep.subr.mxu0 0.0
    %375 = vmatpush2.msra.mxu0 0.0
    %376 = vmatprep.subr.mxu0 0.0
    %377 = vmatpush2.msra.mxu0 0.0
    %378 = vmatprep.subr.mxu0 0.0
    %379 = vmatpush2.msra.mxu0 0.0
    %380 = vmatprep.subr.mxu0 0.0
    %381 = vmatpush2.msra.mxu0 0.0
    %382 = vmatprep.subr.mxu0 0.0
    %383 = vmatpush2.msra.mxu0 0.0
    %384 = vmatprep.subr.mxu0 0.0
    %385 = vmatpush2.msra.mxu0 0.0
    %386 = vmatprep.subr.mxu0 0.0
    %387 = vmatpush2.msra.mxu0 0.0
    %388 = vmatprep.subr.mxu0 0.0
    %389 = vmatpush2.msra.mxu0 0.0
    %390 = vmatprep.subr.mxu0 0.0
    %391 = vmatpush2.msra.mxu0 0.0
    %392 = vmatprep.mubr.f32.mxu0 0.0
    %393 = vmatmul.mubr.f32.gmra.mxu0 %v326
    %v394 = vpop.f32.mrf.mxu0
    %v395 = vadd.f32 %v317, %v394
    %v396 = vpop.f32.mrf.mxu0
    %v397 = vadd.f32 %v321, %v396
    %398 = vdwg.mxu0
    %v399 = vld [vmem:[#allocation2] sm:$0xf]
    %v400 = vld [vmem:[#allocation4] sm:$0xff]
    %v401 = vld [vmem:[#allocation4 + $0x8] sm:$0xff]
    %v402 = vld [vmem:[#allocation4 + $0x10] sm:$0xff]
    %v403 = vld [vmem:[#allocation4 + $0x18] sm:$0xff]
    %v404 = vld [vmem:[#allocation4 + $0x20] sm:$0xff]
    %v405 = vld [vmem:[#allocation4 + $0x28] sm:$0xff]
    %v406 = vld [vmem:[#allocation4 + $0x30] sm:$0xff]
    %v407 = vld [vmem:[#allocation4 + $0x38] sm:$0xff]
    %v408 = vld [vmem:[#allocation4 + $0x40] sm:$0xff]
    %v409 = vld [vmem:[#allocation4 + $0x48] sm:$0xff]
    %v410 = vld [vmem:[#allocation4 + $0x50] sm:$0xff]
    %v411 = vld [vmem:[#allocation4 + $0x58] sm:$0xff]
    %v412 = vld [vmem:[#allocation4 + $0x60] sm:$0xff]
    %v413 = vld [vmem:[#allocation4 + $0x68] sm:$0xff]
    %v414 = vld [vmem:[#allocation4 + $0x70] sm:$0xff]
    %v415 = vld [vmem:[#allocation4 + $0x78] sm:$0xff]
    %416 = vmatprep.subr.mxu0 0.0
    %417 = vmatpush1.msra.mxu0 0.0
    %418 = vmatprep.subr.mxu0 0.0
    %419 = vmatpush1.msra.mxu0 0.0
    %420 = vmatprep.subr.mxu0 0.0
    %421 = vmatpush1.msra.mxu0 0.0
    %422 = vmatprep.subr.mxu0 0.0
    %423 = vmatpush1.msra.mxu0 0.0
    %424 = vmatprep.subr.mxu0 0.0
    %425 = vmatpush1.msra.mxu0 0.0
    %426 = vmatprep.subr.mxu0 0.0
    %427 = vmatpush1.msra.mxu0 0.0
    %428 = vmatprep.subr.mxu0 0.0
    %429 = vmatpush1.msra.mxu0 0.0
    %430 = vmatprep.subr.mxu0 0.0
    %431 = vmatpush1.msra.mxu0 0.0
    %432 = vmatprep.subr.mxu0 %v415
    %433 = vmatpush1.msra.mxu0 %v414
    %434 = vmatprep.subr.mxu0 %v413
    %435 = vmatpush1.msra.mxu0 %v412
    %436 = vmatprep.subr.mxu0 %v411
    %437 = vmatpush1.msra.mxu0 %v410
    %438 = vmatprep.subr.mxu0 %v409
    %439 = vmatpush1.msra.mxu0 %v408
    %440 = vmatprep.subr.mxu0 %v407
    %441 = vmatpush1.msra.mxu0 %v406
    %442 = vmatprep.subr.mxu0 %v405
    %443 = vmatpush1.msra.mxu0 %v404
    %444 = vmatprep.subr.mxu0 %v403
    %445 = vmatpush1.msra.mxu0 %v402
    %446 = vmatprep.subr.mxu0 %v401
    %447 = vmatpush1.msra.mxu0 %v400
    %448 = vmatprep.subr.mxu0 0.0
    %449 = vmatpush2.msra.mxu0 0.0
    %450 = vmatprep.subr.mxu0 0.0
    %451 = vmatpush2.msra.mxu0 0.0
    %452 = vmatprep.subr.mxu0 0.0
    %453 = vmatpush2.msra.mxu0 0.0
    %454 = vmatprep.subr.mxu0 0.0
    %455 = vmatpush2.msra.mxu0 0.0
    %456 = vmatprep.subr.mxu0 0.0
    %457 = vmatpush2.msra.mxu0 0.0
    %458 = vmatprep.subr.mxu0 0.0
    %459 = vmatpush2.msra.mxu0 0.0
    %460 = vmatprep.subr.mxu0 0.0
    %461 = vmatpush2.msra.mxu0 0.0
    %462 = vmatprep.subr.mxu0 0.0
    %463 = vmatpush2.msra.mxu0 0.0
    %464 = vmatprep.subr.mxu0 0.0
    %465 = vmatpush2.msra.mxu0 0.0
    %466 = vmatprep.subr.mxu0 0.0
    %467 = vmatpush2.msra.mxu0 0.0
    %468 = vmatprep.subr.mxu0 0.0
    %469 = vmatpush2.msra.mxu0 0.0
    %470 = vmatprep.subr.mxu0 0.0
    %471 = vmatpush2.msra.mxu0 0.0
    %472 = vmatprep.subr.mxu0 0.0
    %473 = vmatpush2.msra.mxu0 0.0
    %474 = vmatprep.subr.mxu0 0.0
    %475 = vmatpush2.msra.mxu0 0.0
    %476 = vmatprep.subr.mxu0 0.0
    %477 = vmatpush2.msra.mxu0 0.0
    %478 = vmatprep.subr.mxu0 0.0
    %479 = vmatpush2.msra.mxu0 0.0
    %480 = vmatprep.mubr.f32.mxu0 0.0
    %481 = vmatmul.mubr.f32.gmra.mxu0 %v326
    %v482 = vpop.f32.mrf.mxu0
    %v483 = vadd.f32 0.0, %v482
    %v484 = vpop.f32.mrf.mxu0
    %v485 = vadd.f32 0.0, %v484
    %486 = vdwg.mxu0
    %v489 = vcombine.low %v483, %v485
    %v491 = vunpack.c.l.s4 1983009808
    %v492 = vunpack.c.0.s8 %v491
    %v493 = vlaneseq
    %v494 = vshrl.u32 %v493, 7
    %v495 = vsub.s32 %v492, %v494
    %v496 = vrot.slane %v489, %v495
    %v498 = vadd.f32 %v399, %v496
    %v499 = vtanh.pop %v498
    %v500 = vmul.f32 %v499, 0.5
    %v501 = vadd.f32 %v500, 0.5
    %v502 = vmul.f32 %v501, 0.0
    %504 = vrot.lane.b32.xlu0 %v499, 64
    %v505 = vpop.permute.xlu0 %504
    %v506 = vrot.slane %v505, 2
    %v508 = vmul.f32 %v501, %v506
    %510 = vrot.lane.b32.xlu0 %v508, 64
    %v511 = vpop.permute.xlu0 %510
    %v513 = vadd.f32 %v502, %v511
    %v514 = vtanh.pop %v513
    %v516 = vrot.slane %v501, 2
    %519 = vrot.lane.b32.xlu0 %v514, 64
    %v520 = vpop.permute.xlu0 %519
    %v522 = vmul.f32 %v516, %v520
    %v523 = vld [vmem:[#allocation6] sm:$0xff]
    %v524 = vld [vmem:[#allocation6 + $0x8] sm:$0xff]
    %v525 = vld [vmem:[#allocation6 + $0x10] sm:$0xff]
    %v526 = vld [vmem:[#allocation6 + $0x18] sm:$0xff]
    %v527 = vld [vmem:[#allocation6 + $0x20] sm:$0xff]
    %v528 = vld [vmem:[#allocation6 + $0x28] sm:$0xff]
    %v529 = vld [vmem:[#allocation6 + $0x30] sm:$0xff]
    %v530 = vld [vmem:[#allocation6 + $0x38] sm:$0xff]
    %v531 = vld [vmem:[#allocation6 + $0x40] sm:$0xff]
    %v532 = vld [vmem:[#allocation6 + $0x48] sm:$0xff]
    %v533 = vld [vmem:[#allocation6 + $0x50] sm:$0xff]
    %v534 = vld [vmem:[#allocation6 + $0x58] sm:$0xff]
    %v535 = vld [vmem:[#allocation6 + $0x60] sm:$0xff]
    %v536 = vld [vmem:[#allocation6 + $0x68] sm:$0xff]
    %v537 = vld [vmem:[#allocation6 + $0x70] sm:$0xff]
    %v538 = vld [vmem:[#allocation6 + $0x78] sm:$0xff]
    %v540 = vsel %vm324, %v522, 0
    %542 = vmatprep.subr.mxu0 0.0
    %543 = vmatpush1.msra.mxu0 0.0
    %544 = vmatprep.subr.mxu0 0.0
    %545 = vmatpush1.msra.mxu0 0.0
    %546 = vmatprep.subr.mxu0 0.0
    %547 = vmatpush1.msra.mxu0 0.0
    %548 = vmatprep.subr.mxu0 0.0
    %549 = vmatpush1.msra.mxu0 0.0
    %550 = vmatprep.subr.mxu0 0.0
    %551 = vmatpush1.msra.mxu0 0.0
    %552 = vmatprep.subr.mxu0 0.0
    %553 = vmatpush1.msra.mxu0 0.0
    %554 = vmatprep.subr.mxu0 0.0
    %555 = vmatpush1.msra.mxu0 0.0
    %556 = vmatprep.subr.mxu0 0.0
    %557 = vmatpush1.msra.mxu0 0.0
    %558 = vmatprep.subr.mxu0 %v538
    %559 = vmatpush1.msra.mxu0 %v537
    %560 = vmatprep.subr.mxu0 %v536
    %561 = vmatpush1.msra.mxu0 %v535
    %562 = vmatprep.subr.mxu0 %v534
    %563 = vmatpush1.msra.mxu0 %v533
    %564 = vmatprep.subr.mxu0 %v532
    %565 = vmatpush1.msra.mxu0 %v531
    %566 = vmatprep.subr.mxu0 %v530
    %567 = vmatpush1.msra.mxu0 %v529
    %568 = vmatprep.subr.mxu0 %v528
    %569 = vmatpush1.msra.mxu0 %v527
    %570 = vmatprep.subr.mxu0 %v526
    %571 = vmatpush1.msra.mxu0 %v525
    %572 = vmatprep.subr.mxu0 %v524
    %573 = vmatpush1.msra.mxu0 %v523
    %574 = vmatprep.subr.mxu0 0.0
    %575 = vmatpush2.msra.mxu0 0.0
    %576 = vmatprep.subr.mxu0 0.0
    %577 = vmatpush2.msra.mxu0 0.0
    %578 = vmatprep.subr.mxu0 0.0
    %579 = vmatpush2.msra.mxu0 0.0
    %580 = vmatprep.subr.mxu0 0.0
    %581 = vmatpush2.msra.mxu0 0.0
    %582 = vmatprep.subr.mxu0 0.0
    %583 = vmatpush2.msra.mxu0 0.0
    %584 = vmatprep.subr.mxu0 0.0
    %585 = vmatpush2.msra.mxu0 0.0
    %586 = vmatprep.subr.mxu0 0.0
    %587 = vmatpush2.msra.mxu0 0.0
    %588 = vmatprep.subr.mxu0 0.0
    %589 = vmatpush2.msra.mxu0 0.0
    %590 = vmatprep.subr.mxu0 0.0
    %591 = vmatpush2.msra.mxu0 0.0
    %592 = vmatprep.subr.mxu0 0.0
    %593 = vmatpush2.msra.mxu0 0.0
    %594 = vmatprep.subr.mxu0 0.0
    %595 = vmatpush2.msra.mxu0 0.0
    %596 = vmatprep.subr.mxu0 0.0
    %597 = vmatpush2.msra.mxu0 0.0
    %598 = vmatprep.subr.mxu0 0.0
    %599 = vmatpush2.msra.mxu0 0.0
    %600 = vmatprep.subr.mxu0 0.0
    %601 = vmatpush2.msra.mxu0 0.0
    %602 = vmatprep.subr.mxu0 0.0
    %603 = vmatpush2.msra.mxu0 0.0
    %604 = vmatprep.subr.mxu0 0.0
    %605 = vmatpush2.msra.mxu0 0.0
    %606 = vmatprep.mubr.f32.mxu0 0.0
    %607 = vmatmul.mubr.f32.gmra.mxu0 %v540
    %v608 = vpop.f32.mrf.mxu0
    %v609 = vadd.f32 0.0, %v608
    %v610 = vpop.f32.mrf.mxu0
    %v611 = vadd.f32 0.0, %v610
    %612 = vdwg.mxu0
    %v613 = vadd.f32 %v395, %v609
    %v614 = vadd.f32 %v397, %v611
    %v615 = vtanh.pop %v613
    %v616 = vtanh.pop %v614
    %v617 = vmul.f32 %v615, 0.5
    %v618 = vmul.f32 %v616, 0.5
    %v619 = vadd.f32 %v617, 0.5
    %v620 = vadd.f32 %v618, 0.5
    %v621 = vmul.f32 %v619, 0.0
    %623 = vrot.lane.b32.xlu0 %v616, 64
    %v624 = vpop.permute.xlu0 %623
    %v626 = vmul.f32 %v619, %v624
    %628 = vrot.lane.b32.xlu0 %v626, 64
    %v629 = vpop.permute.xlu0 %628
    %v631 = vadd.f32 %v621, %v629
    %v632 = vtanh.pop %v631
    %634 = vrot.lane.b32.xlu0 %v632, 64
    %v635 = vpop.permute.xlu0 %634
    %v637 = vmul.f32 %v620, %v635
    %v639 = vsel %vm324, %v637, 0
    %641 = vmatprep.subr.mxu0 0.0
    %642 = vmatpush1.msra.mxu0 0.0
    %643 = vmatprep.subr.mxu0 0.0
    %644 = vmatpush1.msra.mxu0 0.0
    %645 = vmatprep.subr.mxu0 0.0
    %646 = vmatpush1.msra.mxu0 0.0
    %647 = vmatprep.subr.mxu0 0.0
    %648 = vmatpush1.msra.mxu0 0.0
    %649 = vmatprep.subr.mxu0 0.0
    %650 = vmatpush1.msra.mxu0 0.0
    %651 = vmatprep.subr.mxu0 0.0
    %652 = vmatpush1.msra.mxu0 0.0
    %653 = vmatprep.subr.mxu0 0.0
    %654 = vmatpush1.msra.mxu0 0.0
    %655 = vmatprep.subr.mxu0 0.0
    %656 = vmatpush1.msra.mxu0 0.0
    %657 = vmatprep.subr.mxu0 %v311
    %658 = vmatpush1.msra.mxu0 %v310
    %659 = vmatprep.subr.mxu0 %v309
    %660 = vmatpush1.msra.mxu0 %v308
    %661 = vmatprep.subr.mxu0 %v307
    %662 = vmatpush1.msra.mxu0 %v306
    %663 = vmatprep.subr.mxu0 %v305
    %664 = vmatpush1.msra.mxu0 %v304
    %665 = vmatprep.subr.mxu0 %v303
    %666 = vmatpush1.msra.mxu0 %v302
    %667 = vmatprep.subr.mxu0 %v301
    %668 = vmatpush1.msra.mxu0 %v300
    %669 = vmatprep.subr.mxu0 %v299
    %670 = vmatpush1.msra.mxu0 %v298
    %671 = vmatprep.subr.mxu0 %v297
    %672 = vmatpush1.msra.mxu0 %v296
    %673 = vmatprep.subr.mxu0 0.0
    %674 = vmatpush2.msra.mxu0 0.0
    %675 = vmatprep.subr.mxu0 0.0
    %676 = vmatpush2.msra.mxu0 0.0
    %677 = vmatprep.subr.mxu0 0.0
    %678 = vmatpush2.msra.mxu0 0.0
    %679 = vmatprep.subr.mxu0 0.0
    %680 = vmatpush2.msra.mxu0 0.0
    %681 = vmatprep.subr.mxu0 0.0
    %682 = vmatpush2.msra.mxu0 0.0
    %683 = vmatprep.subr.mxu0 0.0
    %684 = vmatpush2.msra.mxu0 0.0
    %685 = vmatprep.subr.mxu0 0.0
    %686 = vmatpush2.msra.mxu0 0.0
    %687 = vmatprep.subr.mxu0 0.0
    %688 = vmatpush2.msra.mxu0 0.0
    %689 = vmatprep.subr.mxu0 0.0
    %690 = vmatpush2.msra.mxu0 0.0
    %691 = vmatprep.subr.mxu0 0.0
    %692 = vmatpush2.msra.mxu0 0.0
    %693 = vmatprep.subr.mxu0 0.0
    %694 = vmatpush2.msra.mxu0 0.0
    %695 = vmatprep.subr.mxu0 0.0
    %696 = vmatpush2.msra.mxu0 0.0
    %697 = vmatprep.subr.mxu0 0.0
    %698 = vmatpush2.msra.mxu0 0.0
    %699 = vmatprep.subr.mxu0 0.0
    %700 = vmatpush2.msra.mxu0 0.0
    %701 = vmatprep.subr.mxu0 0.0
    %702 = vmatpush2.msra.mxu0 0.0
    %703 = vmatprep.subr.mxu0 0.0
    %704 = vmatpush2.msra.mxu0 0.0
    %705 = vmatprep.mubr.f32.mxu0 0.0
    %706 = vmatmul.mubr.f32.gmra.mxu0 %v639
    %v707 = vpop.f32.mrf.mxu0
    %v708 = vadd.f32 %v317, %v707
    %v709 = vpop.f32.mrf.mxu0
    %v710 = vadd.f32 %v321, %v709
    %711 = vdwg.mxu0
    %s712 = scalar_lea.vmem [#allocation2], 4
    %v713 = vld [vmem:[%s712] sm:$0xf]
    %714 = vmatprep.subr.mxu0 0.0
    %715 = vmatpush1.msra.mxu0 0.0
    %716 = vmatprep.subr.mxu0 0.0
    %717 = vmatpush1.msra.mxu0 0.0
    %718 = vmatprep.subr.mxu0 0.0
    %719 = vmatpush1.msra.mxu0 0.0
    %720 = vmatprep.subr.mxu0 0.0
    %721 = vmatpush1.msra.mxu0 0.0
    %722 = vmatprep.subr.mxu0 0.0
    %723 = vmatpush1.msra.mxu0 0.0
    %724 = vmatprep.subr.mxu0 0.0
    %725 = vmatpush1.msra.mxu0 0.0
    %726 = vmatprep.subr.mxu0 0.0
    %727 = vmatpush1.msra.mxu0 0.0
    %728 = vmatprep.subr.mxu0 0.0
    %729 = vmatpush1.msra.mxu0 0.0
    %730 = vmatprep.subr.mxu0 %v415
    %731 = vmatpush1.msra.mxu0 %v414
    %732 = vmatprep.subr.mxu0 %v413
    %733 = vmatpush1.msra.mxu0 %v412
    %734 = vmatprep.subr.mxu0 %v411
    %735 = vmatpush1.msra.mxu0 %v410
    %736 = vmatprep.subr.mxu0 %v409
    %737 = vmatpush1.msra.mxu0 %v408
    %738 = vmatprep.subr.mxu0 %v407
    %739 = vmatpush1.msra.mxu0 %v406
    %740 = vmatprep.subr.mxu0 %v405
    %741 = vmatpush1.msra.mxu0 %v404
    %742 = vmatprep.subr.mxu0 %v403
    %743 = vmatpush1.msra.mxu0 %v402
    %744 = vmatprep.subr.mxu0 %v401
    %745 = vmatpush1.msra.mxu0 %v400
    %746 = vmatprep.subr.mxu0 0.0
    %747 = vmatpush2.msra.mxu0 0.0
    %748 = vmatprep.subr.mxu0 0.0
    %749 = vmatpush2.msra.mxu0 0.0
    %750 = vmatprep.subr.mxu0 0.0
    %751 = vmatpush2.msra.mxu0 0.0
    %752 = vmatprep.subr.mxu0 0.0
    %753 = vmatpush2.msra.mxu0 0.0
    %754 = vmatprep.subr.mxu0 0.0
    %755 = vmatpush2.msra.mxu0 0.0
    %756 = vmatprep.subr.mxu0 0.0
    %757 = vmatpush2.msra.mxu0 0.0
    %758 = vmatprep.subr.mxu0 0.0
    %759 = vmatpush2.msra.mxu0 0.0
    %760 = vmatprep.subr.mxu0 0.0
    %761 = vmatpush2.msra.mxu0 0.0
    %762 = vmatprep.subr.mxu0 0.0
    %763 = vmatpush2.msra.mxu0 0.0
    %764 = vmatprep.subr.mxu0 0.0
    %765 = vmatpush2.msra.mxu0 0.0
    %766 = vmatprep.subr.mxu0 0.0
    %767 = vmatpush2.msra.mxu0 0.0
    %768 = vmatprep.subr.mxu0 0.0
    %769 = vmatpush2.msra.mxu0 0.0
    %770 = vmatprep.subr.mxu0 0.0
    %771 = vmatpush2.msra.mxu0 0.0
    %772 = vmatprep.subr.mxu0 0.0
    %773 = vmatpush2.msra.mxu0 0.0
    %774 = vmatprep.subr.mxu0 0.0
    %775 = vmatpush2.msra.mxu0 0.0
    %776 = vmatprep.subr.mxu0 0.0
    %777 = vmatpush2.msra.mxu0 0.0
    %778 = vmatprep.mubr.f32.mxu0 0.0
    %779 = vmatmul.mubr.f32.gmra.mxu0 %v540
    %v780 = vpop.f32.mrf.mxu0
    %v781 = vadd.f32 0.0, %v780
    %v782 = vpop.f32.mrf.mxu0
    %v783 = vadd.f32 0.0, %v782
    %784 = vdwg.mxu0
    %v787 = vcombine.low %v781, %v783
    %v789 = vunpack.c.l.s4 1983009808
    %v790 = vunpack.c.0.s8 %v789
    %v791 = vlaneseq
    %v792 = vshrl.u32 %v791, 7
    %v793 = vsub.s32 %v790, %v792
    %v794 = vrot.slane %v787, %v793
    %v796 = vadd.f32 %v713, %v794
    %v797 = vtanh.pop %v796
    %v798 = vmul.f32 %v797, 0.5
    %v799 = vadd.f32 %v798, 0.5
    %v800 = vmul.f32 %v799, %v513
    %802 = vrot.lane.b32.xlu0 %v797, 64
    %v803 = vpop.permute.xlu0 %802
    %v804 = vrot.slane %v803, 2
    %v806 = vmul.f32 %v799, %v804
    %808 = vrot.lane.b32.xlu0 %v806, 64
    %v809 = vpop.permute.xlu0 %808
    %v811 = vadd.f32 %v800, %v809
    %v812 = vtanh.pop %v811
    %v814 = vrot.slane %v799, 2
    %817 = vrot.lane.b32.xlu0 %v812, 64
    %v818 = vpop.permute.xlu0 %817
    %v820 = vmul.f32 %v814, %v818
    %v822 = vsel %vm324, %v820, 0
    %824 = vmatprep.subr.mxu0 0.0
    %825 = vmatpush1.msra.mxu0 0.0
    %826 = vmatprep.subr.mxu0 0.0
    %827 = vmatpush1.msra.mxu0 0.0
    %828 = vmatprep.subr.mxu0 0.0
    %829 = vmatpush1.msra.mxu0 0.0
    %830 = vmatprep.subr.mxu0 0.0
    %831 = vmatpush1.msra.mxu0 0.0
    %832 = vmatprep.subr.mxu0 0.0
    %833 = vmatpush1.msra.mxu0 0.0
    %834 = vmatprep.subr.mxu0 0.0
    %835 = vmatpush1.msra.mxu0 0.0
    %836 = vmatprep.subr.mxu0 0.0
    %837 = vmatpush1.msra.mxu0 0.0
    %838 = vmatprep.subr.mxu0 0.0
    %839 = vmatpush1.msra.mxu0 0.0
    %840 = vmatprep.subr.mxu0 %v538
    %841 = vmatpush1.msra.mxu0 %v537
    %842 = vmatprep.subr.mxu0 %v536
    %843 = vmatpush1.msra.mxu0 %v535
    %844 = vmatprep.subr.mxu0 %v534
    %845 = vmatpush1.msra.mxu0 %v533
    %846 = vmatprep.subr.mxu0 %v532
    %847 = vmatpush1.msra.mxu0 %v531
    %848 = vmatprep.subr.mxu0 %v530
    %849 = vmatpush1.msra.mxu0 %v529
    %850 = vmatprep.subr.mxu0 %v528
    %851 = vmatpush1.msra.mxu0 %v527
    %852 = vmatprep.subr.mxu0 %v526
    %853 = vmatpush1.msra.mxu0 %v525
    %854 = vmatprep.subr.mxu0 %v524
    %855 = vmatpush1.msra.mxu0 %v523
    %856 = vmatprep.subr.mxu0 0.0
    %857 = vmatpush2.msra.mxu0 0.0
    %858 = vmatprep.subr.mxu0 0.0
    %859 = vmatpush2.msra.mxu0 0.0
    %860 = vmatprep.subr.mxu0 0.0
    %861 = vmatpush2.msra.mxu0 0.0
    %862 = vmatprep.subr.mxu0 0.0
    %863 = vmatpush2.msra.mxu0 0.0
    %864 = vmatprep.subr.mxu0 0.0
    %865 = vmatpush2.msra.mxu0 0.0
    %866 = vmatprep.subr.mxu0 0.0
    %867 = vmatpush2.msra.mxu0 0.0
    %868 = vmatprep.subr.mxu0 0.0
    %869 = vmatpush2.msra.mxu0 0.0
    %870 = vmatprep.subr.mxu0 0.0
    %871 = vmatpush2.msra.mxu0 0.0
    %872 = vmatprep.subr.mxu0 0.0
    %873 = vmatpush2.msra.mxu0 0.0
    %874 = vmatprep.subr.mxu0 0.0
    %875 = vmatpush2.msra.mxu0 0.0
    %876 = vmatprep.subr.mxu0 0.0
    %877 = vmatpush2.msra.mxu0 0.0
    %878 = vmatprep.subr.mxu0 0.0
    %879 = vmatpush2.msra.mxu0 0.0
    %880 = vmatprep.subr.mxu0 0.0
    %881 = vmatpush2.msra.mxu0 0.0
    %882 = vmatprep.subr.mxu0 0.0
    %883 = vmatpush2.msra.mxu0 0.0
    %884 = vmatprep.subr.mxu0 0.0
    %885 = vmatpush2.msra.mxu0 0.0
    %886 = vmatprep.subr.mxu0 0.0
    %887 = vmatpush2.msra.mxu0 0.0
    %888 = vmatprep.mubr.f32.mxu0 0.0
    %889 = vmatmul.mubr.f32.gmra.mxu0 %v822
    %v890 = vpop.f32.mrf.mxu0
    %v891 = vadd.f32 0.0, %v890
    %v892 = vpop.f32.mrf.mxu0
    %v893 = vadd.f32 0.0, %v892
    %894 = vdwg.mxu0
    %v895 = vadd.f32 %v708, %v891
    %v896 = vadd.f32 %v710, %v893
    %v897 = vtanh.pop %v895
    %v898 = vtanh.pop %v896
    %v899 = vmul.f32 %v897, 0.5
    %v900 = vmul.f32 %v898, 0.5
    %v901 = vadd.f32 %v899, 0.5
    %v902 = vadd.f32 %v900, 0.5
    %v903 = vmul.f32 %v901, %v631
    %905 = vrot.lane.b32.xlu0 %v898, 64
    %v906 = vpop.permute.xlu0 %905
    %v908 = vmul.f32 %v901, %v906
    %910 = vrot.lane.b32.xlu0 %v908, 64
    %v911 = vpop.permute.xlu0 %910
    %v913 = vadd.f32 %v903, %v911
    %v914 = vtanh.pop %v913
    %916 = vrot.lane.b32.xlu0 %v914, 64
    %v917 = vpop.permute.xlu0 %916
    %v919 = vmul.f32 %v902, %v917
    %v921 = vsel %vm324, %v919, 0
    %923 = vmatprep.subr.mxu0 0.0
    %924 = vmatpush1.msra.mxu0 0.0
    %925 = vmatprep.subr.mxu0 0.0
    %926 = vmatpush1.msra.mxu0 0.0
    %927 = vmatprep.subr.mxu0 0.0
    %928 = vmatpush1.msra.mxu0 0.0
    %929 = vmatprep.subr.mxu0 0.0
    %930 = vmatpush1.msra.mxu0 0.0
    %931 = vmatprep.subr.mxu0 0.0
    %932 = vmatpush1.msra.mxu0 0.0
    %933 = vmatprep.subr.mxu0 0.0
    %934 = vmatpush1.msra.mxu0 0.0
    %935 = vmatprep.subr.mxu0 0.0
    %936 = vmatpush1.msra.mxu0 0.0
    %937 = vmatprep.subr.mxu0 0.0
    %938 = vmatpush1.msra.mxu0 0.0
    %939 = vmatprep.subr.mxu0 %v311
    %940 = vmatpush1.msra.mxu0 %v310
    %941 = vmatprep.subr.mxu0 %v309
    %942 = vmatpush1.msra.mxu0 %v308
    %943 = vmatprep.subr.mxu0 %v307
    %944 = vmatpush1.msra.mxu0 %v306
    %945 = vmatprep.subr.mxu0 %v305
    %946 = vmatpush1.msra.mxu0 %v304
    %947 = vmatprep.subr.mxu0 %v303
    %948 = vmatpush1.msra.mxu0 %v302
    %949 = vmatprep.subr.mxu0 %v301
    %950 = vmatpush1.msra.mxu0 %v300
    %951 = vmatprep.subr.mxu0 %v299
    %952 = vmatpush1.msra.mxu0 %v298
    %953 = vmatprep.subr.mxu0 %v297
    %954 = vmatpush1.msra.mxu0 %v296
    %955 = vmatprep.subr.mxu0 0.0
    %956 = vmatpush2.msra.mxu0 0.0
    %957 = vmatprep.subr.mxu0 0.0
    %958 = vmatpush2.msra.mxu0 0.0
    %959 = vmatprep.subr.mxu0 0.0
    %960 = vmatpush2.msra.mxu0 0.0
    %961 = vmatprep.subr.mxu0 0.0
    %962 = vmatpush2.msra.mxu0 0.0
    %963 = vmatprep.subr.mxu0 0.0
    %964 = vmatpush2.msra.mxu0 0.0
    %965 = vmatprep.subr.mxu0 0.0
    %966 = vmatpush2.msra.mxu0 0.0
    %967 = vmatprep.subr.mxu0 0.0
    %968 = vmatpush2.msra.mxu0 0.0
    %969 = vmatprep.subr.mxu0 0.0
    %970 = vmatpush2.msra.mxu0 0.0
    %971 = vmatprep.subr.mxu0 0.0
    %972 = vmatpush2.msra.mxu0 0.0
    %973 = vmatprep.subr.mxu0 0.0
    %974 = vmatpush2.msra.mxu0 0.0
    %975 = vmatprep.subr.mxu0 0.0
    %976 = vmatpush2.msra.mxu0 0.0
    %977 = vmatprep.subr.mxu0 0.0
    %978 = vmatpush2.msra.mxu0 0.0
    %979 = vmatprep.subr.mxu0 0.0
    %980 = vmatpush2.msra.mxu0 0.0
    %981 = vmatprep.subr.mxu0 0.0
    %982 = vmatpush2.msra.mxu0 0.0
    %983 = vmatprep.subr.mxu0 0.0
    %984 = vmatpush2.msra.mxu0 0.0
    %985 = vmatprep.subr.mxu0 0.0
    %986 = vmatpush2.msra.mxu0 0.0
    %987 = vmatprep.mubr.f32.mxu0 0.0
    %988 = vmatmul.mubr.f32.gmra.mxu0 %v921
    %v989 = vpop.f32.mrf.mxu0
    %v990 = vadd.f32 %v317, %v989
    %v991 = vpop.f32.mrf.mxu0
    %v992 = vadd.f32 %v321, %v991
    %993 = vdwg.mxu0
    %s994 = scalar_lea.vmem [#allocation2], 8
    %v995 = vld [vmem:[%s994] sm:$0xf]
    %996 = vmatprep.subr.mxu0 0.0
    %997 = vmatpush1.msra.mxu0 0.0
    %998 = vmatprep.subr.mxu0 0.0
    %999 = vmatpush1.msra.mxu0 0.0
    %1000 = vmatprep.subr.mxu0 0.0
    %1001 = vmatpush1.msra.mxu0 0.0
    %1002 = vmatprep.subr.mxu0 0.0
    %1003 = vmatpush1.msra.mxu0 0.0
    %1004 = vmatprep.subr.mxu0 0.0
    %1005 = vmatpush1.msra.mxu0 0.0
    %1006 = vmatprep.subr.mxu0 0.0
    %1007 = vmatpush1.msra.mxu0 0.0
    %1008 = vmatprep.subr.mxu0 0.0
    %1009 = vmatpush1.msra.mxu0 0.0
    %1010 = vmatprep.subr.mxu0 0.0
    %1011 = vmatpush1.msra.mxu0 0.0
    %1012 = vmatprep.subr.mxu0 %v415
    %1013 = vmatpush1.msra.mxu0 %v414
    %1014 = vmatprep.subr.mxu0 %v413
    %1015 = vmatpush1.msra.mxu0 %v412
    %1016 = vmatprep.subr.mxu0 %v411
    %1017 = vmatpush1.msra.mxu0 %v410
    %1018 = vmatprep.subr.mxu0 %v409
    %1019 = vmatpush1.msra.mxu0 %v408
    %1020 = vmatprep.subr.mxu0 %v407
    %1021 = vmatpush1.msra.mxu0 %v406
    %1022 = vmatprep.subr.mxu0 %v405
    %1023 = vmatpush1.msra.mxu0 %v404
    %1024 = vmatprep.subr.mxu0 %v403
    %1025 = vmatpush1.msra.mxu0 %v402
    %1026 = vmatprep.subr.mxu0 %v401
    %1027 = vmatpush1.msra.mxu0 %v400
    %1028 = vmatprep.subr.mxu0 0.0
    %1029 = vmatpush2.msra.mxu0 0.0
    %1030 = vmatprep.subr.mxu0 0.0
    %1031 = vmatpush2.msra.mxu0 0.0
    %1032 = vmatprep.subr.mxu0 0.0
    %1033 = vmatpush2.msra.mxu0 0.0
    %1034 = vmatprep.subr.mxu0 0.0
    %1035 = vmatpush2.msra.mxu0 0.0
    %1036 = vmatprep.subr.mxu0 0.0
    %1037 = vmatpush2.msra.mxu0 0.0
    %1038 = vmatprep.subr.mxu0 0.0
    %1039 = vmatpush2.msra.mxu0 0.0
    %1040 = vmatprep.subr.mxu0 0.0
    %1041 = vmatpush2.msra.mxu0 0.0
    %1042 = vmatprep.subr.mxu0 0.0
    %1043 = vmatpush2.msra.mxu0 0.0
    %1044 = vmatprep.subr.mxu0 0.0
    %1045 = vmatpush2.msra.mxu0 0.0
    %1046 = vmatprep.subr.mxu0 0.0
    %1047 = vmatpush2.msra.mxu0 0.0
    %1048 = vmatprep.subr.mxu0 0.0
    %1049 = vmatpush2.msra.mxu0 0.0
    %1050 = vmatprep.subr.mxu0 0.0
    %1051 = vmatpush2.msra.mxu0 0.0
    %1052 = vmatprep.subr.mxu0 0.0
    %1053 = vmatpush2.msra.mxu0 0.0
    %1054 = vmatprep.subr.mxu0 0.0
    %1055 = vmatpush2.msra.mxu0 0.0
    %1056 = vmatprep.subr.mxu0 0.0
    %1057 = vmatpush2.msra.mxu0 0.0
    %1058 = vmatprep.subr.mxu0 0.0
    %1059 = vmatpush2.msra.mxu0 0.0
    %1060 = vmatprep.mubr.f32.mxu0 0.0
    %1061 = vmatmul.mubr.f32.gmra.mxu0 %v822
    %v1062 = vpop.f32.mrf.mxu0
    %v1063 = vadd.f32 0.0, %v1062
    %v1064 = vpop.f32.mrf.mxu0
    %v1065 = vadd.f32 0.0, %v1064
    %1066 = vdwg.mxu0
    %v1069 = vcombine.low %v1063, %v1065
    %v1071 = vunpack.c.l.s4 1983009808
    %v1072 = vunpack.c.0.s8 %v1071
    %v1073 = vlaneseq
    %v1074 = vshrl.u32 %v1073, 7
    %v1075 = vsub.s32 %v1072, %v1074
    %v1076 = vrot.slane %v1069, %v1075
    %v1078 = vadd.f32 %v995, %v1076
    %v1079 = vtanh.pop %v1078
    %v1080 = vmul.f32 %v1079, 0.5
    %v1081 = vadd.f32 %v1080, 0.5
    %v1082 = vmul.f32 %v1081, %v811
    %1084 = vrot.lane.b32.xlu0 %v1079, 64
    %v1085 = vpop.permute.xlu0 %1084
    %v1086 = vrot.slane %v1085, 2
    %v1088 = vmul.f32 %v1081, %v1086
    %1090 = vrot.lane.b32.xlu0 %v1088, 64
    %v1091 = vpop.permute.xlu0 %1090
    %v1093 = vadd.f32 %v1082, %v1091
    %v1094 = vtanh.pop %v1093
    %v1096 = vrot.slane %v1081, 2
    %1099 = vrot.lane.b32.xlu0 %v1094, 64
    %v1100 = vpop.permute.xlu0 %1099
    %v1102 = vmul.f32 %v1096, %v1100
    %v1104 = vsel %vm324, %v1102, 0
    %1106 = vmatprep.subr.mxu0 0.0
    %1107 = vmatpush1.msra.mxu0 0.0
    %1108 = vmatprep.subr.mxu0 0.0
    %1109 = vmatpush1.msra.mxu0 0.0
    %1110 = vmatprep.subr.mxu0 0.0
    %1111 = vmatpush1.msra.mxu0 0.0
    %1112 = vmatprep.subr.mxu0 0.0
    %1113 = vmatpush1.msra.mxu0 0.0
    %1114 = vmatprep.subr.mxu0 0.0
    %1115 = vmatpush1.msra.mxu0 0.0
    %1116 = vmatprep.subr.mxu0 0.0
    %1117 = vmatpush1.msra.mxu0 0.0
    %1118 = vmatprep.subr.mxu0 0.0
    %1119 = vmatpush1.msra.mxu0 0.0
    %1120 = vmatprep.subr.mxu0 0.0
    %1121 = vmatpush1.msra.mxu0 0.0
    %1122 = vmatprep.subr.mxu0 %v538
    %1123 = vmatpush1.msra.mxu0 %v537
    %1124 = vmatprep.subr.mxu0 %v536
    %1125 = vmatpush1.msra.mxu0 %v535
    %1126 = vmatprep.subr.mxu0 %v534
    %1127 = vmatpush1.msra.mxu0 %v533
    %1128 = vmatprep.subr.mxu0 %v532
    %1129 = vmatpush1.msra.mxu0 %v531
    %1130 = vmatprep.subr.mxu0 %v530
    %1131 = vmatpush1.msra.mxu0 %v529
    %1132 = vmatprep.subr.mxu0 %v528
    %1133 = vmatpush1.msra.mxu0 %v527
    %1134 = vmatprep.subr.mxu0 %v526
    %1135 = vmatpush1.msra.mxu0 %v525
    %1136 = vmatprep.subr.mxu0 %v524
    %1137 = vmatpush1.msra.mxu0 %v523
    %1138 = vmatprep.subr.mxu0 0.0
    %1139 = vmatpush2.msra.mxu0 0.0
    %1140 = vmatprep.subr.mxu0 0.0
    %1141 = vmatpush2.msra.mxu0 0.0
    %1142 = vmatprep.subr.mxu0 0.0
    %1143 = vmatpush2.msra.mxu0 0.0
    %1144 = vmatprep.subr.mxu0 0.0
    %1145 = vmatpush2.msra.mxu0 0.0
    %1146 = vmatprep.subr.mxu0 0.0
    %1147 = vmatpush2.msra.mxu0 0.0
    %1148 = vmatprep.subr.mxu0 0.0
    %1149 = vmatpush2.msra.mxu0 0.0
    %1150 = vmatprep.subr.mxu0 0.0
    %1151 = vmatpush2.msra.mxu0 0.0
    %1152 = vmatprep.subr.mxu0 0.0
    %1153 = vmatpush2.msra.mxu0 0.0
    %1154 = vmatprep.subr.mxu0 0.0
    %1155 = vmatpush2.msra.mxu0 0.0
    %1156 = vmatprep.subr.mxu0 0.0
    %1157 = vmatpush2.msra.mxu0 0.0
    %1158 = vmatprep.subr.mxu0 0.0
    %1159 = vmatpush2.msra.mxu0 0.0
    %1160 = vmatprep.subr.mxu0 0.0
    %1161 = vmatpush2.msra.mxu0 0.0
    %1162 = vmatprep.subr.mxu0 0.0
    %1163 = vmatpush2.msra.mxu0 0.0
    %1164 = vmatprep.subr.mxu0 0.0
    %1165 = vmatpush2.msra.mxu0 0.0
    %1166 = vmatprep.subr.mxu0 0.0
    %1167 = vmatpush2.msra.mxu0 0.0
    %1168 = vmatprep.subr.mxu0 0.0
    %1169 = vmatpush2.msra.mxu0 0.0
    %1170 = vmatprep.mubr.f32.mxu0 0.0
    %1171 = vmatmul.mubr.f32.gmra.mxu0 %v1104
    %v1172 = vpop.f32.mrf.mxu0
    %v1173 = vadd.f32 0.0, %v1172
    %v1174 = vpop.f32.mrf.mxu0
    %v1175 = vadd.f32 0.0, %v1174
    %1176 = vdwg.mxu0
    %v1177 = vadd.f32 %v990, %v1173
    %v1178 = vadd.f32 %v992, %v1175
    %v1179 = vtanh.pop %v1177
    %v1180 = vtanh.pop %v1178
    %v1181 = vmul.f32 %v1179, 0.5
    %v1182 = vmul.f32 %v1180, 0.5
    %v1183 = vadd.f32 %v1181, 0.5
    %v1184 = vadd.f32 %v1182, 0.5
    %v1185 = vmul.f32 %v1183, %v913
    %1187 = vrot.lane.b32.xlu0 %v1180, 64
    %v1188 = vpop.permute.xlu0 %1187
    %v1190 = vmul.f32 %v1183, %v1188
    %1192 = vrot.lane.b32.xlu0 %v1190, 64
    %v1193 = vpop.permute.xlu0 %1192
    %v1195 = vadd.f32 %v1185, %v1193
    %v1196 = vtanh.pop %v1195
    %1198 = vrot.lane.b32.xlu0 %v1196, 64
    %v1199 = vpop.permute.xlu0 %1198
    %v1201 = vmul.f32 %v1184, %v1199
    %v1203 = vsel %vm324, %v1201, 0
    %1205 = vmatprep.subr.mxu0 0.0
    %1206 = vmatpush1.msra.mxu0 0.0
    %1207 = vmatprep.subr.mxu0 0.0
    %1208 = vmatpush1.msra.mxu0 0.0
    %1209 = vmatprep.subr.mxu0 0.0
    %1210 = vmatpush1.msra.mxu0 0.0
    %1211 = vmatprep.subr.mxu0 0.0
    %1212 = vmatpush1.msra.mxu0 0.0
    %1213 = vmatprep.subr.mxu0 0.0
    %1214 = vmatpush1.msra.mxu0 0.0
    %1215 = vmatprep.subr.mxu0 0.0
    %1216 = vmatpush1.msra.mxu0 0.0
    %1217 = vmatprep.subr.mxu0 0.0
    %1218 = vmatpush1.msra.mxu0 0.0
    %1219 = vmatprep.subr.mxu0 0.0
    %1220 = vmatpush1.msra.mxu0 0.0
    %1221 = vmatprep.subr.mxu0 %v311
    %1222 = vmatpush1.msra.mxu0 %v310
    %1223 = vmatprep.subr.mxu0 %v309
    %1224 = vmatpush1.msra.mxu0 %v308
    %1225 = vmatprep.subr.mxu0 %v307
    %1226 = vmatpush1.msra.mxu0 %v306
    %1227 = vmatprep.subr.mxu0 %v305
    %1228 = vmatpush1.msra.mxu0 %v304
    %1229 = vmatprep.subr.mxu0 %v303
    %1230 = vmatpush1.msra.mxu0 %v302
    %1231 = vmatprep.subr.mxu0 %v301
    %1232 = vmatpush1.msra.mxu0 %v300
    %1233 = vmatprep.subr.mxu0 %v299
    %1234 = vmatpush1.msra.mxu0 %v298
    %1235 = vmatprep.subr.mxu0 %v297
    %1236 = vmatpush1.msra.mxu0 %v296
    %1237 = vmatprep.subr.mxu0 0.0
    %1238 = vmatpush2.msra.mxu0 0.0
    %1239 = vmatprep.subr.mxu0 0.0
    %1240 = vmatpush2.msra.mxu0 0.0
    %1241 = vmatprep.subr.mxu0 0.0
    %1242 = vmatpush2.msra.mxu0 0.0
    %1243 = vmatprep.subr.mxu0 0.0
    %1244 = vmatpush2.msra.mxu0 0.0
    %1245 = vmatprep.subr.mxu0 0.0
    %1246 = vmatpush2.msra.mxu0 0.0
    %1247 = vmatprep.subr.mxu0 0.0
    %1248 = vmatpush2.msra.mxu0 0.0
    %1249 = vmatprep.subr.mxu0 0.0
    %1250 = vmatpush2.msra.mxu0 0.0
    %1251 = vmatprep.subr.mxu0 0.0
    %1252 = vmatpush2.msra.mxu0 0.0
    %1253 = vmatprep.subr.mxu0 0.0
    %1254 = vmatpush2.msra.mxu0 0.0
    %1255 = vmatprep.subr.mxu0 0.0
    %1256 = vmatpush2.msra.mxu0 0.0
    %1257 = vmatprep.subr.mxu0 0.0
    %1258 = vmatpush2.msra.mxu0 0.0
    %1259 = vmatprep.subr.mxu0 0.0
    %1260 = vmatpush2.msra.mxu0 0.0
    %1261 = vmatprep.subr.mxu0 0.0
    %1262 = vmatpush2.msra.mxu0 0.0
    %1263 = vmatprep.subr.mxu0 0.0
    %1264 = vmatpush2.msra.mxu0 0.0
    %1265 = vmatprep.subr.mxu0 0.0
    %1266 = vmatpush2.msra.mxu0 0.0
    %1267 = vmatprep.subr.mxu0 0.0
    %1268 = vmatpush2.msra.mxu0 0.0
    %1269 = vmatprep.mubr.f32.mxu0 0.0
    %1270 = vmatmul.mubr.f32.gmra.mxu0 %v1203
    %v1271 = vpop.f32.mrf.mxu0
    %v1272 = vadd.f32 %v317, %v1271
    %v1273 = vpop.f32.mrf.mxu0
    %v1274 = vadd.f32 %v321, %v1273
    %1275 = vdwg.mxu0
    %s1276 = scalar_lea.vmem [#allocation2], 12
    %v1277 = vld [vmem:[%s1276] sm:$0xf]
    %1278 = vmatprep.subr.mxu0 0.0
    %1279 = vmatpush1.msra.mxu0 0.0
    %1280 = vmatprep.subr.mxu0 0.0
    %1281 = vmatpush1.msra.mxu0 0.0
    %1282 = vmatprep.subr.mxu0 0.0
    %1283 = vmatpush1.msra.mxu0 0.0
    %1284 = vmatprep.subr.mxu0 0.0
    %1285 = vmatpush1.msra.mxu0 0.0
    %1286 = vmatprep.subr.mxu0 0.0
    %1287 = vmatpush1.msra.mxu0 0.0
    %1288 = vmatprep.subr.mxu0 0.0
    %1289 = vmatpush1.msra.mxu0 0.0
    %1290 = vmatprep.subr.mxu0 0.0
    %1291 = vmatpush1.msra.mxu0 0.0
    %1292 = vmatprep.subr.mxu0 0.0
    %1293 = vmatpush1.msra.mxu0 0.0
    %1294 = vmatprep.subr.mxu0 %v415
    %1295 = vmatpush1.msra.mxu0 %v414
    %1296 = vmatprep.subr.mxu0 %v413
    %1297 = vmatpush1.msra.mxu0 %v412
    %1298 = vmatprep.subr.mxu0 %v411
    %1299 = vmatpush1.msra.mxu0 %v410
    %1300 = vmatprep.subr.mxu0 %v409
    %1301 = vmatpush1.msra.mxu0 %v408
    %1302 = vmatprep.subr.mxu0 %v407
    %1303 = vmatpush1.msra.mxu0 %v406
    %1304 = vmatprep.subr.mxu0 %v405
    %1305 = vmatpush1.msra.mxu0 %v404
    %1306 = vmatprep.subr.mxu0 %v403
    %1307 = vmatpush1.msra.mxu0 %v402
    %1308 = vmatprep.subr.mxu0 %v401
    %1309 = vmatpush1.msra.mxu0 %v400
    %1310 = vmatprep.subr.mxu0 0.0
    %1311 = vmatpush2.msra.mxu0 0.0
    %1312 = vmatprep.subr.mxu0 0.0
    %1313 = vmatpush2.msra.mxu0 0.0
    %1314 = vmatprep.subr.mxu0 0.0
    %1315 = vmatpush2.msra.mxu0 0.0
    %1316 = vmatprep.subr.mxu0 0.0
    %1317 = vmatpush2.msra.mxu0 0.0
    %1318 = vmatprep.subr.mxu0 0.0
    %1319 = vmatpush2.msra.mxu0 0.0
    %1320 = vmatprep.subr.mxu0 0.0
    %1321 = vmatpush2.msra.mxu0 0.0
    %1322 = vmatprep.subr.mxu0 0.0
    %1323 = vmatpush2.msra.mxu0 0.0
    %1324 = vmatprep.subr.mxu0 0.0
    %1325 = vmatpush2.msra.mxu0 0.0
    %1326 = vmatprep.subr.mxu0 0.0
    %1327 = vmatpush2.msra.mxu0 0.0
    %1328 = vmatprep.subr.mxu0 0.0
    %1329 = vmatpush2.msra.mxu0 0.0
    %1330 = vmatprep.subr.mxu0 0.0
    %1331 = vmatpush2.msra.mxu0 0.0
    %1332 = vmatprep.subr.mxu0 0.0
    %1333 = vmatpush2.msra.mxu0 0.0
    %1334 = vmatprep.subr.mxu0 0.0
    %1335 = vmatpush2.msra.mxu0 0.0
    %1336 = vmatprep.subr.mxu0 0.0
    %1337 = vmatpush2.msra.mxu0 0.0
    %1338 = vmatprep.subr.mxu0 0.0
    %1339 = vmatpush2.msra.mxu0 0.0
    %1340 = vmatprep.subr.mxu0 0.0
    %1341 = vmatpush2.msra.mxu0 0.0
    %1342 = vmatprep.mubr.f32.mxu0 0.0
    %1343 = vmatmul.mubr.f32.gmra.mxu0 %v1104
    %v1344 = vpop.f32.mrf.mxu0
    %v1345 = vadd.f32 0.0, %v1344
    %v1346 = vpop.f32.mrf.mxu0
    %v1347 = vadd.f32 0.0, %v1346
    %1348 = vdwg.mxu0
    %v1351 = vcombine.low %v1345, %v1347
    %v1353 = vunpack.c.l.s4 1983009808
    %v1354 = vunpack.c.0.s8 %v1353
    %v1355 = vlaneseq
    %v1356 = vshrl.u32 %v1355, 7
    %v1357 = vsub.s32 %v1354, %v1356
    %v1358 = vrot.slane %v1351, %v1357
    %v1360 = vadd.f32 %v1277, %v1358
    %v1361 = vtanh.pop %v1360
    %v1362 = vmul.f32 %v1361, 0.5
    %v1363 = vadd.f32 %v1362, 0.5
    %v1364 = vmul.f32 %v1363, %v1093
    %1366 = vrot.lane.b32.xlu0 %v1361, 64
    %v1367 = vpop.permute.xlu0 %1366
    %v1368 = vrot.slane %v1367, 2
    %v1370 = vmul.f32 %v1363, %v1368
    %1372 = vrot.lane.b32.xlu0 %v1370, 64
    %v1373 = vpop.permute.xlu0 %1372
    %v1375 = vadd.f32 %v1364, %v1373
    %v1376 = vtanh.pop %v1375
    %v1378 = vrot.slane %v1363, 2
    %1381 = vrot.lane.b32.xlu0 %v1376, 64
    %v1382 = vpop.permute.xlu0 %1381
    %v1384 = vmul.f32 %v1378, %v1382
    %v1386 = vsel %vm324, %v1384, 0
    %1388 = vmatprep.subr.mxu0 0.0
    %1389 = vmatpush1.msra.mxu0 0.0
    %1390 = vmatprep.subr.mxu0 0.0
    %1391 = vmatpush1.msra.mxu0 0.0
    %1392 = vmatprep.subr.mxu0 0.0
    %1393 = vmatpush1.msra.mxu0 0.0
    %1394 = vmatprep.subr.mxu0 0.0
    %1395 = vmatpush1.msra.mxu0 0.0
    %1396 = vmatprep.subr.mxu0 0.0
    %1397 = vmatpush1.msra.mxu0 0.0
    %1398 = vmatprep.subr.mxu0 0.0
    %1399 = vmatpush1.msra.mxu0 0.0
    %1400 = vmatprep.subr.mxu0 0.0
    %1401 = vmatpush1.msra.mxu0 0.0
    %1402 = vmatprep.subr.mxu0 0.0
    %1403 = vmatpush1.msra.mxu0 0.0
    %1404 = vmatprep.subr.mxu0 %v538
    %1405 = vmatpush1.msra.mxu0 %v537
    %1406 = vmatprep.subr.mxu0 %v536
    %1407 = vmatpush1.msra.mxu0 %v535
    %1408 = vmatprep.subr.mxu0 %v534
    %1409 = vmatpush1.msra.mxu0 %v533
    %1410 = vmatprep.subr.mxu0 %v532
    %1411 = vmatpush1.msra.mxu0 %v531
    %1412 = vmatprep.subr.mxu0 %v530
    %1413 = vmatpush1.msra.mxu0 %v529
    %1414 = vmatprep.subr.mxu0 %v528
    %1415 = vmatpush1.msra.mxu0 %v527
    %1416 = vmatprep.subr.mxu0 %v526
    %1417 = vmatpush1.msra.mxu0 %v525
    %1418 = vmatprep.subr.mxu0 %v524
    %1419 = vmatpush1.msra.mxu0 %v523
    %1420 = vmatprep.subr.mxu0 0.0
    %1421 = vmatpush2.msra.mxu0 0.0
    %1422 = vmatprep.subr.mxu0 0.0
    %1423 = vmatpush2.msra.mxu0 0.0
    %1424 = vmatprep.subr.mxu0 0.0
    %1425 = vmatpush2.msra.mxu0 0.0
    %1426 = vmatprep.subr.mxu0 0.0
    %1427 = vmatpush2.msra.mxu0 0.0
    %1428 = vmatprep.subr.mxu0 0.0
    %1429 = vmatpush2.msra.mxu0 0.0
    %1430 = vmatprep.subr.mxu0 0.0
    %1431 = vmatpush2.msra.mxu0 0.0
    %1432 = vmatprep.subr.mxu0 0.0
    %1433 = vmatpush2.msra.mxu0 0.0
    %1434 = vmatprep.subr.mxu0 0.0
    %1435 = vmatpush2.msra.mxu0 0.0
    %1436 = vmatprep.subr.mxu0 0.0
    %1437 = vmatpush2.msra.mxu0 0.0
    %1438 = vmatprep.subr.mxu0 0.0
    %1439 = vmatpush2.msra.mxu0 0.0
    %1440 = vmatprep.subr.mxu0 0.0
    %1441 = vmatpush2.msra.mxu0 0.0
    %1442 = vmatprep.subr.mxu0 0.0
    %1443 = vmatpush2.msra.mxu0 0.0
    %1444 = vmatprep.subr.mxu0 0.0
    %1445 = vmatpush2.msra.mxu0 0.0
    %1446 = vmatprep.subr.mxu0 0.0
    %1447 = vmatpush2.msra.mxu0 0.0
    %1448 = vmatprep.subr.mxu0 0.0
    %1449 = vmatpush2.msra.mxu0 0.0
    %1450 = vmatprep.subr.mxu0 0.0
    %1451 = vmatpush2.msra.mxu0 0.0
    %1452 = vmatprep.mubr.f32.mxu0 0.0
    %1453 = vmatmul.mubr.f32.gmra.mxu0 %v1386
    %v1454 = vpop.f32.mrf.mxu0
    %v1455 = vadd.f32 0.0, %v1454
    %v1456 = vpop.f32.mrf.mxu0
    %v1457 = vadd.f32 0.0, %v1456
    %1458 = vdwg.mxu0
    %v1459 = vadd.f32 %v1272, %v1455
    %v1460 = vadd.f32 %v1274, %v1457
    %v1461 = vtanh.pop %v1459
    %v1462 = vtanh.pop %v1460
    %v1463 = vmul.f32 %v1461, 0.5
    %v1464 = vmul.f32 %v1462, 0.5
    %v1465 = vadd.f32 %v1463, 0.5
    %v1466 = vadd.f32 %v1464, 0.5
    %v1467 = vmul.f32 %v1465, %v1195
    %1469 = vrot.lane.b32.xlu0 %v1462, 64
    %v1470 = vpop.permute.xlu0 %1469
    %v1472 = vmul.f32 %v1465, %v1470
    %1474 = vrot.lane.b32.xlu0 %v1472, 64
    %v1475 = vpop.permute.xlu0 %1474
    %v1477 = vadd.f32 %v1467, %v1475
    %v1478 = vtanh.pop %v1477
    %1480 = vrot.lane.b32.xlu0 %v1478, 64
    %v1481 = vpop.permute.xlu0 %1480
    %v1483 = vmul.f32 %v1466, %v1481
    %v1485 = vsel %vm324, %v1483, 0
    %1487 = vmatprep.subr.mxu0 0.0
    %1488 = vmatpush1.msra.mxu0 0.0
    %1489 = vmatprep.subr.mxu0 0.0
    %1490 = vmatpush1.msra.mxu0 0.0
    %1491 = vmatprep.subr.mxu0 0.0
    %1492 = vmatpush1.msra.mxu0 0.0
    %1493 = vmatprep.subr.mxu0 0.0
    %1494 = vmatpush1.msra.mxu0 0.0
    %1495 = vmatprep.subr.mxu0 0.0
    %1496 = vmatpush1.msra.mxu0 0.0
    %1497 = vmatprep.subr.mxu0 0.0
    %1498 = vmatpush1.msra.mxu0 0.0
    %1499 = vmatprep.subr.mxu0 0.0
    %1500 = vmatpush1.msra.mxu0 0.0
    %1501 = vmatprep.subr.mxu0 0.0
    %1502 = vmatpush1.msra.mxu0 0.0
    %1503 = vmatprep.subr.mxu0 %v311
    %1504 = vmatpush1.msra.mxu0 %v310
    %1505 = vmatprep.subr.mxu0 %v309
    %1506 = vmatpush1.msra.mxu0 %v308
    %1507 = vmatprep.subr.mxu0 %v307
    %1508 = vmatpush1.msra.mxu0 %v306
    %1509 = vmatprep.subr.mxu0 %v305
    %1510 = vmatpush1.msra.mxu0 %v304
    %1511 = vmatprep.subr.mxu0 %v303
    %1512 = vmatpush1.msra.mxu0 %v302
    %1513 = vmatprep.subr.mxu0 %v301
    %1514 = vmatpush1.msra.mxu0 %v300
    %1515 = vmatprep.subr.mxu0 %v299
    %1516 = vmatpush1.msra.mxu0 %v298
    %1517 = vmatprep.subr.mxu0 %v297
    %1518 = vmatpush1.msra.mxu0 %v296
    %1519 = vmatprep.subr.mxu0 0.0
    %1520 = vmatpush2.msra.mxu0 0.0
    %1521 = vmatprep.subr.mxu0 0.0
    %1522 = vmatpush2.msra.mxu0 0.0
    %1523 = vmatprep.subr.mxu0 0.0
    %1524 = vmatpush2.msra.mxu0 0.0
    %1525 = vmatprep.subr.mxu0 0.0
    %1526 = vmatpush2.msra.mxu0 0.0
    %1527 = vmatprep.subr.mxu0 0.0
    %1528 = vmatpush2.msra.mxu0 0.0
    %1529 = vmatprep.subr.mxu0 0.0
    %1530 = vmatpush2.msra.mxu0 0.0
    %1531 = vmatprep.subr.mxu0 0.0
    %1532 = vmatpush2.msra.mxu0 0.0
    %1533 = vmatprep.subr.mxu0 0.0
    %1534 = vmatpush2.msra.mxu0 0.0
    %1535 = vmatprep.subr.mxu0 0.0
    %1536 = vmatpush2.msra.mxu0 0.0
    %1537 = vmatprep.subr.mxu0 0.0
    %1538 = vmatpush2.msra.mxu0 0.0
    %1539 = vmatprep.subr.mxu0 0.0
    %1540 = vmatpush2.msra.mxu0 0.0
    %1541 = vmatprep.subr.mxu0 0.0
    %1542 = vmatpush2.msra.mxu0 0.0
    %1543 = vmatprep.subr.mxu0 0.0
    %1544 = vmatpush2.msra.mxu0 0.0
    %1545 = vmatprep.subr.mxu0 0.0
    %1546 = vmatpush2.msra.mxu0 0.0
    %1547 = vmatprep.subr.mxu0 0.0
    %1548 = vmatpush2.msra.mxu0 0.0
    %1549 = vmatprep.subr.mxu0 0.0
    %1550 = vmatpush2.msra.mxu0 0.0
    %1551 = vmatprep.mubr.f32.mxu0 0.0
    %1552 = vmatmul.mubr.f32.gmra.mxu0 %v1485
    %v1553 = vpop.f32.mrf.mxu0
    %v1554 = vadd.f32 %v317, %v1553
    %v1555 = vpop.f32.mrf.mxu0
    %v1556 = vadd.f32 %v321, %v1555
    %1557 = vdwg.mxu0
    %s1558 = scalar_lea.vmem [#allocation2], 16
    %v1559 = vld [vmem:[%s1558] sm:$0xf]
    %1560 = vmatprep.subr.mxu0 0.0
    %1561 = vmatpush1.msra.mxu0 0.0
    %1562 = vmatprep.subr.mxu0 0.0
    %1563 = vmatpush1.msra.mxu0 0.0
    %1564 = vmatprep.subr.mxu0 0.0
    %1565 = vmatpush1.msra.mxu0 0.0
    %1566 = vmatprep.subr.mxu0 0.0
    %1567 = vmatpush1.msra.mxu0 0.0
    %1568 = vmatprep.subr.mxu0 0.0
    %1569 = vmatpush1.msra.mxu0 0.0
    %1570 = vmatprep.subr.mxu0 0.0
    %1571 = vmatpush1.msra.mxu0 0.0
    %1572 = vmatprep.subr.mxu0 0.0
    %1573 = vmatpush1.msra.mxu0 0.0
    %1574 = vmatprep.subr.mxu0 0.0
    %1575 = vmatpush1.msra.mxu0 0.0
    %1576 = vmatprep.subr.mxu0 %v415
    %1577 = vmatpush1.msra.mxu0 %v414
    %1578 = vmatprep.subr.mxu0 %v413
    %1579 = vmatpush1.msra.mxu0 %v412
    %1580 = vmatprep.subr.mxu0 %v411
    %1581 = vmatpush1.msra.mxu0 %v410
    %1582 = vmatprep.subr.mxu0 %v409
    %1583 = vmatpush1.msra.mxu0 %v408
    %1584 = vmatprep.subr.mxu0 %v407
    %1585 = vmatpush1.msra.mxu0 %v406
    %1586 = vmatprep.subr.mxu0 %v405
    %1587 = vmatpush1.msra.mxu0 %v404
    %1588 = vmatprep.subr.mxu0 %v403
    %1589 = vmatpush1.msra.mxu0 %v402
    %1590 = vmatprep.subr.mxu0 %v401
    %1591 = vmatpush1.msra.mxu0 %v400
    %1592 = vmatprep.subr.mxu0 0.0
    %1593 = vmatpush2.msra.mxu0 0.0
    %1594 = vmatprep.subr.mxu0 0.0
    %1595 = vmatpush2.msra.mxu0 0.0
    %1596 = vmatprep.subr.mxu0 0.0
    %1597 = vmatpush2.msra.mxu0 0.0
    %1598 = vmatprep.subr.mxu0 0.0
    %1599 = vmatpush2.msra.mxu0 0.0
    %1600 = vmatprep.subr.mxu0 0.0
    %1601 = vmatpush2.msra.mxu0 0.0
    %1602 = vmatprep.subr.mxu0 0.0
    %1603 = vmatpush2.msra.mxu0 0.0
    %1604 = vmatprep.subr.mxu0 0.0
    %1605 = vmatpush2.msra.mxu0 0.0
    %1606 = vmatprep.subr.mxu0 0.0
    %1607 = vmatpush2.msra.mxu0 0.0
    %1608 = vmatprep.subr.mxu0 0.0
    %1609 = vmatpush2.msra.mxu0 0.0
    %1610 = vmatprep.subr.mxu0 0.0
    %1611 = vmatpush2.msra.mxu0 0.0
    %1612 = vmatprep.subr.mxu0 0.0
    %1613 = vmatpush2.msra.mxu0 0.0
    %1614 = vmatprep.subr.mxu0 0.0
    %1615 = vmatpush2.msra.mxu0 0.0
    %1616 = vmatprep.subr.mxu0 0.0
    %1617 = vmatpush2.msra.mxu0 0.0
    %1618 = vmatprep.subr.mxu0 0.0
    %1619 = vmatpush2.msra.mxu0 0.0
    %1620 = vmatprep.subr.mxu0 0.0
    %1621 = vmatpush2.msra.mxu0 0.0
    %1622 = vmatprep.subr.mxu0 0.0
    %1623 = vmatpush2.msra.mxu0 0.0
    %1624 = vmatprep.mubr.f32.mxu0 0.0
    %1625 = vmatmul.mubr.f32.gmra.mxu0 %v1386
    %v1626 = vpop.f32.mrf.mxu0
    %v1627 = vadd.f32 0.0, %v1626
    %v1628 = vpop.f32.mrf.mxu0
    %v1629 = vadd.f32 0.0, %v1628
    %1630 = vdwg.mxu0
    %v1633 = vcombine.low %v1627, %v1629
    %v1635 = vunpack.c.l.s4 1983009808
    %v1636 = vunpack.c.0.s8 %v1635
    %v1637 = vlaneseq
    %v1638 = vshrl.u32 %v1637, 7
    %v1639 = vsub.s32 %v1636, %v1638
    %v1640 = vrot.slane %v1633, %v1639
    %v1642 = vadd.f32 %v1559, %v1640
    %v1643 = vtanh.pop %v1642
    %v1644 = vmul.f32 %v1643, 0.5
    %v1645 = vadd.f32 %v1644, 0.5
    %v1646 = vmul.f32 %v1645, %v1375
    %1648 = vrot.lane.b32.xlu0 %v1643, 64
    %v1649 = vpop.permute.xlu0 %1648
    %v1650 = vrot.slane %v1649, 2
    %v1652 = vmul.f32 %v1645, %v1650
    %1654 = vrot.lane.b32.xlu0 %v1652, 64
    %v1655 = vpop.permute.xlu0 %1654
    %v1657 = vadd.f32 %v1646, %v1655
    %v1658 = vtanh.pop %v1657
    %v1660 = vrot.slane %v1645, 2
    %1663 = vrot.lane.b32.xlu0 %v1658, 64
    %v1664 = vpop.permute.xlu0 %1663
    %v1666 = vmul.f32 %v1660, %v1664
    %v1668 = vsel %vm324, %v1666, 0
    %1670 = vmatprep.subr.mxu0 0.0
    %1671 = vmatpush1.msra.mxu0 0.0
    %1672 = vmatprep.subr.mxu0 0.0
    %1673 = vmatpush1.msra.mxu0 0.0
    %1674 = vmatprep.subr.mxu0 0.0
    %1675 = vmatpush1.msra.mxu0 0.0
    %1676 = vmatprep.subr.mxu0 0.0
    %1677 = vmatpush1.msra.mxu0 0.0
    %1678 = vmatprep.subr.mxu0 0.0
    %1679 = vmatpush1.msra.mxu0 0.0
    %1680 = vmatprep.subr.mxu0 0.0
    %1681 = vmatpush1.msra.mxu0 0.0
    %1682 = vmatprep.subr.mxu0 0.0
    %1683 = vmatpush1.msra.mxu0 0.0
    %1684 = vmatprep.subr.mxu0 0.0
    %1685 = vmatpush1.msra.mxu0 0.0
    %1686 = vmatprep.subr.mxu0 %v538
    %1687 = vmatpush1.msra.mxu0 %v537
    %1688 = vmatprep.subr.mxu0 %v536
    %1689 = vmatpush1.msra.mxu0 %v535
    %1690 = vmatprep.subr.mxu0 %v534
    %1691 = vmatpush1.msra.mxu0 %v533
    %1692 = vmatprep.subr.mxu0 %v532
    %1693 = vmatpush1.msra.mxu0 %v531
    %1694 = vmatprep.subr.mxu0 %v530
    %1695 = vmatpush1.msra.mxu0 %v529
    %1696 = vmatprep.subr.mxu0 %v528
    %1697 = vmatpush1.msra.mxu0 %v527
    %1698 = vmatprep.subr.mxu0 %v526
    %1699 = vmatpush1.msra.mxu0 %v525
    %1700 = vmatprep.subr.mxu0 %v524
    %1701 = vmatpush1.msra.mxu0 %v523
    %1702 = vmatprep.subr.mxu0 0.0
    %1703 = vmatpush2.msra.mxu0 0.0
    %1704 = vmatprep.subr.mxu0 0.0
    %1705 = vmatpush2.msra.mxu0 0.0
    %1706 = vmatprep.subr.mxu0 0.0
    %1707 = vmatpush2.msra.mxu0 0.0
    %1708 = vmatprep.subr.mxu0 0.0
    %1709 = vmatpush2.msra.mxu0 0.0
    %1710 = vmatprep.subr.mxu0 0.0
    %1711 = vmatpush2.msra.mxu0 0.0
    %1712 = vmatprep.subr.mxu0 0.0
    %1713 = vmatpush2.msra.mxu0 0.0
    %1714 = vmatprep.subr.mxu0 0.0
    %1715 = vmatpush2.msra.mxu0 0.0
    %1716 = vmatprep.subr.mxu0 0.0
    %1717 = vmatpush2.msra.mxu0 0.0
    %1718 = vmatprep.subr.mxu0 0.0
    %1719 = vmatpush2.msra.mxu0 0.0
    %1720 = vmatprep.subr.mxu0 0.0
    %1721 = vmatpush2.msra.mxu0 0.0
    %1722 = vmatprep.subr.mxu0 0.0
    %1723 = vmatpush2.msra.mxu0 0.0
    %1724 = vmatprep.subr.mxu0 0.0
    %1725 = vmatpush2.msra.mxu0 0.0
    %1726 = vmatprep.subr.mxu0 0.0
    %1727 = vmatpush2.msra.mxu0 0.0
    %1728 = vmatprep.subr.mxu0 0.0
    %1729 = vmatpush2.msra.mxu0 0.0
    %1730 = vmatprep.subr.mxu0 0.0
    %1731 = vmatpush2.msra.mxu0 0.0
    %1732 = vmatprep.subr.mxu0 0.0
    %1733 = vmatpush2.msra.mxu0 0.0
    %1734 = vmatprep.mubr.f32.mxu0 0.0
    %1735 = vmatmul.mubr.f32.gmra.mxu0 %v1668
    %v1736 = vpop.f32.mrf.mxu0
    %v1737 = vadd.f32 0.0, %v1736
    %v1738 = vpop.f32.mrf.mxu0
    %v1739 = vadd.f32 0.0, %v1738
    %1740 = vdwg.mxu0
    %v1741 = vadd.f32 %v1554, %v1737
    %v1742 = vadd.f32 %v1556, %v1739
    %v1743 = vtanh.pop %v1741
    %v1744 = vtanh.pop %v1742
    %v1745 = vmul.f32 %v1743, 0.5
    %v1746 = vmul.f32 %v1744, 0.5
    %v1747 = vadd.f32 %v1745, 0.5
    %v1748 = vadd.f32 %v1746, 0.5
    %v1749 = vmul.f32 %v1747, %v1477
    %1751 = vrot.lane.b32.xlu0 %v1744, 64
    %v1752 = vpop.permute.xlu0 %1751
    %v1754 = vmul.f32 %v1747, %v1752
    %1756 = vrot.lane.b32.xlu0 %v1754, 64
    %v1757 = vpop.permute.xlu0 %1756
    %v1759 = vadd.f32 %v1749, %v1757
    %v1760 = vtanh.pop %v1759
    %1762 = vrot.lane.b32.xlu0 %v1760, 64
    %v1763 = vpop.permute.xlu0 %1762
    %v1765 = vmul.f32 %v1748, %v1763
    %v1767 = vsel %vm324, %v1765, 0
    %1769 = vmatprep.subr.mxu0 0.0
    %1770 = vmatpush1.msra.mxu0 0.0
    %1771 = vmatprep.subr.mxu0 0.0
    %1772 = vmatpush1.msra.mxu0 0.0
    %1773 = vmatprep.subr.mxu0 0.0
    %1774 = vmatpush1.msra.mxu0 0.0
    %1775 = vmatprep.subr.mxu0 0.0
    %1776 = vmatpush1.msra.mxu0 0.0
    %1777 = vmatprep.subr.mxu0 0.0
    %1778 = vmatpush1.msra.mxu0 0.0
    %1779 = vmatprep.subr.mxu0 0.0
    %1780 = vmatpush1.msra.mxu0 0.0
    %1781 = vmatprep.subr.mxu0 0.0
    %1782 = vmatpush1.msra.mxu0 0.0
    %1783 = vmatprep.subr.mxu0 0.0
    %1784 = vmatpush1.msra.mxu0 0.0
    %1785 = vmatprep.subr.mxu0 %v311
    %1786 = vmatpush1.msra.mxu0 %v310
    %1787 = vmatprep.subr.mxu0 %v309
    %1788 = vmatpush1.msra.mxu0 %v308
    %1789 = vmatprep.subr.mxu0 %v307
    %1790 = vmatpush1.msra.mxu0 %v306
    %1791 = vmatprep.subr.mxu0 %v305
    %1792 = vmatpush1.msra.mxu0 %v304
    %1793 = vmatprep.subr.mxu0 %v303
    %1794 = vmatpush1.msra.mxu0 %v302
    %1795 = vmatprep.subr.mxu0 %v301
    %1796 = vmatpush1.msra.mxu0 %v300
    %1797 = vmatprep.subr.mxu0 %v299
    %1798 = vmatpush1.msra.mxu0 %v298
    %1799 = vmatprep.subr.mxu0 %v297
    %1800 = vmatpush1.msra.mxu0 %v296
    %1801 = vmatprep.subr.mxu0 0.0
    %1802 = vmatpush2.msra.mxu0 0.0
    %1803 = vmatprep.subr.mxu0 0.0
    %1804 = vmatpush2.msra.mxu0 0.0
    %1805 = vmatprep.subr.mxu0 0.0
    %1806 = vmatpush2.msra.mxu0 0.0
    %1807 = vmatprep.subr.mxu0 0.0
    %1808 = vmatpush2.msra.mxu0 0.0
    %1809 = vmatprep.subr.mxu0 0.0
    %1810 = vmatpush2.msra.mxu0 0.0
    %1811 = vmatprep.subr.mxu0 0.0
    %1812 = vmatpush2.msra.mxu0 0.0
    %1813 = vmatprep.subr.mxu0 0.0
    %1814 = vmatpush2.msra.mxu0 0.0
    %1815 = vmatprep.subr.mxu0 0.0
    %1816 = vmatpush2.msra.mxu0 0.0
    %1817 = vmatprep.subr.mxu0 0.0
    %1818 = vmatpush2.msra.mxu0 0.0
    %1819 = vmatprep.subr.mxu0 0.0
    %1820 = vmatpush2.msra.mxu0 0.0
    %1821 = vmatprep.subr.mxu0 0.0
    %1822 = vmatpush2.msra.mxu0 0.0
    %1823 = vmatprep.subr.mxu0 0.0
    %1824 = vmatpush2.msra.mxu0 0.0
    %1825 = vmatprep.subr.mxu0 0.0
    %1826 = vmatpush2.msra.mxu0 0.0
    %1827 = vmatprep.subr.mxu0 0.0
    %1828 = vmatpush2.msra.mxu0 0.0
    %1829 = vmatprep.subr.mxu0 0.0
    %1830 = vmatpush2.msra.mxu0 0.0
    %1831 = vmatprep.subr.mxu0 0.0
    %1832 = vmatpush2.msra.mxu0 0.0
    %1833 = vmatprep.mubr.f32.mxu0 0.0
    %1834 = vmatmul.mubr.f32.gmra.mxu0 %v1767
    %v1835 = vpop.f32.mrf.mxu0
    %v1836 = vadd.f32 %v317, %v1835
    %v1837 = vpop.f32.mrf.mxu0
    %v1838 = vadd.f32 %v321, %v1837
    %1839 = vdwg.mxu0
    %s1840 = scalar_lea.vmem [#allocation2], 20
    %v1841 = vld [vmem:[%s1840] sm:$0xf]
    %1842 = vmatprep.subr.mxu0 0.0
    %1843 = vmatpush1.msra.mxu0 0.0
    %1844 = vmatprep.subr.mxu0 0.0
    %1845 = vmatpush1.msra.mxu0 0.0
    %1846 = vmatprep.subr.mxu0 0.0
    %1847 = vmatpush1.msra.mxu0 0.0
    %1848 = vmatprep.subr.mxu0 0.0
    %1849 = vmatpush1.msra.mxu0 0.0
    %1850 = vmatprep.subr.mxu0 0.0
    %1851 = vmatpush1.msra.mxu0 0.0
    %1852 = vmatprep.subr.mxu0 0.0
    %1853 = vmatpush1.msra.mxu0 0.0
    %1854 = vmatprep.subr.mxu0 0.0
    %1855 = vmatpush1.msra.mxu0 0.0
    %1856 = vmatprep.subr.mxu0 0.0
    %1857 = vmatpush1.msra.mxu0 0.0
    %1858 = vmatprep.subr.mxu0 %v415
    %1859 = vmatpush1.msra.mxu0 %v414
    %1860 = vmatprep.subr.mxu0 %v413
    %1861 = vmatpush1.msra.mxu0 %v412
    %1862 = vmatprep.subr.mxu0 %v411
    %1863 = vmatpush1.msra.mxu0 %v410
    %1864 = vmatprep.subr.mxu0 %v409
    %1865 = vmatpush1.msra.mxu0 %v408
    %1866 = vmatprep.subr.mxu0 %v407
    %1867 = vmatpush1.msra.mxu0 %v406
    %1868 = vmatprep.subr.mxu0 %v405
    %1869 = vmatpush1.msra.mxu0 %v404
    %1870 = vmatprep.subr.mxu0 %v403
    %1871 = vmatpush1.msra.mxu0 %v402
    %1872 = vmatprep.subr.mxu0 %v401
    %1873 = vmatpush1.msra.mxu0 %v400
    %1874 = vmatprep.subr.mxu0 0.0
    %1875 = vmatpush2.msra.mxu0 0.0
    %1876 = vmatprep.subr.mxu0 0.0
    %1877 = vmatpush2.msra.mxu0 0.0
    %1878 = vmatprep.subr.mxu0 0.0
    %1879 = vmatpush2.msra.mxu0 0.0
    %1880 = vmatprep.subr.mxu0 0.0
    %1881 = vmatpush2.msra.mxu0 0.0
    %1882 = vmatprep.subr.mxu0 0.0
    %1883 = vmatpush2.msra.mxu0 0.0
    %1884 = vmatprep.subr.mxu0 0.0
    %1885 = vmatpush2.msra.mxu0 0.0
    %1886 = vmatprep.subr.mxu0 0.0
    %1887 = vmatpush2.msra.mxu0 0.0
    %1888 = vmatprep.subr.mxu0 0.0
    %1889 = vmatpush2.msra.mxu0 0.0
    %1890 = vmatprep.subr.mxu0 0.0
    %1891 = vmatpush2.msra.mxu0 0.0
    %1892 = vmatprep.subr.mxu0 0.0
    %1893 = vmatpush2.msra.mxu0 0.0
    %1894 = vmatprep.subr.mxu0 0.0
    %1895 = vmatpush2.msra.mxu0 0.0
    %1896 = vmatprep.subr.mxu0 0.0
    %1897 = vmatpush2.msra.mxu0 0.0
    %1898 = vmatprep.subr.mxu0 0.0
    %1899 = vmatpush2.msra.mxu0 0.0
    %1900 = vmatprep.subr.mxu0 0.0
    %1901 = vmatpush2.msra.mxu0 0.0
    %1902 = vmatprep.subr.mxu0 0.0
    %1903 = vmatpush2.msra.mxu0 0.0
    %1904 = vmatprep.subr.mxu0 0.0
    %1905 = vmatpush2.msra.mxu0 0.0
    %1906 = vmatprep.mubr.f32.mxu0 0.0
    %1907 = vmatmul.mubr.f32.gmra.mxu0 %v1668
    %v1908 = vpop.f32.mrf.mxu0
    %v1909 = vadd.f32 0.0, %v1908
    %v1910 = vpop.f32.mrf.mxu0
    %v1911 = vadd.f32 0.0, %v1910
    %1912 = vdwg.mxu0
    %v1915 = vcombine.low %v1909, %v1911
    %v1917 = vunpack.c.l.s4 1983009808
    %v1918 = vunpack.c.0.s8 %v1917
    %v1919 = vlaneseq
    %v1920 = vshrl.u32 %v1919, 7
    %v1921 = vsub.s32 %v1918, %v1920
    %v1922 = vrot.slane %v1915, %v1921
    %v1924 = vadd.f32 %v1841, %v1922
    %v1925 = vtanh.pop %v1924
    %v1926 = vmul.f32 %v1925, 0.5
    %v1927 = vadd.f32 %v1926, 0.5
    %v1928 = vmul.f32 %v1927, %v1657
    %1930 = vrot.lane.b32.xlu0 %v1925, 64
    %v1931 = vpop.permute.xlu0 %1930
    %v1932 = vrot.slane %v1931, 2
    %v1934 = vmul.f32 %v1927, %v1932
    %1936 = vrot.lane.b32.xlu0 %v1934, 64
    %v1937 = vpop.permute.xlu0 %1936
    %v1939 = vadd.f32 %v1928, %v1937
    %v1940 = vtanh.pop %v1939
    %v1942 = vrot.slane %v1927, 2
    %1945 = vrot.lane.b32.xlu0 %v1940, 64
    %v1946 = vpop.permute.xlu0 %1945
    %v1948 = vmul.f32 %v1942, %v1946
    %v1950 = vsel %vm324, %v1948, 0
    %1952 = vmatprep.subr.mxu0 0.0
    %1953 = vmatpush1.msra.mxu0 0.0
    %1954 = vmatprep.subr.mxu0 0.0
    %1955 = vmatpush1.msra.mxu0 0.0
    %1956 = vmatprep.subr.mxu0 0.0
    %1957 = vmatpush1.msra.mxu0 0.0
    %1958 = vmatprep.subr.mxu0 0.0
    %1959 = vmatpush1.msra.mxu0 0.0
    %1960 = vmatprep.subr.mxu0 0.0
    %1961 = vmatpush1.msra.mxu0 0.0
    %1962 = vmatprep.subr.mxu0 0.0
    %1963 = vmatpush1.msra.mxu0 0.0
    %1964 = vmatprep.subr.mxu0 0.0
    %1965 = vmatpush1.msra.mxu0 0.0
    %1966 = vmatprep.subr.mxu0 0.0
    %1967 = vmatpush1.msra.mxu0 0.0
    %1968 = vmatprep.subr.mxu0 %v538
    %1969 = vmatpush1.msra.mxu0 %v537
    %1970 = vmatprep.subr.mxu0 %v536
    %1971 = vmatpush1.msra.mxu0 %v535
    %1972 = vmatprep.subr.mxu0 %v534
    %1973 = vmatpush1.msra.mxu0 %v533
    %1974 = vmatprep.subr.mxu0 %v532
    %1975 = vmatpush1.msra.mxu0 %v531
    %1976 = vmatprep.subr.mxu0 %v530
    %1977 = vmatpush1.msra.mxu0 %v529
    %1978 = vmatprep.subr.mxu0 %v528
    %1979 = vmatpush1.msra.mxu0 %v527
    %1980 = vmatprep.subr.mxu0 %v526
    %1981 = vmatpush1.msra.mxu0 %v525
    %1982 = vmatprep.subr.mxu0 %v524
    %1983 = vmatpush1.msra.mxu0 %v523
    %1984 = vmatprep.subr.mxu0 0.0
    %1985 = vmatpush2.msra.mxu0 0.0
    %1986 = vmatprep.subr.mxu0 0.0
    %1987 = vmatpush2.msra.mxu0 0.0
    %1988 = vmatprep.subr.mxu0 0.0
    %1989 = vmatpush2.msra.mxu0 0.0
    %1990 = vmatprep.subr.mxu0 0.0
    %1991 = vmatpush2.msra.mxu0 0.0
    %1992 = vmatprep.subr.mxu0 0.0
    %1993 = vmatpush2.msra.mxu0 0.0
    %1994 = vmatprep.subr.mxu0 0.0
    %1995 = vmatpush2.msra.mxu0 0.0
    %1996 = vmatprep.subr.mxu0 0.0
    %1997 = vmatpush2.msra.mxu0 0.0
    %1998 = vmatprep.subr.mxu0 0.0
    %1999 = vmatpush2.msra.mxu0 0.0
    %2000 = vmatprep.subr.mxu0 0.0
    %2001 = vmatpush2.msra.mxu0 0.0
    %2002 = vmatprep.subr.mxu0 0.0
    %2003 = vmatpush2.msra.mxu0 0.0
    %2004 = vmatprep.subr.mxu0 0.0
    %2005 = vmatpush2.msra.mxu0 0.0
    %2006 = vmatprep.subr.mxu0 0.0
    %2007 = vmatpush2.msra.mxu0 0.0
    %2008 = vmatprep.subr.mxu0 0.0
    %2009 = vmatpush2.msra.mxu0 0.0
    %2010 = vmatprep.subr.mxu0 0.0
    %2011 = vmatpush2.msra.mxu0 0.0
    %2012 = vmatprep.subr.mxu0 0.0
    %2013 = vmatpush2.msra.mxu0 0.0
    %2014 = vmatprep.subr.mxu0 0.0
    %2015 = vmatpush2.msra.mxu0 0.0
    %2016 = vmatprep.mubr.f32.mxu0 0.0
    %2017 = vmatmul.mubr.f32.gmra.mxu0 %v1950
    %v2018 = vpop.f32.mrf.mxu0
    %v2019 = vadd.f32 0.0, %v2018
    %v2020 = vpop.f32.mrf.mxu0
    %v2021 = vadd.f32 0.0, %v2020
    %2022 = vdwg.mxu0
    %v2023 = vadd.f32 %v1836, %v2019
    %v2024 = vadd.f32 %v1838, %v2021
    %v2025 = vtanh.pop %v2023
    %v2026 = vtanh.pop %v2024
    %v2027 = vmul.f32 %v2025, 0.5
    %v2028 = vmul.f32 %v2026, 0.5
    %v2029 = vadd.f32 %v2027, 0.5
    %v2030 = vadd.f32 %v2028, 0.5
    %v2031 = vmul.f32 %v2029, %v1759
    %2033 = vrot.lane.b32.xlu0 %v2026, 64
    %v2034 = vpop.permute.xlu0 %2033
    %v2036 = vmul.f32 %v2029, %v2034
    %2038 = vrot.lane.b32.xlu0 %v2036, 64
    %v2039 = vpop.permute.xlu0 %2038
    %v2041 = vadd.f32 %v2031, %v2039
    %v2042 = vtanh.pop %v2041
    %2044 = vrot.lane.b32.xlu0 %v2042, 64
    %v2045 = vpop.permute.xlu0 %2044
    %v2047 = vmul.f32 %v2030, %v2045
    %v2049 = vsel %vm324, %v2047, 0
    %2051 = vmatprep.subr.mxu0 0.0
    %2052 = vmatpush1.msra.mxu0 0.0
    %2053 = vmatprep.subr.mxu0 0.0
    %2054 = vmatpush1.msra.mxu0 0.0
    %2055 = vmatprep.subr.mxu0 0.0
    %2056 = vmatpush1.msra.mxu0 0.0
    %2057 = vmatprep.subr.mxu0 0.0
    %2058 = vmatpush1.msra.mxu0 0.0
    %2059 = vmatprep.subr.mxu0 0.0
    %2060 = vmatpush1.msra.mxu0 0.0
    %2061 = vmatprep.subr.mxu0 0.0
    %2062 = vmatpush1.msra.mxu0 0.0
    %2063 = vmatprep.subr.mxu0 0.0
    %2064 = vmatpush1.msra.mxu0 0.0
    %2065 = vmatprep.subr.mxu0 0.0
    %2066 = vmatpush1.msra.mxu0 0.0
    %2067 = vmatprep.subr.mxu0 %v311
    %2068 = vmatpush1.msra.mxu0 %v310
    %2069 = vmatprep.subr.mxu0 %v309
    %2070 = vmatpush1.msra.mxu0 %v308
    %2071 = vmatprep.subr.mxu0 %v307
    %2072 = vmatpush1.msra.mxu0 %v306
    %2073 = vmatprep.subr.mxu0 %v305
    %2074 = vmatpush1.msra.mxu0 %v304
    %2075 = vmatprep.subr.mxu0 %v303
    %2076 = vmatpush1.msra.mxu0 %v302
    %2077 = vmatprep.subr.mxu0 %v301
    %2078 = vmatpush1.msra.mxu0 %v300
    %2079 = vmatprep.subr.mxu0 %v299
    %2080 = vmatpush1.msra.mxu0 %v298
    %2081 = vmatprep.subr.mxu0 %v297
    %2082 = vmatpush1.msra.mxu0 %v296
    %2083 = vmatprep.subr.mxu0 0.0
    %2084 = vmatpush2.msra.mxu0 0.0
    %2085 = vmatprep.subr.mxu0 0.0
    %2086 = vmatpush2.msra.mxu0 0.0
    %2087 = vmatprep.subr.mxu0 0.0
    %2088 = vmatpush2.msra.mxu0 0.0
    %2089 = vmatprep.subr.mxu0 0.0
    %2090 = vmatpush2.msra.mxu0 0.0
    %2091 = vmatprep.subr.mxu0 0.0
    %2092 = vmatpush2.msra.mxu0 0.0
    %2093 = vmatprep.subr.mxu0 0.0
    %2094 = vmatpush2.msra.mxu0 0.0
    %2095 = vmatprep.subr.mxu0 0.0
    %2096 = vmatpush2.msra.mxu0 0.0
    %2097 = vmatprep.subr.mxu0 0.0
    %2098 = vmatpush2.msra.mxu0 0.0
    %2099 = vmatprep.subr.mxu0 0.0
    %2100 = vmatpush2.msra.mxu0 0.0
    %2101 = vmatprep.subr.mxu0 0.0
    %2102 = vmatpush2.msra.mxu0 0.0
    %2103 = vmatprep.subr.mxu0 0.0
    %2104 = vmatpush2.msra.mxu0 0.0
    %2105 = vmatprep.subr.mxu0 0.0
    %2106 = vmatpush2.msra.mxu0 0.0
    %2107 = vmatprep.subr.mxu0 0.0
    %2108 = vmatpush2.msra.mxu0 0.0
    %2109 = vmatprep.subr.mxu0 0.0
    %2110 = vmatpush2.msra.mxu0 0.0
    %2111 = vmatprep.subr.mxu0 0.0
    %2112 = vmatpush2.msra.mxu0 0.0
    %2113 = vmatprep.subr.mxu0 0.0
    %2114 = vmatpush2.msra.mxu0 0.0
    %2115 = vmatprep.mubr.f32.mxu0 0.0
    %2116 = vmatmul.mubr.f32.gmra.mxu0 %v2049
    %v2117 = vpop.f32.mrf.mxu0
    %v2118 = vadd.f32 %v317, %v2117
    %v2119 = vpop.f32.mrf.mxu0
    %v2120 = vadd.f32 %v321, %v2119
    %2121 = vdwg.mxu0
    %s2122 = scalar_lea.vmem [#allocation2], 24
    %v2123 = vld [vmem:[%s2122] sm:$0xf]
    %2124 = vmatprep.subr.mxu0 0.0
    %2125 = vmatpush1.msra.mxu0 0.0
    %2126 = vmatprep.subr.mxu0 0.0
    %2127 = vmatpush1.msra.mxu0 0.0
    %2128 = vmatprep.subr.mxu0 0.0
    %2129 = vmatpush1.msra.mxu0 0.0
    %2130 = vmatprep.subr.mxu0 0.0
    %2131 = vmatpush1.msra.mxu0 0.0
    %2132 = vmatprep.subr.mxu0 0.0
    %2133 = vmatpush1.msra.mxu0 0.0
    %2134 = vmatprep.subr.mxu0 0.0
    %2135 = vmatpush1.msra.mxu0 0.0
    %2136 = vmatprep.subr.mxu0 0.0
    %2137 = vmatpush1.msra.mxu0 0.0
    %2138 = vmatprep.subr.mxu0 0.0
    %2139 = vmatpush1.msra.mxu0 0.0
    %2140 = vmatprep.subr.mxu0 %v415
    %2141 = vmatpush1.msra.mxu0 %v414
    %2142 = vmatprep.subr.mxu0 %v413
    %2143 = vmatpush1.msra.mxu0 %v412
    %2144 = vmatprep.subr.mxu0 %v411
    %2145 = vmatpush1.msra.mxu0 %v410
    %2146 = vmatprep.subr.mxu0 %v409
    %2147 = vmatpush1.msra.mxu0 %v408
    %2148 = vmatprep.subr.mxu0 %v407
    %2149 = vmatpush1.msra.mxu0 %v406
    %2150 = vmatprep.subr.mxu0 %v405
    %2151 = vmatpush1.msra.mxu0 %v404
    %2152 = vmatprep.subr.mxu0 %v403
    %2153 = vmatpush1.msra.mxu0 %v402
    %2154 = vmatprep.subr.mxu0 %v401
    %2155 = vmatpush1.msra.mxu0 %v400
    %2156 = vmatprep.subr.mxu0 0.0
    %2157 = vmatpush2.msra.mxu0 0.0
    %2158 = vmatprep.subr.mxu0 0.0
    %2159 = vmatpush2.msra.mxu0 0.0
    %2160 = vmatprep.subr.mxu0 0.0
    %2161 = vmatpush2.msra.mxu0 0.0
    %2162 = vmatprep.subr.mxu0 0.0
    %2163 = vmatpush2.msra.mxu0 0.0
    %2164 = vmatprep.subr.mxu0 0.0
    %2165 = vmatpush2.msra.mxu0 0.0
    %2166 = vmatprep.subr.mxu0 0.0
    %2167 = vmatpush2.msra.mxu0 0.0
    %2168 = vmatprep.subr.mxu0 0.0
    %2169 = vmatpush2.msra.mxu0 0.0
    %2170 = vmatprep.subr.mxu0 0.0
    %2171 = vmatpush2.msra.mxu0 0.0
    %2172 = vmatprep.subr.mxu0 0.0
    %2173 = vmatpush2.msra.mxu0 0.0
    %2174 = vmatprep.subr.mxu0 0.0
    %2175 = vmatpush2.msra.mxu0 0.0
    %2176 = vmatprep.subr.mxu0 0.0
    %2177 = vmatpush2.msra.mxu0 0.0
    %2178 = vmatprep.subr.mxu0 0.0
    %2179 = vmatpush2.msra.mxu0 0.0
    %2180 = vmatprep.subr.mxu0 0.0
    %2181 = vmatpush2.msra.mxu0 0.0
    %2182 = vmatprep.subr.mxu0 0.0
    %2183 = vmatpush2.msra.mxu0 0.0
    %2184 = vmatprep.subr.mxu0 0.0
    %2185 = vmatpush2.msra.mxu0 0.0
    %2186 = vmatprep.subr.mxu0 0.0
    %2187 = vmatpush2.msra.mxu0 0.0
    %2188 = vmatprep.mubr.f32.mxu0 0.0
    %2189 = vmatmul.mubr.f32.gmra.mxu0 %v1950
    %v2190 = vpop.f32.mrf.mxu0
    %v2191 = vadd.f32 0.0, %v2190
    %v2192 = vpop.f32.mrf.mxu0
    %v2193 = vadd.f32 0.0, %v2192
    %2194 = vdwg.mxu0
    %v2197 = vcombine.low %v2191, %v2193
    %v2199 = vunpack.c.l.s4 1983009808
    %v2200 = vunpack.c.0.s8 %v2199
    %v2201 = vlaneseq
    %v2202 = vshrl.u32 %v2201, 7
    %v2203 = vsub.s32 %v2200, %v2202
    %v2204 = vrot.slane %v2197, %v2203
    %v2206 = vadd.f32 %v2123, %v2204
    %v2207 = vtanh.pop %v2206
    %v2208 = vmul.f32 %v2207, 0.5
    %v2209 = vadd.f32 %v2208, 0.5
    %v2210 = vmul.f32 %v2209, %v1939
    %2212 = vrot.lane.b32.xlu0 %v2207, 64
    %v2213 = vpop.permute.xlu0 %2212
    %v2214 = vrot.slane %v2213, 2
    %v2216 = vmul.f32 %v2209, %v2214
    %2218 = vrot.lane.b32.xlu0 %v2216, 64
    %v2219 = vpop.permute.xlu0 %2218
    %v2221 = vadd.f32 %v2210, %v2219
    %v2222 = vtanh.pop %v2221
    %v2224 = vrot.slane %v2209, 2
    %2227 = vrot.lane.b32.xlu0 %v2222, 64
    %v2228 = vpop.permute.xlu0 %2227
    %v2230 = vmul.f32 %v2224, %v2228
    %v2232 = vsel %vm324, %v2230, 0
    %2234 = vmatprep.subr.mxu0 0.0
    %2235 = vmatpush1.msra.mxu0 0.0
    %2236 = vmatprep.subr.mxu0 0.0
    %2237 = vmatpush1.msra.mxu0 0.0
    %2238 = vmatprep.subr.mxu0 0.0
    %2239 = vmatpush1.msra.mxu0 0.0
    %2240 = vmatprep.subr.mxu0 0.0
    %2241 = vmatpush1.msra.mxu0 0.0
    %2242 = vmatprep.subr.mxu0 0.0
    %2243 = vmatpush1.msra.mxu0 0.0
    %2244 = vmatprep.subr.mxu0 0.0
    %2245 = vmatpush1.msra.mxu0 0.0
    %2246 = vmatprep.subr.mxu0 0.0
    %2247 = vmatpush1.msra.mxu0 0.0
    %2248 = vmatprep.subr.mxu0 0.0
    %2249 = vmatpush1.msra.mxu0 0.0
    %2250 = vmatprep.subr.mxu0 %v538
    %2251 = vmatpush1.msra.mxu0 %v537
    %2252 = vmatprep.subr.mxu0 %v536
    %2253 = vmatpush1.msra.mxu0 %v535
    %2254 = vmatprep.subr.mxu0 %v534
    %2255 = vmatpush1.msra.mxu0 %v533
    %2256 = vmatprep.subr.mxu0 %v532
    %2257 = vmatpush1.msra.mxu0 %v531
    %2258 = vmatprep.subr.mxu0 %v530
    %2259 = vmatpush1.msra.mxu0 %v529
    %2260 = vmatprep.subr.mxu0 %v528
    %2261 = vmatpush1.msra.mxu0 %v527
    %2262 = vmatprep.subr.mxu0 %v526
    %2263 = vmatpush1.msra.mxu0 %v525
    %2264 = vmatprep.subr.mxu0 %v524
    %2265 = vmatpush1.msra.mxu0 %v523
    %2266 = vmatprep.subr.mxu0 0.0
    %2267 = vmatpush2.msra.mxu0 0.0
    %2268 = vmatprep.subr.mxu0 0.0
    %2269 = vmatpush2.msra.mxu0 0.0
    %2270 = vmatprep.subr.mxu0 0.0
    %2271 = vmatpush2.msra.mxu0 0.0
    %2272 = vmatprep.subr.mxu0 0.0
    %2273 = vmatpush2.msra.mxu0 0.0
    %2274 = vmatprep.subr.mxu0 0.0
    %2275 = vmatpush2.msra.mxu0 0.0
    %2276 = vmatprep.subr.mxu0 0.0
    %2277 = vmatpush2.msra.mxu0 0.0
    %2278 = vmatprep.subr.mxu0 0.0
    %2279 = vmatpush2.msra.mxu0 0.0
    %2280 = vmatprep.subr.mxu0 0.0
    %2281 = vmatpush2.msra.mxu0 0.0
    %2282 = vmatprep.subr.mxu0 0.0
    %2283 = vmatpush2.msra.mxu0 0.0
    %2284 = vmatprep.subr.mxu0 0.0
    %2285 = vmatpush2.msra.mxu0 0.0
    %2286 = vmatprep.subr.mxu0 0.0
    %2287 = vmatpush2.msra.mxu0 0.0
    %2288 = vmatprep.subr.mxu0 0.0
    %2289 = vmatpush2.msra.mxu0 0.0
    %2290 = vmatprep.subr.mxu0 0.0
    %2291 = vmatpush2.msra.mxu0 0.0
    %2292 = vmatprep.subr.mxu0 0.0
    %2293 = vmatpush2.msra.mxu0 0.0
    %2294 = vmatprep.subr.mxu0 0.0
    %2295 = vmatpush2.msra.mxu0 0.0
    %2296 = vmatprep.subr.mxu0 0.0
    %2297 = vmatpush2.msra.mxu0 0.0
    %2298 = vmatprep.mubr.f32.mxu0 0.0
    %2299 = vmatmul.mubr.f32.gmra.mxu0 %v2232
    %v2300 = vpop.f32.mrf.mxu0
    %v2301 = vadd.f32 0.0, %v2300
    %v2302 = vpop.f32.mrf.mxu0
    %v2303 = vadd.f32 0.0, %v2302
    %2304 = vdwg.mxu0
    %v2305 = vadd.f32 %v2118, %v2301
    %v2306 = vadd.f32 %v2120, %v2303
    %v2307 = vtanh.pop %v2305
    %v2308 = vtanh.pop %v2306
    %v2309 = vmul.f32 %v2307, 0.5
    %v2310 = vmul.f32 %v2308, 0.5
    %v2311 = vadd.f32 %v2309, 0.5
    %v2312 = vadd.f32 %v2310, 0.5
    %v2313 = vmul.f32 %v2311, %v2041
    %2315 = vrot.lane.b32.xlu0 %v2308, 64
    %v2316 = vpop.permute.xlu0 %2315
    %v2318 = vmul.f32 %v2311, %v2316
    %2320 = vrot.lane.b32.xlu0 %v2318, 64
    %v2321 = vpop.permute.xlu0 %2320
    %v2323 = vadd.f32 %v2313, %v2321
    %v2324 = vtanh.pop %v2323
    %2326 = vrot.lane.b32.xlu0 %v2324, 64
    %v2327 = vpop.permute.xlu0 %2326
    %v2329 = vmul.f32 %v2312, %v2327
    %v2331 = vsel %vm324, %v2329, 0
    %2333 = vmatprep.subr.mxu0 0.0
    %2334 = vmatpush1.msra.mxu0 0.0
    %2335 = vmatprep.subr.mxu0 0.0
    %2336 = vmatpush1.msra.mxu0 0.0
    %2337 = vmatprep.subr.mxu0 0.0
    %2338 = vmatpush1.msra.mxu0 0.0
    %2339 = vmatprep.subr.mxu0 0.0
    %2340 = vmatpush1.msra.mxu0 0.0
    %2341 = vmatprep.subr.mxu0 0.0
    %2342 = vmatpush1.msra.mxu0 0.0
    %2343 = vmatprep.subr.mxu0 0.0
    %2344 = vmatpush1.msra.mxu0 0.0
    %2345 = vmatprep.subr.mxu0 0.0
    %2346 = vmatpush1.msra.mxu0 0.0
    %2347 = vmatprep.subr.mxu0 0.0
    %2348 = vmatpush1.msra.mxu0 0.0
    %2349 = vmatprep.subr.mxu0 %v311
    %2350 = vmatpush1.msra.mxu0 %v310
    %2351 = vmatprep.subr.mxu0 %v309
    %2352 = vmatpush1.msra.mxu0 %v308
    %2353 = vmatprep.subr.mxu0 %v307
    %2354 = vmatpush1.msra.mxu0 %v306
    %2355 = vmatprep.subr.mxu0 %v305
    %2356 = vmatpush1.msra.mxu0 %v304
    %2357 = vmatprep.subr.mxu0 %v303
    %2358 = vmatpush1.msra.mxu0 %v302
    %2359 = vmatprep.subr.mxu0 %v301
    %2360 = vmatpush1.msra.mxu0 %v300
    %2361 = vmatprep.subr.mxu0 %v299
    %2362 = vmatpush1.msra.mxu0 %v298
    %2363 = vmatprep.subr.mxu0 %v297
    %2364 = vmatpush1.msra.mxu0 %v296
    %2365 = vmatprep.subr.mxu0 0.0
    %2366 = vmatpush2.msra.mxu0 0.0
    %2367 = vmatprep.subr.mxu0 0.0
    %2368 = vmatpush2.msra.mxu0 0.0
    %2369 = vmatprep.subr.mxu0 0.0
    %2370 = vmatpush2.msra.mxu0 0.0
    %2371 = vmatprep.subr.mxu0 0.0
    %2372 = vmatpush2.msra.mxu0 0.0
    %2373 = vmatprep.subr.mxu0 0.0
    %2374 = vmatpush2.msra.mxu0 0.0
    %2375 = vmatprep.subr.mxu0 0.0
    %2376 = vmatpush2.msra.mxu0 0.0
    %2377 = vmatprep.subr.mxu0 0.0
    %2378 = vmatpush2.msra.mxu0 0.0
    %2379 = vmatprep.subr.mxu0 0.0
    %2380 = vmatpush2.msra.mxu0 0.0
    %2381 = vmatprep.subr.mxu0 0.0
    %2382 = vmatpush2.msra.mxu0 0.0
    %2383 = vmatprep.subr.mxu0 0.0
    %2384 = vmatpush2.msra.mxu0 0.0
    %2385 = vmatprep.subr.mxu0 0.0
    %2386 = vmatpush2.msra.mxu0 0.0
    %2387 = vmatprep.subr.mxu0 0.0
    %2388 = vmatpush2.msra.mxu0 0.0
    %2389 = vmatprep.subr.mxu0 0.0
    %2390 = vmatpush2.msra.mxu0 0.0
    %2391 = vmatprep.subr.mxu0 0.0
    %2392 = vmatpush2.msra.mxu0 0.0
    %2393 = vmatprep.subr.mxu0 0.0
    %2394 = vmatpush2.msra.mxu0 0.0
    %2395 = vmatprep.subr.mxu0 0.0
    %2396 = vmatpush2.msra.mxu0 0.0
    %2397 = vmatprep.mubr.f32.mxu0 0.0
    %2398 = vmatmul.mubr.f32.gmra.mxu0 %v2331
    %v2399 = vpop.f32.mrf.mxu0
    %v2400 = vadd.f32 %v317, %v2399
    %v2401 = vpop.f32.mrf.mxu0
    %v2402 = vadd.f32 %v321, %v2401
    %2403 = vdwg.mxu0
    %s2404 = scalar_lea.vmem [#allocation2], 28
    %v2405 = vld [vmem:[%s2404] sm:$0xf]
    %2406 = vmatprep.subr.mxu0 0.0
    %2407 = vmatpush1.msra.mxu0 0.0
    %2408 = vmatprep.subr.mxu0 0.0
    %2409 = vmatpush1.msra.mxu0 0.0
    %2410 = vmatprep.subr.mxu0 0.0
    %2411 = vmatpush1.msra.mxu0 0.0
    %2412 = vmatprep.subr.mxu0 0.0
    %2413 = vmatpush1.msra.mxu0 0.0
    %2414 = vmatprep.subr.mxu0 0.0
    %2415 = vmatpush1.msra.mxu0 0.0
    %2416 = vmatprep.subr.mxu0 0.0
    %2417 = vmatpush1.msra.mxu0 0.0
    %2418 = vmatprep.subr.mxu0 0.0
    %2419 = vmatpush1.msra.mxu0 0.0
    %2420 = vmatprep.subr.mxu0 0.0
    %2421 = vmatpush1.msra.mxu0 0.0
    %2422 = vmatprep.subr.mxu0 %v415
    %2423 = vmatpush1.msra.mxu0 %v414
    %2424 = vmatprep.subr.mxu0 %v413
    %2425 = vmatpush1.msra.mxu0 %v412
    %2426 = vmatprep.subr.mxu0 %v411
    %2427 = vmatpush1.msra.mxu0 %v410
    %2428 = vmatprep.subr.mxu0 %v409
    %2429 = vmatpush1.msra.mxu0 %v408
    %2430 = vmatprep.subr.mxu0 %v407
    %2431 = vmatpush1.msra.mxu0 %v406
    %2432 = vmatprep.subr.mxu0 %v405
    %2433 = vmatpush1.msra.mxu0 %v404
    %2434 = vmatprep.subr.mxu0 %v403
    %2435 = vmatpush1.msra.mxu0 %v402
    %2436 = vmatprep.subr.mxu0 %v401
    %2437 = vmatpush1.msra.mxu0 %v400
    %2438 = vmatprep.subr.mxu0 0.0
    %2439 = vmatpush2.msra.mxu0 0.0
    %2440 = vmatprep.subr.mxu0 0.0
    %2441 = vmatpush2.msra.mxu0 0.0
    %2442 = vmatprep.subr.mxu0 0.0
    %2443 = vmatpush2.msra.mxu0 0.0
    %2444 = vmatprep.subr.mxu0 0.0
    %2445 = vmatpush2.msra.mxu0 0.0
    %2446 = vmatprep.subr.mxu0 0.0
    %2447 = vmatpush2.msra.mxu0 0.0
    %2448 = vmatprep.subr.mxu0 0.0
    %2449 = vmatpush2.msra.mxu0 0.0
    %2450 = vmatprep.subr.mxu0 0.0
    %2451 = vmatpush2.msra.mxu0 0.0
    %2452 = vmatprep.subr.mxu0 0.0
    %2453 = vmatpush2.msra.mxu0 0.0
    %2454 = vmatprep.subr.mxu0 0.0
    %2455 = vmatpush2.msra.mxu0 0.0
    %2456 = vmatprep.subr.mxu0 0.0
    %2457 = vmatpush2.msra.mxu0 0.0
    %2458 = vmatprep.subr.mxu0 0.0
    %2459 = vmatpush2.msra.mxu0 0.0
    %2460 = vmatprep.subr.mxu0 0.0
    %2461 = vmatpush2.msra.mxu0 0.0
    %2462 = vmatprep.subr.mxu0 0.0
    %2463 = vmatpush2.msra.mxu0 0.0
    %2464 = vmatprep.subr.mxu0 0.0
    %2465 = vmatpush2.msra.mxu0 0.0
    %2466 = vmatprep.subr.mxu0 0.0
    %2467 = vmatpush2.msra.mxu0 0.0
    %2468 = vmatprep.subr.mxu0 0.0
    %2469 = vmatpush2.msra.mxu0 0.0
    %2470 = vmatprep.mubr.f32.mxu0 0.0
    %2471 = vmatmul.mubr.f32.gmra.mxu0 %v2232
    %v2472 = vpop.f32.mrf.mxu0
    %v2473 = vadd.f32 0.0, %v2472
    %v2474 = vpop.f32.mrf.mxu0
    %v2475 = vadd.f32 0.0, %v2474
    %2476 = vdwg.mxu0
    %v2479 = vcombine.low %v2473, %v2475
    %v2481 = vunpack.c.l.s4 1983009808
    %v2482 = vunpack.c.0.s8 %v2481
    %v2483 = vlaneseq
    %v2484 = vshrl.u32 %v2483, 7
    %v2485 = vsub.s32 %v2482, %v2484
    %v2486 = vrot.slane %v2479, %v2485
    %v2488 = vadd.f32 %v2405, %v2486
    %v2489 = vtanh.pop %v2488
    %v2490 = vmul.f32 %v2489, 0.5
    %v2491 = vadd.f32 %v2490, 0.5
    %v2492 = vmul.f32 %v2491, %v2221
    %2494 = vrot.lane.b32.xlu0 %v2489, 64
    %v2495 = vpop.permute.xlu0 %2494
    %v2496 = vrot.slane %v2495, 2
    %v2498 = vmul.f32 %v2491, %v2496
    %2500 = vrot.lane.b32.xlu0 %v2498, 64
    %v2501 = vpop.permute.xlu0 %2500
    %v2503 = vadd.f32 %v2492, %v2501
    %v2504 = vtanh.pop %v2503
    %v2506 = vrot.slane %v2491, 2
    %2509 = vrot.lane.b32.xlu0 %v2504, 64
    %v2510 = vpop.permute.xlu0 %2509
    %v2512 = vmul.f32 %v2506, %v2510
    %v2514 = vsel %vm324, %v2512, 0
    %2516 = vmatprep.subr.mxu0 0.0
    %2517 = vmatpush1.msra.mxu0 0.0
    %2518 = vmatprep.subr.mxu0 0.0
    %2519 = vmatpush1.msra.mxu0 0.0
    %2520 = vmatprep.subr.mxu0 0.0
    %2521 = vmatpush1.msra.mxu0 0.0
    %2522 = vmatprep.subr.mxu0 0.0
    %2523 = vmatpush1.msra.mxu0 0.0
    %2524 = vmatprep.subr.mxu0 0.0
    %2525 = vmatpush1.msra.mxu0 0.0
    %2526 = vmatprep.subr.mxu0 0.0
    %2527 = vmatpush1.msra.mxu0 0.0
    %2528 = vmatprep.subr.mxu0 0.0
    %2529 = vmatpush1.msra.mxu0 0.0
    %2530 = vmatprep.subr.mxu0 0.0
    %2531 = vmatpush1.msra.mxu0 0.0
    %2532 = vmatprep.subr.mxu0 %v538
    %2533 = vmatpush1.msra.mxu0 %v537
    %2534 = vmatprep.subr.mxu0 %v536
    %2535 = vmatpush1.msra.mxu0 %v535
    %2536 = vmatprep.subr.mxu0 %v534
    %2537 = vmatpush1.msra.mxu0 %v533
    %2538 = vmatprep.subr.mxu0 %v532
    %2539 = vmatpush1.msra.mxu0 %v531
    %2540 = vmatprep.subr.mxu0 %v530
    %2541 = vmatpush1.msra.mxu0 %v529
    %2542 = vmatprep.subr.mxu0 %v528
    %2543 = vmatpush1.msra.mxu0 %v527
    %2544 = vmatprep.subr.mxu0 %v526
    %2545 = vmatpush1.msra.mxu0 %v525
    %2546 = vmatprep.subr.mxu0 %v524
    %2547 = vmatpush1.msra.mxu0 %v523
    %2548 = vmatprep.subr.mxu0 0.0
    %2549 = vmatpush2.msra.mxu0 0.0
    %2550 = vmatprep.subr.mxu0 0.0
    %2551 = vmatpush2.msra.mxu0 0.0
    %2552 = vmatprep.subr.mxu0 0.0
    %2553 = vmatpush2.msra.mxu0 0.0
    %2554 = vmatprep.subr.mxu0 0.0
    %2555 = vmatpush2.msra.mxu0 0.0
    %2556 = vmatprep.subr.mxu0 0.0
    %2557 = vmatpush2.msra.mxu0 0.0
    %2558 = vmatprep.subr.mxu0 0.0
    %2559 = vmatpush2.msra.mxu0 0.0
    %2560 = vmatprep.subr.mxu0 0.0
    %2561 = vmatpush2.msra.mxu0 0.0
    %2562 = vmatprep.subr.mxu0 0.0
    %2563 = vmatpush2.msra.mxu0 0.0
    %2564 = vmatprep.subr.mxu0 0.0
    %2565 = vmatpush2.msra.mxu0 0.0
    %2566 = vmatprep.subr.mxu0 0.0
    %2567 = vmatpush2.msra.mxu0 0.0
    %2568 = vmatprep.subr.mxu0 0.0
    %2569 = vmatpush2.msra.mxu0 0.0
    %2570 = vmatprep.subr.mxu0 0.0
    %2571 = vmatpush2.msra.mxu0 0.0
    %2572 = vmatprep.subr.mxu0 0.0
    %2573 = vmatpush2.msra.mxu0 0.0
    %2574 = vmatprep.subr.mxu0 0.0
    %2575 = vmatpush2.msra.mxu0 0.0
    %2576 = vmatprep.subr.mxu0 0.0
    %2577 = vmatpush2.msra.mxu0 0.0
    %2578 = vmatprep.subr.mxu0 0.0
    %2579 = vmatpush2.msra.mxu0 0.0
    %2580 = vmatprep.mubr.f32.mxu0 0.0
    %2581 = vmatmul.mubr.f32.gmra.mxu0 %v2514
    %v2582 = vpop.f32.mrf.mxu0
    %v2583 = vadd.f32 0.0, %v2582
    %v2584 = vpop.f32.mrf.mxu0
    %v2585 = vadd.f32 0.0, %v2584
    %2586 = vdwg.mxu0
    %v2587 = vadd.f32 %v2400, %v2583
    %v2588 = vadd.f32 %v2402, %v2585
    %v2589 = vtanh.pop %v2587
    %v2590 = vtanh.pop %v2588
    %v2591 = vmul.f32 %v2589, 0.5
    %v2592 = vmul.f32 %v2590, 0.5
    %v2593 = vadd.f32 %v2591, 0.5
    %v2594 = vadd.f32 %v2592, 0.5
    %v2595 = vmul.f32 %v2593, %v2323
    %2597 = vrot.lane.b32.xlu0 %v2590, 64
    %v2598 = vpop.permute.xlu0 %2597
    %v2600 = vmul.f32 %v2593, %v2598
    %2602 = vrot.lane.b32.xlu0 %v2600, 64
    %v2603 = vpop.permute.xlu0 %2602
    %v2605 = vadd.f32 %v2595, %v2603
    %v2606 = vtanh.pop %v2605
    %2608 = vrot.lane.b32.xlu0 %v2606, 64
    %v2609 = vpop.permute.xlu0 %2608
    %v2611 = vmul.f32 %v2594, %v2609
    %v2612 = vld [vmem:[%s7] sm:$0xff]
    %v2613 = vld [vmem:[%s7 + $0x8] sm:$0xff]
    %v2614 = vld [vmem:[%s7 + $0x10] sm:$0xff]
    %v2615 = vld [vmem:[%s7 + $0x18] sm:$0xff]
    %v2616 = vld [vmem:[%s7 + $0x20] sm:$0xff]
    %v2617 = vld [vmem:[%s7 + $0x28] sm:$0xff]
    %v2618 = vld [vmem:[%s7 + $0x30] sm:$0xff]
    %v2619 = vld [vmem:[%s7 + $0x38] sm:$0xff]
    %v2620 = vld [vmem:[%s8] sm:$0x1]
    %v2622 = vlaneseq
    %v2623 = vshrl.u32 %v2622, 7
    %v2624 = vsub.s32 0, %v2623
    %v2625 = vrot.slane %v2620, %v2624
    %v2628 = vsel %vm324, %v2611, 0
    %2630 = vmatprep.subr.mxu0 0.0
    %2631 = vmatpush1.msra.mxu0 0.0
    %2632 = vmatprep.subr.mxu0 0.0
    %2633 = vmatpush1.msra.mxu0 0.0
    %2634 = vmatprep.subr.mxu0 0.0
    %2635 = vmatpush1.msra.mxu0 0.0
    %2636 = vmatprep.subr.mxu0 0.0
    %2637 = vmatpush1.msra.mxu0 0.0
    %2638 = vmatprep.subr.mxu0 0.0
    %2639 = vmatpush1.msra.mxu0 0.0
    %2640 = vmatprep.subr.mxu0 0.0
    %2641 = vmatpush1.msra.mxu0 0.0
    %2642 = vmatprep.subr.mxu0 0.0
    %2643 = vmatpush1.msra.mxu0 0.0
    %2644 = vmatprep.subr.mxu0 0.0
    %2645 = vmatpush1.msra.mxu0 0.0
    %2646 = vmatprep.subr.mxu0 0.0
    %2647 = vmatpush1.msra.mxu0 %v2619
    %2648 = vmatprep.subr.mxu0 0.0
    %2649 = vmatpush1.msra.mxu0 %v2618
    %2650 = vmatprep.subr.mxu0 0.0
    %2651 = vmatpush1.msra.mxu0 %v2617
    %2652 = vmatprep.subr.mxu0 0.0
    %2653 = vmatpush1.msra.mxu0 %v2616
    %2654 = vmatprep.subr.mxu0 0.0
    %2655 = vmatpush1.msra.mxu0 %v2615
    %2656 = vmatprep.subr.mxu0 0.0
    %2657 = vmatpush1.msra.mxu0 %v2614
    %2658 = vmatprep.subr.mxu0 0.0
    %2659 = vmatpush1.msra.mxu0 %v2613
    %2660 = vmatprep.subr.mxu0 0.0
    %2661 = vmatpush1.msra.mxu0 %v2612
    %2662 = vmatprep.subr.mxu0 0.0
    %2663 = vmatpush2.msra.mxu0 0.0
    %2664 = vmatprep.subr.mxu0 0.0
    %2665 = vmatpush2.msra.mxu0 0.0
    %2666 = vmatprep.subr.mxu0 0.0
    %2667 = vmatpush2.msra.mxu0 0.0
    %2668 = vmatprep.subr.mxu0 0.0
    %2669 = vmatpush2.msra.mxu0 0.0
    %2670 = vmatprep.subr.mxu0 0.0
    %2671 = vmatpush2.msra.mxu0 0.0
    %2672 = vmatprep.subr.mxu0 0.0
    %2673 = vmatpush2.msra.mxu0 0.0
    %2674 = vmatprep.subr.mxu0 0.0
    %2675 = vmatpush2.msra.mxu0 0.0
    %2676 = vmatprep.subr.mxu0 0.0
    %2677 = vmatpush2.msra.mxu0 0.0
    %2678 = vmatprep.subr.mxu0 0.0
    %2679 = vmatpush2.msra.mxu0 0.0
    %2680 = vmatprep.subr.mxu0 0.0
    %2681 = vmatpush2.msra.mxu0 0.0
    %2682 = vmatprep.subr.mxu0 0.0
    %2683 = vmatpush2.msra.mxu0 0.0
    %2684 = vmatprep.subr.mxu0 0.0
    %2685 = vmatpush2.msra.mxu0 0.0
    %2686 = vmatprep.subr.mxu0 0.0
    %2687 = vmatpush2.msra.mxu0 0.0
    %2688 = vmatprep.subr.mxu0 0.0
    %2689 = vmatpush2.msra.mxu0 0.0
    %2690 = vmatprep.subr.mxu0 0.0
    %2691 = vmatpush2.msra.mxu0 0.0
    %2692 = vmatprep.subr.mxu0 0.0
    %2693 = vmatpush2.msra.mxu0 0.0
    %2694 = vmatprep.mubr.f32.mxu0 0.0
    %2695 = vmatmul.mubr.f32.gmra.mxu0 %v2628
    %v2696 = vpop.f32.mrf.mxu0
    %v2697 = vadd.f32 %v2625, %v2696
    %v2698 = vpop.f32.mrf.mxu0
    %2699 = vdwg.mxu0
    %v2700 = vld [vmem:[%s9] sm:$0xff]
    %v2701 = vld [vmem:[%s9 + $0x8] sm:$0xff]
    %v2702 = vld [vmem:[%s9 + $0x10] sm:$0xff]
    %v2703 = vld [vmem:[%s9 + $0x18] sm:$0xff]
    %v2704 = vld [vmem:[%s9 + $0x20] sm:$0xff]
    %v2705 = vld [vmem:[%s9 + $0x28] sm:$0xff]
    %v2706 = vld [vmem:[%s9 + $0x30] sm:$0xff]
    %v2707 = vld [vmem:[%s9 + $0x38] sm:$0xff]
    %v2708 = vld [vmem:[%s10] sm:$0x1]
    %v2710 = vlaneseq
    %v2711 = vshrl.u32 %v2710, 7
    %v2712 = vsub.s32 0, %v2711
    %v2713 = vrot.slane %v2708, %v2712
    %v2716 = vsel %vm324, %v2697, 0
    %2718 = vmatprep.subr.mxu0 0.0
    %2719 = vmatpush1.msra.mxu0 0.0
    %2720 = vmatprep.subr.mxu0 0.0
    %2721 = vmatpush1.msra.mxu0 0.0
    %2722 = vmatprep.subr.mxu0 0.0
    %2723 = vmatpush1.msra.mxu0 0.0
    %2724 = vmatprep.subr.mxu0 0.0
    %2725 = vmatpush1.msra.mxu0 0.0
    %2726 = vmatprep.subr.mxu0 0.0
    %2727 = vmatpush1.msra.mxu0 0.0
    %2728 = vmatprep.subr.mxu0 0.0
    %2729 = vmatpush1.msra.mxu0 0.0
    %2730 = vmatprep.subr.mxu0 0.0
    %2731 = vmatpush1.msra.mxu0 0.0
    %2732 = vmatprep.subr.mxu0 0.0
    %2733 = vmatpush1.msra.mxu0 0.0
    %2734 = vmatprep.subr.mxu0 0.0
    %2735 = vmatpush1.msra.mxu0 %v2707
    %2736 = vmatprep.subr.mxu0 0.0
    %2737 = vmatpush1.msra.mxu0 %v2706
    %2738 = vmatprep.subr.mxu0 0.0
    %2739 = vmatpush1.msra.mxu0 %v2705
    %2740 = vmatprep.subr.mxu0 0.0
    %2741 = vmatpush1.msra.mxu0 %v2704
    %2742 = vmatprep.subr.mxu0 0.0
    %2743 = vmatpush1.msra.mxu0 %v2703
    %2744 = vmatprep.subr.mxu0 0.0
    %2745 = vmatpush1.msra.mxu0 %v2702
    %2746 = vmatprep.subr.mxu0 0.0
    %2747 = vmatpush1.msra.mxu0 %v2701
    %2748 = vmatprep.subr.mxu0 0.0
    %2749 = vmatpush1.msra.mxu0 %v2700
    %2750 = vmatprep.subr.mxu0 0.0
    %2751 = vmatpush2.msra.mxu0 0.0
    %2752 = vmatprep.subr.mxu0 0.0
    %2753 = vmatpush2.msra.mxu0 0.0
    %2754 = vmatprep.subr.mxu0 0.0
    %2755 = vmatpush2.msra.mxu0 0.0
    %2756 = vmatprep.subr.mxu0 0.0
    %2757 = vmatpush2.msra.mxu0 0.0
    %2758 = vmatprep.subr.mxu0 0.0
    %2759 = vmatpush2.msra.mxu0 0.0
    %2760 = vmatprep.subr.mxu0 0.0
    %2761 = vmatpush2.msra.mxu0 0.0
    %2762 = vmatprep.subr.mxu0 0.0
    %2763 = vmatpush2.msra.mxu0 0.0
    %2764 = vmatprep.subr.mxu0 0.0
    %2765 = vmatpush2.msra.mxu0 0.0
    %2766 = vmatprep.subr.mxu0 0.0
    %2767 = vmatpush2.msra.mxu0 0.0
    %2768 = vmatprep.subr.mxu0 0.0
    %2769 = vmatpush2.msra.mxu0 0.0
    %2770 = vmatprep.subr.mxu0 0.0
    %2771 = vmatpush2.msra.mxu0 0.0
    %2772 = vmatprep.subr.mxu0 0.0
    %2773 = vmatpush2.msra.mxu0 0.0
    %2774 = vmatprep.subr.mxu0 0.0
    %2775 = vmatpush2.msra.mxu0 0.0
    %2776 = vmatprep.subr.mxu0 0.0
    %2777 = vmatpush2.msra.mxu0 0.0
    %2778 = vmatprep.subr.mxu0 0.0
    %2779 = vmatpush2.msra.mxu0 0.0
    %2780 = vmatprep.subr.mxu0 0.0
    %2781 = vmatpush2.msra.mxu0 0.0
    %2782 = vmatprep.mubr.f32.mxu0 0.0
    %2783 = vmatmul.mubr.f32.gmra.mxu0 %v2716
    %v2784 = vpop.f32.mrf.mxu0
    %v2785 = vadd.f32 %v2713, %v2784
    %v2786 = vpop.f32.mrf.mxu0
    %2787 = vdwg.mxu0
    %v2788 = vmax.f32 %v2785, 0.0
    %v2789 = vld [vmem:[%s11] sm:$0x1]
    %v2791 = vlaneseq
    %v2792 = vshrl.u32 %v2791, 7
    %v2793 = vsub.s32 0, %v2792
    %v2794 = vrot.slane %v2789, %v2793
    %v2796 = vmul.f32 %v2788, %v2794
    %vm2797 = vcmask 74752
    %v2798 = vsel %vm2797, %v2796, 0.0
    %2799 = vadd.xlane.f32.xlu0 %v2798
    %v2800 = vpop.xlane.xlu0 %2799
    %v2801 = vld [vmem:[#allocation3] sm:$0x1]
    %v2803 = vlaneseq
    %v2804 = vshrl.u32 %v2803, 7
    %v2805 = vsub.s32 0, %v2804
    %v2806 = vrot.slane %v2801, %v2805
    %v2808 = vadd.f32 %v2800, %v2806
    %vm2809 = vcmask 1024
    %2810 = vst.msk [vmem:[%s13] sm:$0x3] %vm2809, %v2808
    // Predicated region
    $region66: #{lstm_forward.1} parent=1 // pred_check
      _
    $region67: #{lstm_forward.1} parent=1 // pred_check_branch
      %2812 = sbr.rel (0) target = $region69
    $region68: #{lstm_forward.1} parent=1 // pred_region
      _
    $region69: #{lstm_forward.1} parent=1 // pred_fallthru
      _
    // Predicated region
    $region70: #{lstm_forward.1} parent=1 // pred_check
      _
    $region71: #{lstm_forward.1} parent=1 // pred_check_branch
      %2814 = sbr.rel (0) target = $region73
    $region72: #{lstm_forward.1} parent=1 // pred_region
      _
    $region73: #{lstm_forward.1} parent=1 // pred_fallthru
      _
    %2815 = vsyncpa [#allocation5], 1
    %2816 = vsyncpa [#allocation7], 1

</llo_original>
